<compile_context>
chip_gen: v7x
topology: tpu7x:2x2x1
jax: 0.10.0
libtpu: 0.0.40
codegen_flags: <defaults>
</compile_context>

<pallas_src>
import functools

import jax
import jax.numpy as jnp
import numpy as np
from jax import lax
from jax.experimental import pallas as pl
from jax.experimental.pallas import tpu as pltpu

BN_EPS = 1e-5
LANE = 128
VMEM_LIMIT = 32 * 1024 * 1024   # explicit; fits v5e/v6e/v7x scoped VMEM


def _round_up(x, m):
    return ((x + m - 1) // m) * m


# ---------------------------------------------------------------------------
# In-kernel helpers
# ---------------------------------------------------------------------------
def _border_masks(hw, w, cp):
    # Output-row masks: row r of the flat (H*W, Cp) slab is image column r % W.
    col = lax.broadcasted_iota(jnp.int32, (hw, cp), 0) % w
    return col != 0, col != (w - 1)


def _stage_padded(xf_ref, x, hw, off, tail):
    """Write x (hw, Cp) into the flat zero-padded scratch at row offset `off`."""
    cp = x.shape[-1]
    xf_ref[pl.ds(0, off), :] = jnp.zeros((off, cp), x.dtype)
    xf_ref[pl.ds(off + hw, tail), :] = jnp.zeros((tail, cp), x.dtype)
    xf_ref[pl.ds(off, hw), :] = x


def _conv3x3_taps(xf_ref, w_ref, acc_ref, not_left, not_right, h, w, off):
    """acc_ref = sum over the 9 taps of (row-shifted slab) @ w_tap, in f32.

    The flat layout makes every tap a contiguous row-slice of the padded
    scratch; taps that look across the left/right image border read the
    previous/next row's edge pixel, so those output columns are masked.
    """
    hw = h * w
    first = True
    for kh in range(3):
        for kw in range(3):
            start = off + (kh - 1) * w + (kw - 1)
            patch = xf_ref[pl.ds(start, hw), :]
            if kw == 0:
                patch = jnp.where(not_left, patch, 0.0)
            elif kw == 2:
                patch = jnp.where(not_right, patch, 0.0)
            contrib = jnp.dot(patch, w_ref[kh * 3 + kw],
                              preferred_element_type=jnp.float32)
            if first:
                acc_ref[...] = contrib
                first = False
            else:
                acc_ref[...] += contrib


# ---------------------------------------------------------------------------
# Kernel 1: conv3x3 + folded BN + optional ReLU (per (stream, batch) block)
# ---------------------------------------------------------------------------
def conv_bn_act_kernel(x_ref, w_ref, scale_ref, shift_ref, o_ref,
                       xf_ref, acc_ref, *, H, W, apply_relu):
    hw = H * W
    cp = x_ref.shape[-1]
    off = _round_up(W + 1, 8)
    tail = xf_ref.shape[0] - off - hw

    not_left, not_right = _border_masks(hw, W, cp)
    _stage_padded(xf_ref, x_ref[0, 0], hw, off, tail)
    _conv3x3_taps(xf_ref, w_ref, acc_ref, not_left, not_right, H, W, off)

    y = acc_ref[...] * scale_ref[0] + shift_ref[0]
    if apply_relu:
        y = jnp.maximum(y, 0.0)
    o_ref[0, 0] = y.astype(o_ref.dtype)


def conv_bn_act(x, w_taps, scale, shift, *, H, W, apply_relu):
    L, N, HW, Cp = x.shape
    off = _round_up(W + 1, 8)
    tail = _round_up(W + 1, 8)
    total = off + HW + tail

    kernel = functools.partial(conv_bn_act_kernel, H=H, W=W,
                               apply_relu=apply_relu)
    flops = 2 * L * N * HW * 9 * Cp * Cp
    bytes_accessed = 4 * (2 * L * N * HW * Cp + 9 * Cp * Cp + 2 * L * Cp)
    return pl.pallas_call(
        kernel,
        out_shape=jax.ShapeDtypeStruct((L, N, HW, Cp), x.dtype),
        grid_spec=pltpu.PrefetchScalarGridSpec(
            num_scalar_prefetch=0,
            grid=(L, N),
            in_specs=[
                pl.BlockSpec((1, 1, HW, Cp), lambda l, n: (l, n, 0, 0)),
                pl.BlockSpec((9, Cp, Cp), lambda l, n: (0, 0, 0)),
                pl.BlockSpec((1, 1, Cp), lambda l, n: (l, 0, 0)),
                pl.BlockSpec((1, 1, Cp), lambda l, n: (l, 0, 0)),
            ],
            out_specs=pl.BlockSpec((1, 1, HW, Cp), lambda l, n: (l, n, 0, 0)),
            scratch_shapes=[
                pltpu.VMEM((total, Cp), x.dtype),       # flat padded input
                pltpu.VMEM((HW, Cp), jnp.float32),      # f32 accumulator
            ],
        ),
        compiler_params=pltpu.CompilerParams(
            dimension_semantics=("parallel", "parallel"),
            vmem_limit_bytes=VMEM_LIMIT,
        ),
        cost_estimate=pl.CostEstimate(flops=flops, transcendentals=0,
                                      bytes_accessed=bytes_accessed),
    )(x, w_taps, scale, shift)


# ---------------------------------------------------------------------------
# Kernel 2: conv3x3 + BN2 + channel Exchange + residual add + ReLU (fused,
#           both streams, per batch block)
# ---------------------------------------------------------------------------
def conv_bn_exchange_kernel(h_ref, r_ref, w_ref, scale_ref, shift_ref,
                            gamma_ref, o_ref, xf_ref, acc0_ref, acc1_ref, *,
                            H, W, bn_threshold):
    hw = H * W
    cp = h_ref.shape[-1]
    off = _round_up(W + 1, 8)
    tail = xf_ref.shape[0] - off - hw

    not_left, not_right = _border_masks(hw, W, cp)
    accs = (acc0_ref, acc1_ref)
    for l in range(2):
        _stage_padded(xf_ref, h_ref[l, 0], hw, off, tail)
        _conv3x3_taps(xf_ref, w_ref, accs[l], not_left, not_right, H, W, off)
        # folded BN2 affine, per stream
        accs[l][...] = accs[l][...] * scale_ref[l] + shift_ref[l]

    # Channel Exchange (defined for 2 parallel streams): keep own channel
    # where |gamma_bn2| >= threshold, else take the other stream's channel.
    keep0 = jnp.broadcast_to(jnp.abs(gamma_ref[0]) >= bn_threshold, (hw, cp))
    keep1 = jnp.broadcast_to(jnp.abs(gamma_ref[1]) >= bn_threshold, (hw, cp))
    y0 = acc0_ref[...]
    y1 = acc1_ref[...]
    x0 = jnp.where(keep0, y0, y1)
    x1 = jnp.where(keep1, y1, y0)
    o_ref[0, 0] = jnp.maximum(x0 + r_ref[0, 0], 0.0).astype(o_ref.dtype)
    o_ref[1, 0] = jnp.maximum(x1 + r_ref[1, 0], 0.0).astype(o_ref.dtype)


def conv_bn_exchange_add_relu(h, resid, w_taps, scale, shift, gamma, *,
                              H, W, bn_threshold):
    L, N, HW, Cp = h.shape
    assert L == 2
    off = _round_up(W + 1, 8)
    tail = _round_up(W + 1, 8)
    total = off + HW + tail

    kernel = functools.partial(conv_bn_exchange_kernel, H=H, W=W,
                               bn_threshold=float(bn_threshold))
    flops = 2 * L * N * HW * 9 * Cp * Cp
    bytes_accessed = 4 * (3 * L * N * HW * Cp + 9 * Cp * Cp + 3 * L * Cp)
    return pl.pallas_call(
        kernel,
        out_shape=jax.ShapeDtypeStruct((L, N, HW, Cp), h.dtype),
        grid_spec=pltpu.PrefetchScalarGridSpec(
            num_scalar_prefetch=0,
            grid=(N,),
            in_specs=[
                pl.BlockSpec((L, 1, HW, Cp), lambda n: (0, n, 0, 0)),  # conv1 out
                pl.BlockSpec((L, 1, HW, Cp), lambda n: (0, n, 0, 0)),  # residual
                pl.BlockSpec((9, Cp, Cp), lambda n: (0, 0, 0)),        # weights
                pl.BlockSpec((L, 1, Cp), lambda n: (0, 0, 0)),         # bn2 scale
                pl.BlockSpec((L, 1, Cp), lambda n: (0, 0, 0)),         # bn2 shift
                pl.BlockSpec((L, 1, Cp), lambda n: (0, 0, 0)),         # bn2 gamma
            ],
            out_specs=pl.BlockSpec((L, 1, HW, Cp), lambda n: (0, n, 0, 0)),
            scratch_shapes=[
                pltpu.VMEM((total, Cp), h.dtype),       # flat padded input
                pltpu.VMEM((HW, Cp), jnp.float32),      # acc stream 0
                pltpu.VMEM((HW, Cp), jnp.float32),      # acc stream 1
            ],
        ),
        compiler_params=pltpu.CompilerParams(
            dimension_semantics=("parallel",),
            vmem_limit_bytes=VMEM_LIMIT,
        ),
        cost_estimate=pl.CostEstimate(flops=flops, transcendentals=0,
                                      bytes_accessed=bytes_accessed),
    )(h, resid, w_taps, scale, shift, gamma)


# ---------------------------------------------------------------------------
# Parameter prep + BasicBlock forward (num_parallel == 2, stride=1, no downsample)
# ---------------------------------------------------------------------------
def _prep_conv_weight(w_oihw, cp):
    # OIHW -> HWIO, zero-pad channels to cp, flatten the 3x3 taps.
    cout, cin, kh, kw = w_oihw.shape
    w = jnp.transpose(w_oihw, (2, 3, 1, 0))                  # (3, 3, Cin, Cout)
    w = jnp.pad(w, ((0, 0), (0, 0), (0, cp - cin), (0, cp - cout)))
    return w.reshape(kh * kw, cp, cp)


def _fold_bn(gamma, beta, mean, var, cp):
    # (L, C) running stats -> (L, 1, Cp) folded scale/shift, zero-padded.
    s = gamma / jnp.sqrt(var + BN_EPS)
    b = beta - mean * s
    L, c = gamma.shape
    s = jnp.pad(s, ((0, 0), (0, cp - c))).reshape(L, 1, cp).astype(jnp.float32)
    b = jnp.pad(b, ((0, 0), (0, cp - c))).reshape(L, 1, cp).astype(jnp.float32)
    return s, b


def basic_block_forward(x_list_nchw, params, bn_threshold):
    num_parallel = len(x_list_nchw)
    assert num_parallel == 2, "Exchange is defined for 2 parallel streams"

    N, C, H, W = x_list_nchw[0].shape
    Cp = _round_up(max(C, LANE), LANE)
    HW = H * W

    # NCHW -> channels-last, lane-dense (pad C -> Cp), flatten spatial (boundary
    # layout plumbing only; the two kernels never round-trip bn2 outputs to HBM).
    xs = jnp.stack(x_list_nchw)                              # (L, N, C, H, W)
    xs = jnp.transpose(xs, (0, 1, 3, 4, 2))                  # (L, N, H, W, C)
    xs = jnp.pad(xs, ((0, 0),) * 4 + ((0, Cp - C),))
    xs = xs.reshape(num_parallel, N, HW, Cp)

    w1 = _prep_conv_weight(params["conv1_w"], Cp)
    w2 = _prep_conv_weight(params["conv2_w"], Cp)
    s1, b1 = _fold_bn(params["bn1_gamma"], params["bn1_beta"],
                      params["bn1_mean"], params["bn1_var"], Cp)
    s2, b2 = _fold_bn(params["bn2_gamma"], params["bn2_beta"],
                      params["bn2_mean"], params["bn2_var"], Cp)
    g2 = jnp.pad(params["bn2_gamma"], ((0, 0), (0, Cp - C)))
    g2 = g2.reshape(num_parallel, 1, Cp).astype(jnp.float32)

    # conv1 + bn1 + relu (both streams, shared weights, grid (L, N))
    h = conv_bn_act(xs, w1, s1, b1, H=H, W=W, apply_relu=True)
    # conv2 + bn2 + exchange + residual + relu, fully fused (grid (N,))
    out = conv_bn_exchange_add_relu(h, xs, w2, s2, b2, g2,
                                    H=H, W=W, bn_threshold=bn_threshold)

    out = out.reshape(num_parallel, N, H, W, Cp)[..., :C]
    out = jnp.transpose(out, (0, 1, 4, 2, 3))                # (L, N, C, H, W)
    return [out[l] for l in range(num_parallel)]


# ---------------------------------------------------------------------------
# Pure-JAX reference (same semantics) for validation
# ---------------------------------------------------------------------------
def ref_forward(x_list, params, bn_threshold):
    def conv(x, w):
        return jax.lax.conv_general_dilated(
            x, w, (1, 1), "SAME",
            dimension_numbers=("NCHW", "OIHW", "NCHW"))

    def bn(x, g, b, m, v):
        s = g / jnp.sqrt(v + BN_EPS)
        return x * s[None, :, None, None] + (b - m * s)[None, :, None, None]

    outs = []
    for l in range(len(x_list)):
        h = conv(x_list[l], params["conv1_w"])
        h = bn(h, params["bn1_gamma"][l], params["bn1_beta"][l],
               params["bn1_mean"][l], params["bn1_var"][l])
        h = jnp.maximum(h, 0.0)
        h = conv(h, params["conv2_w"])
        h = bn(h, params["bn2_gamma"][l], params["bn2_beta"][l],
               params["bn2_mean"][l], params["bn2_var"][l])
        outs.append(h)
    m0 = jnp.abs(params["bn2_gamma"][0]) >= bn_threshold
    m1 = jnp.abs(params["bn2_gamma"][1]) >= bn_threshold
    x0 = jnp.where(m0[None, :, None, None], outs[0], outs[1])
    x1 = jnp.where(m1[None, :, None, None], outs[1], outs[0])
    return [jnp.maximum(x0 + x_list[0], 0.0),
            jnp.maximum(x1 + x_list[1], 0.0)]


if __name__ == "__main__":
    # Small shapes consistent with the module: 2 parallel streams of NCHW.
    N, C, Hdim, Wdim = 2, 4, 16, 16        # inplanes = planes = 4
    num_parallel = 2
    bn_threshold = 0.5

    key = jax.random.PRNGKey(0)
    ks = jax.random.split(key, 12)

    x_list = [
        jax.random.normal(ks[0], (N, C, Hdim, Wdim), jnp.float32),
        jax.random.normal(ks[1], (N, C, Hdim, Wdim), jnp.float32),
    ]

    params = {
        "conv1_w": jax.random.normal(ks[2], (C, C, 3, 3), jnp.float32) * 0.2,
        "conv2_w": jax.random.normal(ks[3], (C, C, 3, 3), jnp.float32) * 0.2,
        "bn1_gamma": jax.random.uniform(ks[4], (num_parallel, C), jnp.float32,
                                        0.5, 1.5),
        "bn1_beta": jax.random.normal(ks[5], (num_parallel, C), jnp.float32) * 0.1,
        "bn1_mean": jax.random.normal(ks[6], (num_parallel, C), jnp.float32) * 0.1,
        "bn1_var": jax.random.uniform(ks[7], (num_parallel, C), jnp.float32,
                                      0.5, 1.5),
        # bn2 gammas drawn in [0, 1) so some channels fall below the 0.5
        # threshold and the Exchange actually swaps channels.
        "bn2_gamma": jax.random.uniform(ks[8], (num_parallel, C), jnp.float32),
        "bn2_beta": jax.random.normal(ks[9], (num_parallel, C), jnp.float32) * 0.1,
        "bn2_mean": jax.random.normal(ks[10], (num_parallel, C), jnp.float32) * 0.1,
        "bn2_var": jax.random.uniform(ks[11], (num_parallel, C), jnp.float32,
                                      0.5, 1.5),
    }

    out = basic_block_forward(x_list, params, bn_threshold)
    out = [jax.block_until_ready(o) for o in out]

    ref = ref_forward(x_list, params, bn_threshold)
    for o, r in zip(out, ref):
        np.testing.assert_allclose(np.asarray(o), np.asarray(r),
                                   atol=1e-4, rtol=1e-4)

    print("KERNEL_OK")
</pallas_src>

<mosaic_0001>
module attributes {stable_mosaic.version = 11 : i64} {
  func.func @conv_bn_act_kernel(%arg0: i32, %arg1: i32, %arg2: memref<1x1x256x128xf32, #tpu.memory_space<vmem>>, %arg3: memref<9x128x128xf32, #tpu.memory_space<vmem>>, %arg4: memref<1x1x128xf32, #tpu.memory_space<vmem>>, %arg5: memref<1x1x128xf32, #tpu.memory_space<vmem>>, %arg6: memref<1x1x256x128xf32, #tpu.memory_space<vmem>>, %arg7: memref<304x128xf32, #tpu.memory_space<vmem>>, %arg8: memref<256x128xf32, #tpu.memory_space<vmem>>) attributes {dimension_semantics = [#tpu.dimension_semantics<parallel>, #tpu.dimension_semantics<parallel>], iteration_bounds = array<i64: 2, 2>, scalar_prefetch = 0 : i64, scratch_operands = 2 : i64, tpu.core_type = #tpu.core_type<tc>, window_params = [{transform_indices = @transform_0, window_bounds = array<i64: 1, 1, 256, 128>}, {pipeline_mode = #tpu.pipeline_mode<synchronous>, transform_indices = @transform_1, window_bounds = array<i64: 9, 128, 128>}, {transform_indices = @transform_2, window_bounds = array<i64: 1, 1, 128>}, {transform_indices = @transform_3, window_bounds = array<i64: 1, 1, 128>}, {transform_indices = @transform_4, window_bounds = array<i64: 1, 1, 256, 128>}]} {
    %0 = tpu.iota {dimensions = array<i32: 0>} : vector<256x128xi32>
    %c16_i32 = arith.constant 16 : i32
    %c0_i32 = arith.constant 0 : i32
    %1 = arith.cmpi eq, %c16_i32, %c0_i32 : i32
    %c1_i32 = arith.constant 1 : i32
    %2 = arith.select %1, %c1_i32, %c16_i32 : i32
    %3 = vector.broadcast %2 : i32 to vector<256x128xi32>
    %4 = arith.remsi %0, %3 : vector<256x128xi32>
    %c0_i32_0 = arith.constant 0 : i32
    %5 = vector.broadcast %c0_i32_0 : i32 to vector<256x128xi32>
    %6 = arith.cmpi ne, %4, %5 : vector<256x128xi32>
    %c0_i32_1 = arith.constant 0 : i32
    %7 = vector.broadcast %c0_i32_1 : i32 to vector<256x128xi32>
    %8 = arith.cmpi slt, %4, %7 : vector<256x128xi32>
    %c0_i32_2 = arith.constant 0 : i32
    %9 = arith.cmpi slt, %2, %c0_i32_2 : i32
    %10 = vector.broadcast %9 : i1 to vector<256x128xi1>
    %11 = vector.broadcast %10 : vector<256x128xi1> to vector<256x128xi1>
    %12 = arith.xori %8, %11 : vector<256x128xi1>
    %13 = arith.andi %12, %6 : vector<256x128xi1>
    %14 = vector.broadcast %2 : i32 to vector<256x128xi32>
    %15 = arith.addi %4, %14 : vector<256x128xi32>
    %16 = arith.select %13, %15, %4 : vector<256x128xi1>, vector<256x128xi32>
    %c0_i32_3 = arith.constant 0 : i32
    %17 = vector.broadcast %c0_i32_3 : i32 to vector<256x128xi32>
    %18 = arith.cmpi ne, %16, %17 : vector<256x128xi32>
    %c15_i32 = arith.constant 15 : i32
    %19 = vector.broadcast %c15_i32 : i32 to vector<256x128xi32>
    %20 = arith.cmpi ne, %16, %19 : vector<256x128xi32>
    %c0 = arith.constant 0 : index
    %c0_4 = arith.constant 0 : index
    %c0_5 = arith.constant 0 : index
    %c0_6 = arith.constant 0 : index
    %21 = vector.load %arg2[%c0, %c0_4, %c0_5, %c0_6] : memref<1x1x256x128xf32, #tpu.memory_space<vmem>>, vector<1x1x256x128xf32>
    %22 = vector.shape_cast %21 : vector<1x1x256x128xf32> to vector<256x128xf32>
    %cst = arith.constant 0.000000e+00 : f32
    %23 = vector.broadcast %cst : f32 to vector<24x128xf32>
    %c0_7 = arith.constant 0 : index
    %c0_8 = arith.constant 0 : index
    %24 = vector.load %arg7[%c0_7, %c0_8] : memref<304x128xf32, #tpu.memory_space<vmem>>, vector<24x128xf32>
    tpu.vector_store %arg7[%c0_7, %c0_8], %23 {strides = array<i32>} : memref<304x128xf32, #tpu.memory_space<vmem>>, vector<24x128xf32>,
    %cst_9 = arith.constant 0.000000e+00 : f32
    %25 = vector.broadcast %cst_9 : f32 to vector<24x128xf32>
    %c280 = arith.constant 280 : index
    %c0_10 = arith.constant 0 : index
    %26 = vector.load %arg7[%c280, %c0_10] : memref<304x128xf32, #tpu.memory_space<vmem>>, vector<24x128xf32>
    tpu.vector_store %arg7[%c280, %c0_10], %25 {strides = array<i32>} : memref<304x128xf32, #tpu.memory_space<vmem>>, vector<24x128xf32>,
    %c24 = arith.constant 24 : index
    %c0_11 = arith.constant 0 : index
    %27 = vector.load %arg7[%c24, %c0_11] : memref<304x128xf32, #tpu.memory_space<vmem>>, vector<256x128xf32>
    tpu.vector_store %arg7[%c24, %c0_11], %22 {strides = array<i32>} : memref<304x128xf32, #tpu.memory_space<vmem>>, vector<256x128xf32>,
    %c7 = arith.constant 7 : index
    %c0_12 = arith.constant 0 : index
    %28 = vector.load %arg7[%c7, %c0_12] : memref<304x128xf32, #tpu.memory_space<vmem>>, vector<256x128xf32>
    %cst_13 = arith.constant 0.000000e+00 : f32
    %29 = vector.broadcast %cst_13 : f32 to vector<256x128xf32>
    %30 = arith.select %18, %28, %29 : vector<256x128xi1>, vector<256x128xf32>
    %c0_14 = arith.constant 0 : index
    %c0_15 = arith.constant 0 : index
    %c0_16 = arith.constant 0 : index
    %31 = vector.load %arg3[%c0_14, %c0_15, %c0_16] : memref<9x128x128xf32, #tpu.memory_space<vmem>>, vector<1x128x128xf32>
    %32 = vector.shape_cast %31 : vector<1x128x128xf32> to vector<128x128xf32>
    %cst_17 = arith.constant dense<0.000000e+00> : vector<256x128xf32>
    %33 = tpu.matmul %30, %32, %cst_17 {dimension_numbers = #tpu.dot_dimension_numbers<[1], [0], [0], [1], [0, 0, 1, 1], [], []>} : vector<256x128xf32>, vector<128x128xf32>, vector<256x128xf32> -> vector<256x128xf32>
    %c0_18 = arith.constant 0 : index
    %c0_19 = arith.constant 0 : index
    %34 = vector.load %arg8[%c0_18, %c0_19] : memref<256x128xf32, #tpu.memory_space<vmem>>, vector<256x128xf32>
    tpu.vector_store %arg8[%c0_18, %c0_19], %33 {strides = array<i32>} : memref<256x128xf32, #tpu.memory_space<vmem>>, vector<256x128xf32>,
    %c8 = arith.constant 8 : index
    %c0_20 = arith.constant 0 : index
    %35 = vector.load %arg7[%c8, %c0_20] : memref<304x128xf32, #tpu.memory_space<vmem>>, vector<256x128xf32>
    %c1 = arith.constant 1 : index
    %c0_21 = arith.constant 0 : index
    %c0_22 = arith.constant 0 : index
    %36 = vector.load %arg3[%c1, %c0_21, %c0_22] : memref<9x128x128xf32, #tpu.memory_space<vmem>>, vector<1x128x128xf32>
    %37 = vector.shape_cast %36 : vector<1x128x128xf32> to vector<128x128xf32>
    %cst_23 = arith.constant dense<0.000000e+00> : vector<256x128xf32>
    %38 = tpu.matmul %35, %37, %cst_23 {dimension_numbers = #tpu.dot_dimension_numbers<[1], [0], [0], [1], [0, 0, 1, 1], [], []>} : vector<256x128xf32>, vector<128x128xf32>, vector<256x128xf32> -> vector<256x128xf32>
    %c0_24 = arith.constant 0 : index
    %c0_25 = arith.constant 0 : index
    %39 = vector.load %arg8[%c0_24, %c0_25] : memref<256x128xf32, #tpu.memory_space<vmem>>, vector<256x128xf32>
    %40 = arith.addf %39, %38 : vector<256x128xf32>
    %c0_26 = arith.constant 0 : index
    %c0_27 = arith.constant 0 : index
    %41 = vector.load %arg8[%c0_26, %c0_27] : memref<256x128xf32, #tpu.memory_space<vmem>>, vector<256x128xf32>
    tpu.vector_store %arg8[%c0_26, %c0_27], %40 {strides = array<i32>} : memref<256x128xf32, #tpu.memory_space<vmem>>, vector<256x128xf32>,
    %c9 = arith.constant 9 : index
    %c0_28 = arith.constant 0 : index
    %42 = vector.load %arg7[%c9, %c0_28] : memref<304x128xf32, #tpu.memory_space<vmem>>, vector<256x128xf32>
    %cst_29 = arith.constant 0.000000e+00 : f32
    %43 = vector.broadcast %cst_29 : f32 to vector<256x128xf32>
    %44 = arith.select %20, %42, %43 : vector<256x128xi1>, vector<256x128xf32>
    %c2 = arith.constant 2 : index
    %c0_30 = arith.constant 0 : index
    %c0_31 = arith.constant 0 : index
    %45 = vector.load %arg3[%c2, %c0_30, %c0_31] : memref<9x128x128xf32, #tpu.memory_space<vmem>>, vector<1x128x128xf32>
    %46 = vector.shape_cast %45 : vector<1x128x128xf32> to vector<128x128xf32>
    %cst_32 = arith.constant dense<0.000000e+00> : vector<256x128xf32>
    %47 = tpu.matmul %44, %46, %cst_32 {dimension_numbers = #tpu.dot_dimension_numbers<[1], [0], [0], [1], [0, 0, 1, 1], [], []>} : vector<256x128xf32>, vector<128x128xf32>, vector<256x128xf32> -> vector<256x128xf32>
    %c0_33 = arith.constant 0 : index
    %c0_34 = arith.constant 0 : index
    %48 = vector.load %arg8[%c0_33, %c0_34] : memref<256x128xf32, #tpu.memory_space<vmem>>, vector<256x128xf32>
    %49 = arith.addf %48, %47 : vector<256x128xf32>
    %c0_35 = arith.constant 0 : index
    %c0_36 = arith.constant 0 : index
    %50 = vector.load %arg8[%c0_35, %c0_36] : memref<256x128xf32, #tpu.memory_space<vmem>>, vector<256x128xf32>
    tpu.vector_store %arg8[%c0_35, %c0_36], %49 {strides = array<i32>} : memref<256x128xf32, #tpu.memory_space<vmem>>, vector<256x128xf32>,
    %c23 = arith.constant 23 : index
    %c0_37 = arith.constant 0 : index
    %51 = vector.load %arg7[%c23, %c0_37] : memref<304x128xf32, #tpu.memory_space<vmem>>, vector<256x128xf32>
    %cst_38 = arith.constant 0.000000e+00 : f32
    %52 = vector.broadcast %cst_38 : f32 to vector<256x128xf32>
    %53 = arith.select %18, %51, %52 : vector<256x128xi1>, vector<256x128xf32>
    %c3 = arith.constant 3 : index
    %c0_39 = arith.constant 0 : index
    %c0_40 = arith.constant 0 : index
    %54 = vector.load %arg3[%c3, %c0_39, %c0_40] : memref<9x128x128xf32, #tpu.memory_space<vmem>>, vector<1x128x128xf32>
    %55 = vector.shape_cast %54 : vector<1x128x128xf32> to vector<128x128xf32>
    %cst_41 = arith.constant dense<0.000000e+00> : vector<256x128xf32>
    %56 = tpu.matmul %53, %55, %cst_41 {dimension_numbers = #tpu.dot_dimension_numbers<[1], [0], [0], [1], [0, 0, 1, 1], [], []>} : vector<256x128xf32>, vector<128x128xf32>, vector<256x128xf32> -> vector<256x128xf32>
    %c0_42 = arith.constant 0 : index
    %c0_43 = arith.constant 0 : index
    %57 = vector.load %arg8[%c0_42, %c0_43] : memref<256x128xf32, #tpu.memory_space<vmem>>, vector<256x128xf32>
    %58 = arith.addf %57, %56 : vector<256x128xf32>
    %c0_44 = arith.constant 0 : index
    %c0_45 = arith.constant 0 : index
    %59 = vector.load %arg8[%c0_44, %c0_45] : memref<256x128xf32, #tpu.memory_space<vmem>>, vector<256x128xf32>
    tpu.vector_store %arg8[%c0_44, %c0_45], %58 {strides = array<i32>} : memref<256x128xf32, #tpu.memory_space<vmem>>, vector<256x128xf32>,
    %c24_46 = arith.constant 24 : index
    %c0_47 = arith.constant 0 : index
    %60 = vector.load %arg7[%c24_46, %c0_47] : memref<304x128xf32, #tpu.memory_space<vmem>>, vector<256x128xf32>
    %c4 = arith.constant 4 : index
    %c0_48 = arith.constant 0 : index
    %c0_49 = arith.constant 0 : index
    %61 = vector.load %arg3[%c4, %c0_48, %c0_49] : memref<9x128x128xf32, #tpu.memory_space<vmem>>, vector<1x128x128xf32>
    %62 = vector.shape_cast %61 : vector<1x128x128xf32> to vector<128x128xf32>
    %cst_50 = arith.constant dense<0.000000e+00> : vector<256x128xf32>
    %63 = tpu.matmul %60, %62, %cst_50 {dimension_numbers = #tpu.dot_dimension_numbers<[1], [0], [0], [1], [0, 0, 1, 1], [], []>} : vector<256x128xf32>, vector<128x128xf32>, vector<256x128xf32> -> vector<256x128xf32>
    %c0_51 = arith.constant 0 : index
    %c0_52 = arith.constant 0 : index
    %64 = vector.load %arg8[%c0_51, %c0_52] : memref<256x128xf32, #tpu.memory_space<vmem>>, vector<256x128xf32>
    %65 = arith.addf %64, %63 : vector<256x128xf32>
    %c0_53 = arith.constant 0 : index
    %c0_54 = arith.constant 0 : index
    %66 = vector.load %arg8[%c0_53, %c0_54] : memref<256x128xf32, #tpu.memory_space<vmem>>, vector<256x128xf32>
    tpu.vector_store %arg8[%c0_53, %c0_54], %65 {strides = array<i32>} : memref<256x128xf32, #tpu.memory_space<vmem>>, vector<256x128xf32>,
    %c25 = arith.constant 25 : index
    %c0_55 = arith.constant 0 : index
    %67 = vector.load %arg7[%c25, %c0_55] : memref<304x128xf32, #tpu.memory_space<vmem>>, vector<256x128xf32>
    %cst_56 = arith.constant 0.000000e+00 : f32
    %68 = vector.broadcast %cst_56 : f32 to vector<256x128xf32>
    %69 = arith.select %20, %67, %68 : vector<256x128xi1>, vector<256x128xf32>
    %c5 = arith.constant 5 : index
    %c0_57 = arith.constant 0 : index
    %c0_58 = arith.constant 0 : index
    %70 = vector.load %arg3[%c5, %c0_57, %c0_58] : memref<9x128x128xf32, #tpu.memory_space<vmem>>, vector<1x128x128xf32>
    %71 = vector.shape_cast %70 : vector<1x128x128xf32> to vector<128x128xf32>
    %cst_59 = arith.constant dense<0.000000e+00> : vector<256x128xf32>
    %72 = tpu.matmul %69, %71, %cst_59 {dimension_numbers = #tpu.dot_dimension_numbers<[1], [0], [0], [1], [0, 0, 1, 1], [], []>} : vector<256x128xf32>, vector<128x128xf32>, vector<256x128xf32> -> vector<256x128xf32>
    %c0_60 = arith.constant 0 : index
    %c0_61 = arith.constant 0 : index
    %73 = vector.load %arg8[%c0_60, %c0_61] : memref<256x128xf32, #tpu.memory_space<vmem>>, vector<256x128xf32>
    %74 = arith.addf %73, %72 : vector<256x128xf32>
    %c0_62 = arith.constant 0 : index
    %c0_63 = arith.constant 0 : index
    %75 = vector.load %arg8[%c0_62, %c0_63] : memref<256x128xf32, #tpu.memory_space<vmem>>, vector<256x128xf32>
    tpu.vector_store %arg8[%c0_62, %c0_63], %74 {strides = array<i32>} : memref<256x128xf32, #tpu.memory_space<vmem>>, vector<256x128xf32>,
    %c39 = arith.constant 39 : index
    %c0_64 = arith.constant 0 : index
    %76 = vector.load %arg7[%c39, %c0_64] : memref<304x128xf32, #tpu.memory_space<vmem>>, vector<256x128xf32>
    %cst_65 = arith.constant 0.000000e+00 : f32
    %77 = vector.broadcast %cst_65 : f32 to vector<256x128xf32>
    %78 = arith.select %18, %76, %77 : vector<256x128xi1>, vector<256x128xf32>
    %c6 = arith.constant 6 : index
    %c0_66 = arith.constant 0 : index
    %c0_67 = arith.constant 0 : index
    %79 = vector.load %arg3[%c6, %c0_66, %c0_67] : memref<9x128x128xf32, #tpu.memory_space<vmem>>, vector<1x128x128xf32>
    %80 = vector.shape_cast %79 : vector<1x128x128xf32> to vector<128x128xf32>
    %cst_68 = arith.constant dense<0.000000e+00> : vector<256x128xf32>
    %81 = tpu.matmul %78, %80, %cst_68 {dimension_numbers = #tpu.dot_dimension_numbers<[1], [0], [0], [1], [0, 0, 1, 1], [], []>} : vector<256x128xf32>, vector<128x128xf32>, vector<256x128xf32> -> vector<256x128xf32>
    %c0_69 = arith.constant 0 : index
    %c0_70 = arith.constant 0 : index
    %82 = vector.load %arg8[%c0_69, %c0_70] : memref<256x128xf32, #tpu.memory_space<vmem>>, vector<256x128xf32>
    %83 = arith.addf %82, %81 : vector<256x128xf32>
    %c0_71 = arith.constant 0 : index
    %c0_72 = arith.constant 0 : index
    %84 = vector.load %arg8[%c0_71, %c0_72] : memref<256x128xf32, #tpu.memory_space<vmem>>, vector<256x128xf32>
    tpu.vector_store %arg8[%c0_71, %c0_72], %83 {strides = array<i32>} : memref<256x128xf32, #tpu.memory_space<vmem>>, vector<256x128xf32>,
    %c40 = arith.constant 40 : index
    %c0_73 = arith.constant 0 : index
    %85 = vector.load %arg7[%c40, %c0_73] : memref<304x128xf32, #tpu.memory_space<vmem>>, vector<256x128xf32>
    %c7_74 = arith.constant 7 : index
    %c0_75 = arith.constant 0 : index
    %c0_76 = arith.constant 0 : index
    %86 = vector.load %arg3[%c7_74, %c0_75, %c0_76] : memref<9x128x128xf32, #tpu.memory_space<vmem>>, vector<1x128x128xf32>
    %87 = vector.shape_cast %86 : vector<1x128x128xf32> to vector<128x128xf32>
    %cst_77 = arith.constant dense<0.000000e+00> : vector<256x128xf32>
    %88 = tpu.matmul %85, %87, %cst_77 {dimension_numbers = #tpu.dot_dimension_numbers<[1], [0], [0], [1], [0, 0, 1, 1], [], []>} : vector<256x128xf32>, vector<128x128xf32>, vector<256x128xf32> -> vector<256x128xf32>
    %c0_78 = arith.constant 0 : index
    %c0_79 = arith.constant 0 : index
    %89 = vector.load %arg8[%c0_78, %c0_79] : memref<256x128xf32, #tpu.memory_space<vmem>>, vector<256x128xf32>
    %90 = arith.addf %89, %88 : vector<256x128xf32>
    %c0_80 = arith.constant 0 : index
    %c0_81 = arith.constant 0 : index
    %91 = vector.load %arg8[%c0_80, %c0_81] : memref<256x128xf32, #tpu.memory_space<vmem>>, vector<256x128xf32>
    tpu.vector_store %arg8[%c0_80, %c0_81], %90 {strides = array<i32>} : memref<256x128xf32, #tpu.memory_space<vmem>>, vector<256x128xf32>,
    %c41 = arith.constant 41 : index
    %c0_82 = arith.constant 0 : index
    %92 = vector.load %arg7[%c41, %c0_82] : memref<304x128xf32, #tpu.memory_space<vmem>>, vector<256x128xf32>
    %cst_83 = arith.constant 0.000000e+00 : f32
    %93 = vector.broadcast %cst_83 : f32 to vector<256x128xf32>
    %94 = arith.select %20, %92, %93 : vector<256x128xi1>, vector<256x128xf32>
    %c8_84 = arith.constant 8 : index
    %c0_85 = arith.constant 0 : index
    %c0_86 = arith.constant 0 : index
    %95 = vector.load %arg3[%c8_84, %c0_85, %c0_86] : memref<9x128x128xf32, #tpu.memory_space<vmem>>, vector<1x128x128xf32>
    %96 = vector.shape_cast %95 : vector<1x128x128xf32> to vector<128x128xf32>
    %cst_87 = arith.constant dense<0.000000e+00> : vector<256x128xf32>
    %97 = tpu.matmul %94, %96, %cst_87 {dimension_numbers = #tpu.dot_dimension_numbers<[1], [0], [0], [1], [0, 0, 1, 1], [], []>} : vector<256x128xf32>, vector<128x128xf32>, vector<256x128xf32> -> vector<256x128xf32>
    %c0_88 = arith.constant 0 : index
    %c0_89 = arith.constant 0 : index
    %98 = vector.load %arg8[%c0_88, %c0_89] : memref<256x128xf32, #tpu.memory_space<vmem>>, vector<256x128xf32>
    %99 = arith.addf %98, %97 : vector<256x128xf32>
    %c0_90 = arith.constant 0 : index
    %c0_91 = arith.constant 0 : index
    %100 = vector.load %arg8[%c0_90, %c0_91] : memref<256x128xf32, #tpu.memory_space<vmem>>, vector<256x128xf32>
    tpu.vector_store %arg8[%c0_90, %c0_91], %99 {strides = array<i32>} : memref<256x128xf32, #tpu.memory_space<vmem>>, vector<256x128xf32>,
    %c0_92 = arith.constant 0 : index
    %c0_93 = arith.constant 0 : index
    %101 = vector.load %arg8[%c0_92, %c0_93] : memref<256x128xf32, #tpu.memory_space<vmem>>, vector<256x128xf32>
    %c0_94 = arith.constant 0 : index
    %c0_95 = arith.constant 0 : index
    %c0_96 = arith.constant 0 : index
    %102 = vector.load %arg4[%c0_94, %c0_95, %c0_96] : memref<1x1x128xf32, #tpu.memory_space<vmem>>, vector<1x1x128xf32>
    %103 = vector.shape_cast %102 : vector<1x1x128xf32> to vector<1x128xf32>
    %104 = vector.broadcast %103 : vector<1x128xf32> to vector<256x128xf32>
    %105 = arith.mulf %101, %104 : vector<256x128xf32>
    %c0_97 = arith.constant 0 : index
    %c0_98 = arith.constant 0 : index
    %c0_99 = arith.constant 0 : index
    %106 = vector.load %arg5[%c0_97, %c0_98, %c0_99] : memref<1x1x128xf32, #tpu.memory_space<vmem>>, vector<1x1x128xf32>
    %107 = vector.shape_cast %106 : vector<1x1x128xf32> to vector<1x128xf32>
    %108 = vector.broadcast %107 : vector<1x128xf32> to vector<256x128xf32>
    %109 = arith.addf %105, %108 : vector<256x128xf32>
    %cst_100 = arith.constant 0.000000e+00 : f32
    %110 = vector.broadcast %cst_100 : f32 to vector<256x128xf32>
    %111 = arith.maximumf %109, %110 : vector<256x128xf32>
    %c0_101 = arith.constant 0 : index
    %c0_102 = arith.constant 0 : index
    %c0_103 = arith.constant 0 : index
    %c0_104 = arith.constant 0 : index
    %112 = vector.load %arg6[%c0_101, %c0_102, %c0_103, %c0_104] : memref<1x1x256x128xf32, #tpu.memory_space<vmem>>, vector<1x1x256x128xf32>
    %113 = vector.shape_cast %112 : vector<1x1x256x128xf32> to vector<256x128xf32>
    %114 = vector.shape_cast %111 : vector<256x128xf32> to vector<1x1x256x128xf32>
    tpu.vector_store %arg6[%c0_101, %c0_102, %c0_103, %c0_104], %114 {strides = array<i32>} : memref<1x1x256x128xf32, #tpu.memory_space<vmem>>, vector<1x1x256x128xf32>,
    return
  }
  func.func @transform_0(%arg0: i32, %arg1: i32) -> (i32, i32, i32, i32) {
    %c0_i32 = arith.constant 0 : i32
    %c0_i32_0 = arith.constant 0 : i32
    %c0_i32_1 = arith.constant 0 : i32
    return %arg0, %arg1, %c0_i32, %c0_i32_0 : i32, i32, i32, i32
  }
  func.func @transform_1(%arg0: i32, %arg1: i32) -> (i32, i32, i32) {
    %c0_i32 = arith.constant 0 : i32
    %c0_i32_0 = arith.constant 0 : i32
    %c0_i32_1 = arith.constant 0 : i32
    %c0_i32_2 = arith.constant 0 : i32
    return %c0_i32, %c0_i32_0, %c0_i32_1 : i32, i32, i32
  }
  func.func @transform_2(%arg0: i32, %arg1: i32) -> (i32, i32, i32) {
    %c0_i32 = arith.constant 0 : i32
    %c0_i32_0 = arith.constant 0 : i32
    %c0_i32_1 = arith.constant 0 : i32
    return %arg0, %c0_i32, %c0_i32_0 : i32, i32, i32
  }
  func.func @transform_3(%arg0: i32, %arg1: i32) -> (i32, i32, i32) {
    %c0_i32 = arith.constant 0 : i32
    %c0_i32_0 = arith.constant 0 : i32
    %c0_i32_1 = arith.constant 0 : i32
    return %arg0, %c0_i32, %c0_i32_0 : i32, i32, i32
  }
  func.func @transform_4(%arg0: i32, %arg1: i32) -> (i32, i32, i32, i32) {
    %c0_i32 = arith.constant 0 : i32
    %c0_i32_0 = arith.constant 0 : i32
    %c0_i32_1 = arith.constant 0 : i32
    return %arg0, %arg1, %c0_i32, %c0_i32_0 : i32, i32, i32, i32
  }
}

</mosaic_0001>

<llo_original>
// kernel: tpu_custom_call.1
$region0: #{tpu_custom_call.1}
  #allocation0 [shape = 'u32[]', space=smem, size = 0x4, offset = 0x4, fixed_abs, tag = 'smem constant byte address 0x4 - core index']
  #allocation1 [shape = 'u32[144,128]{1,0:T(1,128)}', space=vmem, size = 0x12000, scoped, tag = 'internal scratch']
  #allocation2 [shape = 'f32[304,128]{1,0:T(8,128)}', space=vmem, size = 0x26000, scoped, tag = 'scratch operand']
  #allocation3 [shape = 'f32[256,128]{1,0:T(8,128)}', space=vmem, size = 0x20000, scoped, tag = 'scratch operand']
  %s0 = inlined_call_operand.hbm [shape: f32[2,2,256,128], index: 0, kind: input, shape index: {}]
  %s1 = inlined_call_operand.hbm [shape: f32[9,128,128], index: 1, kind: input, shape index: {}]
  %s2 = inlined_call_operand.vmem [shape: f32[2,1,128], index: 2, kind: input, shape index: {}]
  %s3 = inlined_call_operand.vmem [shape: f32[2,1,128], index: 3, kind: input, shape index: {}]
  %s4 = inlined_call_operand.hbm [shape: f32[2,2,256,128], index: 4, kind: output, shape index: {}]
  %s5 = sld [smem:[#allocation0]]
  $region57: #{tpu_custom_call.1} parent=0
    _
  %s7 = ssub.s32 1, %s5
  %s8 = scalar_select 0, %s7, %s5
  $region1: #{tpu_custom_call.1} parent=0
    #allocation4 [shape = 'u8[262144]{0}', space=vmem, size = 0x40000, scoped, tag = 'input window, operand 0']
    #allocation5 [shape = 's32[2]{0}', space=sflag, size = 0x8, scoped, tag = 'scoped memory for tpu_custom_call.1']
    #allocation6 [shape = 's32[2]{0}', space=sflag, size = 0x8, scoped, tag = 'scoped memory for tpu_custom_call.1']
    #allocation7 [shape = 'u8[589824]{0}', space=vmem, size = 0x90000, scoped, tag = 'input window, operand 1, single buffered']
    #allocation8 [shape = 's32[1]{0}', space=sflag, size = 0x4, scoped, tag = 'scoped memory for tpu_custom_call.1']
    #allocation9 [shape = 'u8[262144]{0}', space=vmem, size = 0x40000, scoped, tag = 'output window, operand 0']
    %9 = vsyncpa [#allocation5], 0
    %s10 = scalar_lea.sflag [#allocation5], 1
    %11 = vsyncpa %s10, 0
    %12 = vsyncpa [#allocation8], 0
    %13 = vsyncpa [#allocation6], 0
    %s14 = scalar_lea.sflag [#allocation6], 1
    %15 = vsyncpa %s14, 0
    loop: start=0, step=1, limit=6
    $region2: #{tpu_custom_call.1} parent=1 // loop_pre_header
      _
    $region3: #{tpu_custom_call.1} parent=1 // loop_header
      %s17 = sphi 0, %s21
      %p18 = scmp.ge.s32.totalorder %s17, 6
      %s24 = sphi 0, %s36
      %s25 = sphi 0, %s32
      %s26 = sphi 0, %s24
      %s27 = sphi 0, %s25
      %s28 = sphi 0, %s26
      %s29 = sphi 0, %s27
      %s41 = sphi 0, %s43
      %s44 = sphi 0, %s41
      %s45 = sphi 0, %s44
      %s61 = sphi 0, %s45
      %s65 = sphi 0, %s65
      %s67 = sphi 0, %s65
      %s68 = sphi 0, %s67
      %s82 = sphi 0, %s68
      %s88 = sphi 0, %s90
      %s91 = sphi 0, %s88
      %s92 = sphi 0, %s91
      %s108 = sphi 0, %s92
      %s114 = sphi 0, %s116
      %s117 = sphi 0, %s114
      %s118 = sphi 0, %s117
      %s134 = sphi 0, %s118
      %s142 = sphi 0, %s144
      %s145 = sphi 0, %s142
      %s146 = sphi 0, %s145
      %s162 = sphi 0, %s146
    $region4: #{tpu_custom_call.1} parent=1 // loop_header_branch
      %20 = sbr.rel (%p18) target = $region8
    $region5: #{tpu_custom_call.1} parent=1 // loop_body
      %s22 = ssub.s32 %s17, 1
      %s23 = ssub.s32 %s17, 2
      %s30 = sadd.s32 1, %s25
      %p31 = scmp.ge.s32.totalorder %s30, 2
      %s32 = scalar_select %p31, 0, %s30
      %s33 = sadd.s32 1, %s24
      %s34 = scalar_select %p31, %s33, %s24
      %p35 = scmp.ge.s32.totalorder %s34, 2
      %s36 = scalar_select %p35, 0, %s34
      %s37 = ssub.s32 %s24, %s36
      %s38 = ssub.s32 %s25, %s32
      %s39 = sor.u32 %s37, %s38
      %p40 = scmp.eq.s32.totalorder %s39, 0
      %s42 = sadd.s32 %s41, 1
      %s43 = scalar_select %p40, %s41, %s42
      %p46 = pneg %p40
      %p47 = scmp.eq.s32.totalorder %s17, 3
      %p48 = por %p46, %p47
      %p49 = scmp.ne.s32.totalorder %s41, %s44
      %p50 = scmp.eq.s32.totalorder %s17, 0
      %p51 = por %p49, %p50
      %p52 = scmp.ne.s32.totalorder %s41, %s44
      %p53 = scmp.eq.s32.totalorder %s22, 3
      %p54 = por %p52, %p53
      %p55 = scmp.ne.s32.totalorder %s44, %s45
      %p56 = scmp.eq.s32.totalorder %s22, 0
      %p57 = por %p55, %p56
      %p58 = scmp.ne.s32.totalorder %s44, %s45
      %p59 = scmp.eq.s32.totalorder %s23, 3
      %p60 = por %p58, %p59
      %p62 = scmp.ne.s32.totalorder %s45, %s61
      %p63 = scmp.eq.s32.totalorder %s23, 0
      %p64 = por %p62, %p63
      %s66 = sadd.s32 %s65, 1
      %p69 = scmp.eq.s32.totalorder %s17, 3
      %p70 = scmp.ne.s32.totalorder %s65, %s67
      %p71 = scmp.eq.s32.totalorder %s17, 0
      %p72 = por %p70, %p71
      %p73 = scmp.ne.s32.totalorder %s65, %s67
      %p74 = scmp.eq.s32.totalorder %s22, 3
      %p75 = por %p73, %p74
      %p76 = scmp.ne.s32.totalorder %s67, %s68
      %p77 = scmp.eq.s32.totalorder %s22, 0
      %p78 = por %p76, %p77
      %p79 = scmp.ne.s32.totalorder %s67, %s68
      %p80 = scmp.eq.s32.totalorder %s23, 3
      %p81 = por %p79, %p80
      %p83 = scmp.ne.s32.totalorder %s68, %s82
      %p84 = scmp.eq.s32.totalorder %s23, 0
      %p85 = por %p83, %p84
      %s86 = ssub.s32 %s24, %s36
      %p87 = scmp.eq.s32.totalorder %s86, 0
      %s89 = sadd.s32 %s88, 1
      %s90 = scalar_select %p87, %s88, %s89
      %p93 = pneg %p87
      %p94 = scmp.eq.s32.totalorder %s17, 3
      %p95 = por %p93, %p94
      %p96 = scmp.ne.s32.totalorder %s88, %s91
      %p97 = scmp.eq.s32.totalorder %s17, 0
      %p98 = por %p96, %p97
      %p99 = scmp.ne.s32.totalorder %s88, %s91
      %p100 = scmp.eq.s32.totalorder %s22, 3
      %p101 = por %p99, %p100
      %p102 = scmp.ne.s32.totalorder %s91, %s92
      %p103 = scmp.eq.s32.totalorder %s22, 0
      %p104 = por %p102, %p103
      %p105 = scmp.ne.s32.totalorder %s91, %s92
      %p106 = scmp.eq.s32.totalorder %s23, 3
      %p107 = por %p105, %p106
      %p109 = scmp.ne.s32.totalorder %s92, %s108
      %p110 = scmp.eq.s32.totalorder %s23, 0
      %p111 = por %p109, %p110
      %s112 = ssub.s32 %s24, %s36
      %p113 = scmp.eq.s32.totalorder %s112, 0
      %s115 = sadd.s32 %s114, 1
      %s116 = scalar_select %p113, %s114, %s115
      %p119 = pneg %p113
      %p120 = scmp.eq.s32.totalorder %s17, 3
      %p121 = por %p119, %p120
      %p122 = scmp.ne.s32.totalorder %s114, %s117
      %p123 = scmp.eq.s32.totalorder %s17, 0
      %p124 = por %p122, %p123
      %p125 = scmp.ne.s32.totalorder %s114, %s117
      %p126 = scmp.eq.s32.totalorder %s22, 3
      %p127 = por %p125, %p126
      %p128 = scmp.ne.s32.totalorder %s117, %s118
      %p129 = scmp.eq.s32.totalorder %s22, 0
      %p130 = por %p128, %p129
      %p131 = scmp.ne.s32.totalorder %s117, %s118
      %p132 = scmp.eq.s32.totalorder %s23, 3
      %p133 = por %p131, %p132
      %p135 = scmp.ne.s32.totalorder %s118, %s134
      %p136 = scmp.eq.s32.totalorder %s23, 0
      %p137 = por %p135, %p136
      %s138 = ssub.s32 %s24, %s36
      %s139 = ssub.s32 %s25, %s32
      %s140 = sor.u32 %s138, %s139
      %p141 = scmp.eq.s32.totalorder %s140, 0
      %s143 = sadd.s32 %s142, 1
      %s144 = scalar_select %p141, %s142, %s143
      %p147 = pneg %p141
      %p148 = scmp.eq.s32.totalorder %s17, 3
      %p149 = por %p147, %p148
      %p150 = scmp.ne.s32.totalorder %s142, %s145
      %p151 = scmp.eq.s32.totalorder %s17, 0
      %p152 = por %p150, %p151
      %p153 = scmp.ne.s32.totalorder %s142, %s145
      %p154 = scmp.eq.s32.totalorder %s22, 3
      %p155 = por %p153, %p154
      %p156 = scmp.ne.s32.totalorder %s145, %s146
      %p157 = scmp.eq.s32.totalorder %s22, 0
      %p158 = por %p156, %p157
      %p159 = scmp.ne.s32.totalorder %s145, %s146
      %p160 = scmp.eq.s32.totalorder %s23, 3
      %p161 = por %p159, %p160
      %p163 = scmp.ne.s32.totalorder %s146, %s162
      %p164 = scmp.eq.s32.totalorder %s23, 0
      %p165 = por %p163, %p164
      %p166 = scmp.le.s32.totalorder 1, %s17
      %p167 = scmp.lt.s32.totalorder %s17, 5
      %p168 = pnand %p166, %p167
      %p169 = pneg %p168
      // Predicated region
      $region9: #{tpu_custom_call.1} parent=5 // pred_check
        _
      $region10: #{tpu_custom_call.1} parent=5 // pred_check_branch
        %171 = sbr.rel (%p168) target = $region12
      $region11: #{tpu_custom_call.1} parent=5 // pred_region
        %s172 = ssub.s32 %s17, 1
        // Predicated region
        $region13: #{tpu_custom_call.1} parent=11 // pred_check
          %p173 = pneg %p78
        $region14: #{tpu_custom_call.1} parent=11 // pred_check_branch
          %175 = sbr.rel (%p173) target = $region16
        $region15: #{tpu_custom_call.1} parent=11 // pred_region
          %s177 = ssub.s32 18432, 18432
          %178 = vsyncadd [#allocation8], %s177
          %s179 = sshll.u32 [#allocation7], 4
          %s180 = int_to_ptr.vmem [resolvable:$true] %s179
          %185 = dma.hbm_to_vmem [thread:$0]  %s1, 18432, %s180, [#allocation8], 128, 128, 8
        $region16: #{tpu_custom_call.1} parent=11 // pred_fallthru
          _
      $region12: #{tpu_custom_call.1} parent=5 // pred_fallthru
        _
      %p186 = scmp.lt.s32.totalorder %s17, 4
      // Predicated region
      $region17: #{tpu_custom_call.1} parent=5 // pred_check
        %p187 = pneg %p186
      $region18: #{tpu_custom_call.1} parent=5 // pred_check_branch
        %189 = sbr.rel (%p187) target = $region20
      $region19: #{tpu_custom_call.1} parent=5 // pred_region
        // Predicated region
        $region21: #{tpu_custom_call.1} parent=19 // pred_check
          %p190 = pneg %p51
        $region22: #{tpu_custom_call.1} parent=19 // pred_check_branch
          %192 = sbr.rel (%p190) target = $region24
        $region23: #{tpu_custom_call.1} parent=19 // pred_region
          %s193 = sand.u32 %s41, 1
          %s194 = scalar_lea.sflag [#allocation5], %s193
          %s195 = sand.u32 %s41, 1
          %s196 = smul.addr %s195, 256
          %s197 = scalar_lea.vmem [#allocation4], %s196
          %s199 = ssub.s32 4096, 4096
          %200 = vsyncadd %s194, %s199
          %s201 = smul.addr %s25, 32
          %s202 = smul.addr %s24, 64
          %s203 = sadd.s32 %s201, %s202
          %s204 = smul.addr %s203, 128
          %s205 = scalar_lea.hbm %s0, %s204
          %s206 = sshll.u32 %s197, 4
          %s207 = int_to_ptr.vmem [resolvable:$true] %s206
          %212 = dma.hbm_to_vmem [thread:$0]  %s205, 4096, %s207, %s194, 128, 128, 8
        $region24: #{tpu_custom_call.1} parent=19 // pred_fallthru
          _
        // Predicated region
        $region25: #{tpu_custom_call.1} parent=19 // pred_check
          %p213 = pneg %p98
        $region26: #{tpu_custom_call.1} parent=19 // pred_check_branch
          %215 = sbr.rel (%p213) target = $region28
        $region27: #{tpu_custom_call.1} parent=19 // pred_region
          %p216 = scmp.lt.s32.totalorder %s24, 1
          %s217 = scalar_select %p216, %s24, 1
          %s218 = scalar_lea.vmem %s2, %s217
        $region28: #{tpu_custom_call.1} parent=19 // pred_fallthru
          _
        // Predicated region
        $region29: #{tpu_custom_call.1} parent=19 // pred_check
          %p219 = pneg %p124
        $region30: #{tpu_custom_call.1} parent=19 // pred_check_branch
          %221 = sbr.rel (%p219) target = $region32
        $region31: #{tpu_custom_call.1} parent=19 // pred_region
          %p222 = scmp.lt.s32.totalorder %s24, 1
          %s223 = scalar_select %p222, %s24, 1
          %s224 = scalar_lea.vmem %s3, %s223
        $region32: #{tpu_custom_call.1} parent=19 // pred_fallthru
          _
      $region20: #{tpu_custom_call.1} parent=5 // pred_fallthru
        _
      %p225 = scmp.le.s32.totalorder 1, %s17
      %p226 = scmp.lt.s32.totalorder %s17, 5
      %p227 = pnand %p225, %p226
      %p228 = pneg %p227
      // Predicated region
      $region33: #{tpu_custom_call.1} parent=5 // pred_check
        _
      $region34: #{tpu_custom_call.1} parent=5 // pred_check_branch
        %230 = sbr.rel (%p227) target = $region36
      $region35: #{tpu_custom_call.1} parent=5 // pred_region
        %s231 = ssub.s32 %s17, 1
        %s232 = sand.u32 %s44, 1
        %s233 = scalar_lea.sflag [#allocation5], %s232
        %s234 = sand.u32 %s44, 1
        %s235 = smul.addr %s234, 256
        %s236 = scalar_lea.vmem [#allocation4], %s235
        // Predicated region
        $region37: #{tpu_custom_call.1} parent=35 // pred_check
          %p237 = pneg %p57
        $region38: #{tpu_custom_call.1} parent=35 // pred_check_branch
          %239 = sbr.rel (%p237) target = $region40
        $region39: #{tpu_custom_call.1} parent=35 // pred_region
          %240 = dma.done %s233, 4096
        $region40: #{tpu_custom_call.1} parent=35 // pred_fallthru
          _
        // Predicated region
        $region41: #{tpu_custom_call.1} parent=35 // pred_check
          %p241 = pneg %p78
        $region42: #{tpu_custom_call.1} parent=35 // pred_check_branch
          %243 = sbr.rel (%p241) target = $region44
        $region43: #{tpu_custom_call.1} parent=35 // pred_region
          %244 = dma.done [#allocation8], 18432
        $region44: #{tpu_custom_call.1} parent=35 // pred_fallthru
          _
        %s245 = sand.u32 %s44, 1
        %s246 = scalar_lea.sflag [#allocation5], %s245
        %s247 = sand.u32 %s44, 1
        %s248 = smul.addr %s247, 256
        %s249 = scalar_lea.vmem [#allocation4], %s248
        %p250 = pneg %p57
        %p251 = pneg %p54
        %p252 = pneg %p78
        %p253 = pneg %p75
        %p254 = scmp.lt.s32.totalorder %s26, 1
        %s255 = scalar_select %p254, %s26, 1
        %s256 = scalar_lea.vmem %s2, %s255
        %p257 = pneg %p104
        %p258 = pneg %p101
        %p259 = scmp.lt.s32.totalorder %s26, 1
        %s260 = scalar_select %p259, %s26, 1
        %s261 = scalar_lea.vmem %s3, %s260
        %p262 = pneg %p130
        %p263 = pneg %p127
        %p264 = pneg %p158
        %p265 = pneg %p155
        %s266 = sand.u32 %s145, 1
        %s267 = scalar_lea.sflag [#allocation6], %s266
        %s268 = sand.u32 %s145, 1
        %s269 = smul.addr %s268, 256
        %s270 = scalar_lea.vmem [#allocation9], %s269
        %p271 = scmp.lt.s32.totalorder %s26, 1
        %s272 = scalar_select %p271, %s26, 1
        %s273 = scalar_lea.vmem %s2, %s272
        %p274 = scmp.lt.s32.totalorder %s26, 1
        %s275 = scalar_select %p274, %s26, 1
        %s276 = scalar_lea.vmem %s3, %s275
        %v277 = vlaneseq
        %v278 = vshrl.u32 %v277, 7
        %v279 = vadd.s32 %v278, 8
        %v280 = vadd.s32 %v278, 16
        %v281 = vadd.s32 %v278, 24
        %v282 = vadd.s32 %v278, 32
        %v283 = vadd.s32 %v278, 40
        %v284 = vadd.s32 %v278, 48
        %v285 = vadd.s32 %v278, 56
        %v286 = vadd.s32 %v278, 64
        %v287 = vadd.s32 %v278, 72
        %v288 = vadd.s32 %v278, 80
        %v289 = vadd.s32 %v278, 88
        %v290 = vadd.s32 %v278, 96
        %v291 = vadd.s32 %v278, 104
        %v292 = vadd.s32 %v278, 112
        %v293 = vadd.s32 %v278, 120
        %v294 = vadd.s32 %v278, 128
        %v295 = vadd.s32 %v278, 136
        %v296 = vadd.s32 %v278, 144
        %v297 = vadd.s32 %v278, 152
        %v298 = vadd.s32 %v278, 160
        %v299 = vadd.s32 %v278, 168
        %v300 = vadd.s32 %v278, 176
        %v301 = vadd.s32 %v278, 184
        %v302 = vadd.s32 %v278, 192
        %v303 = vadd.s32 %v278, 200
        %v304 = vadd.s32 %v278, 208
        %v305 = vadd.s32 %v278, 216
        %v306 = vadd.s32 %v278, 224
        %v307 = vadd.s32 %v278, 232
        %v308 = vadd.s32 %v278, 240
        %v309 = vadd.s32 %v278, 248
        %vm310 = vcmp.lt.s32.totalorder %v278, 0
        %v311 = vsub.s32 0, %v278
        %v312 = vsel %vm310, %v311, %v278
        %v313 = vshrl.u32 %v312, 4
        %v314 = vand.u32 %v312, 15
        %v315 = vsub.s32 0, %v314
        %v316 = vsel %vm310, %v315, %v314
        %vm317 = vcmp.lt.s32.totalorder %v279, 0
        %v318 = vsub.s32 0, %v279
        %v319 = vsel %vm317, %v318, %v279
        %v320 = vshrl.u32 %v319, 4
        %v321 = vand.u32 %v319, 15
        %v322 = vsub.s32 0, %v321
        %v323 = vsel %vm317, %v322, %v321
        %vm324 = vcmp.lt.s32.totalorder %v280, 0
        %v325 = vsub.s32 0, %v280
        %v326 = vsel %vm324, %v325, %v280
        %v327 = vshrl.u32 %v326, 4
        %v328 = vand.u32 %v326, 15
        %v329 = vsub.s32 0, %v328
        %v330 = vsel %vm324, %v329, %v328
        %vm331 = vcmp.lt.s32.totalorder %v281, 0
        %v332 = vsub.s32 0, %v281
        %v333 = vsel %vm331, %v332, %v281
        %v334 = vshrl.u32 %v333, 4
        %v335 = vand.u32 %v333, 15
        %v336 = vsub.s32 0, %v335
        %v337 = vsel %vm331, %v336, %v335
        %vm338 = vcmp.lt.s32.totalorder %v282, 0
        %v339 = vsub.s32 0, %v282
        %v340 = vsel %vm338, %v339, %v282
        %v341 = vshrl.u32 %v340, 4
        %v342 = vand.u32 %v340, 15
        %v343 = vsub.s32 0, %v342
        %v344 = vsel %vm338, %v343, %v342
        %vm345 = vcmp.lt.s32.totalorder %v283, 0
        %v346 = vsub.s32 0, %v283
        %v347 = vsel %vm345, %v346, %v283
        %v348 = vshrl.u32 %v347, 4
        %v349 = vand.u32 %v347, 15
        %v350 = vsub.s32 0, %v349
        %v351 = vsel %vm345, %v350, %v349
        %vm352 = vcmp.lt.s32.totalorder %v284, 0
        %v353 = vsub.s32 0, %v284
        %v354 = vsel %vm352, %v353, %v284
        %v355 = vshrl.u32 %v354, 4
        %v356 = vand.u32 %v354, 15
        %v357 = vsub.s32 0, %v356
        %v358 = vsel %vm352, %v357, %v356
        %vm359 = vcmp.lt.s32.totalorder %v285, 0
        %v360 = vsub.s32 0, %v285
        %v361 = vsel %vm359, %v360, %v285
        %v362 = vshrl.u32 %v361, 4
        %v363 = vand.u32 %v361, 15
        %v364 = vsub.s32 0, %v363
        %v365 = vsel %vm359, %v364, %v363
        %vm366 = vcmp.lt.s32.totalorder %v286, 0
        %v367 = vsub.s32 0, %v286
        %v368 = vsel %vm366, %v367, %v286
        %v369 = vshrl.u32 %v368, 4
        %v370 = vand.u32 %v368, 15
        %v371 = vsub.s32 0, %v370
        %v372 = vsel %vm366, %v371, %v370
        %vm373 = vcmp.lt.s32.totalorder %v287, 0
        %v374 = vsub.s32 0, %v287
        %v375 = vsel %vm373, %v374, %v287
        %v376 = vshrl.u32 %v375, 4
        %v377 = vand.u32 %v375, 15
        %v378 = vsub.s32 0, %v377
        %v379 = vsel %vm373, %v378, %v377
        %vm380 = vcmp.lt.s32.totalorder %v288, 0
        %v381 = vsub.s32 0, %v288
        %v382 = vsel %vm380, %v381, %v288
        %v383 = vshrl.u32 %v382, 4
        %v384 = vand.u32 %v382, 15
        %v385 = vsub.s32 0, %v384
        %v386 = vsel %vm380, %v385, %v384
        %vm387 = vcmp.lt.s32.totalorder %v289, 0
        %v388 = vsub.s32 0, %v289
        %v389 = vsel %vm387, %v388, %v289
        %v390 = vshrl.u32 %v389, 4
        %v391 = vand.u32 %v389, 15
        %v392 = vsub.s32 0, %v391
        %v393 = vsel %vm387, %v392, %v391
        %vm394 = vcmp.lt.s32.totalorder %v290, 0
        %v395 = vsub.s32 0, %v290
        %v396 = vsel %vm394, %v395, %v290
        %v397 = vshrl.u32 %v396, 4
        %v398 = vand.u32 %v396, 15
        %v399 = vsub.s32 0, %v398
        %v400 = vsel %vm394, %v399, %v398
        %vm401 = vcmp.lt.s32.totalorder %v291, 0
        %v402 = vsub.s32 0, %v291
        %v403 = vsel %vm401, %v402, %v291
        %v404 = vshrl.u32 %v403, 4
        %v405 = vand.u32 %v403, 15
        %v406 = vsub.s32 0, %v405
        %v407 = vsel %vm401, %v406, %v405
        %vm408 = vcmp.lt.s32.totalorder %v292, 0
        %v409 = vsub.s32 0, %v292
        %v410 = vsel %vm408, %v409, %v292
        %v411 = vshrl.u32 %v410, 4
        %v412 = vand.u32 %v410, 15
        %v413 = vsub.s32 0, %v412
        %v414 = vsel %vm408, %v413, %v412
        %vm415 = vcmp.lt.s32.totalorder %v293, 0
        %v416 = vsub.s32 0, %v293
        %v417 = vsel %vm415, %v416, %v293
        %v418 = vshrl.u32 %v417, 4
        %v419 = vand.u32 %v417, 15
        %v420 = vsub.s32 0, %v419
        %v421 = vsel %vm415, %v420, %v419
        %vm422 = vcmp.lt.s32.totalorder %v294, 0
        %v423 = vsub.s32 0, %v294
        %v424 = vsel %vm422, %v423, %v294
        %v425 = vshrl.u32 %v424, 4
        %v426 = vand.u32 %v424, 15
        %v427 = vsub.s32 0, %v426
        %v428 = vsel %vm422, %v427, %v426
        %vm429 = vcmp.lt.s32.totalorder %v295, 0
        %v430 = vsub.s32 0, %v295
        %v431 = vsel %vm429, %v430, %v295
        %v432 = vshrl.u32 %v431, 4
        %v433 = vand.u32 %v431, 15
        %v434 = vsub.s32 0, %v433
        %v435 = vsel %vm429, %v434, %v433
        %vm436 = vcmp.lt.s32.totalorder %v296, 0
        %v437 = vsub.s32 0, %v296
        %v438 = vsel %vm436, %v437, %v296
        %v439 = vshrl.u32 %v438, 4
        %v440 = vand.u32 %v438, 15
        %v441 = vsub.s32 0, %v440
        %v442 = vsel %vm436, %v441, %v440
        %vm443 = vcmp.lt.s32.totalorder %v297, 0
        %v444 = vsub.s32 0, %v297
        %v445 = vsel %vm443, %v444, %v297
        %v446 = vshrl.u32 %v445, 4
        %v447 = vand.u32 %v445, 15
        %v448 = vsub.s32 0, %v447
        %v449 = vsel %vm443, %v448, %v447
        %vm450 = vcmp.lt.s32.totalorder %v298, 0
        %v451 = vsub.s32 0, %v298
        %v452 = vsel %vm450, %v451, %v298
        %v453 = vshrl.u32 %v452, 4
        %v454 = vand.u32 %v452, 15
        %v455 = vsub.s32 0, %v454
        %v456 = vsel %vm450, %v455, %v454
        %vm457 = vcmp.lt.s32.totalorder %v299, 0
        %v458 = vsub.s32 0, %v299
        %v459 = vsel %vm457, %v458, %v299
        %v460 = vshrl.u32 %v459, 4
        %v461 = vand.u32 %v459, 15
        %v462 = vsub.s32 0, %v461
        %v463 = vsel %vm457, %v462, %v461
        %vm464 = vcmp.lt.s32.totalorder %v300, 0
        %v465 = vsub.s32 0, %v300
        %v466 = vsel %vm464, %v465, %v300
        %v467 = vshrl.u32 %v466, 4
        %v468 = vand.u32 %v466, 15
        %v469 = vsub.s32 0, %v468
        %v470 = vsel %vm464, %v469, %v468
        %vm471 = vcmp.lt.s32.totalorder %v301, 0
        %v472 = vsub.s32 0, %v301
        %v473 = vsel %vm471, %v472, %v301
        %v474 = vshrl.u32 %v473, 4
        %v475 = vand.u32 %v473, 15
        %v476 = vsub.s32 0, %v475
        %v477 = vsel %vm471, %v476, %v475
        %vm478 = vcmp.lt.s32.totalorder %v302, 0
        %v479 = vsub.s32 0, %v302
        %v480 = vsel %vm478, %v479, %v302
        %v481 = vshrl.u32 %v480, 4
        %v482 = vand.u32 %v480, 15
        %v483 = vsub.s32 0, %v482
        %v484 = vsel %vm478, %v483, %v482
        %vm485 = vcmp.lt.s32.totalorder %v303, 0
        %v486 = vsub.s32 0, %v303
        %v487 = vsel %vm485, %v486, %v303
        %v488 = vshrl.u32 %v487, 4
        %v489 = vand.u32 %v487, 15
        %v490 = vsub.s32 0, %v489
        %v491 = vsel %vm485, %v490, %v489
        %vm492 = vcmp.lt.s32.totalorder %v304, 0
        %v493 = vsub.s32 0, %v304
        %v494 = vsel %vm492, %v493, %v304
        %v495 = vshrl.u32 %v494, 4
        %v496 = vand.u32 %v494, 15
        %v497 = vsub.s32 0, %v496
        %v498 = vsel %vm492, %v497, %v496
        %vm499 = vcmp.lt.s32.totalorder %v305, 0
        %v500 = vsub.s32 0, %v305
        %v501 = vsel %vm499, %v500, %v305
        %v502 = vshrl.u32 %v501, 4
        %v503 = vand.u32 %v501, 15
        %v504 = vsub.s32 0, %v503
        %v505 = vsel %vm499, %v504, %v503
        %vm506 = vcmp.lt.s32.totalorder %v306, 0
        %v507 = vsub.s32 0, %v306
        %v508 = vsel %vm506, %v507, %v306
        %v509 = vshrl.u32 %v508, 4
        %v510 = vand.u32 %v508, 15
        %v511 = vsub.s32 0, %v510
        %v512 = vsel %vm506, %v511, %v510
        %vm513 = vcmp.lt.s32.totalorder %v307, 0
        %v514 = vsub.s32 0, %v307
        %v515 = vsel %vm513, %v514, %v307
        %v516 = vshrl.u32 %v515, 4
        %v517 = vand.u32 %v515, 15
        %v518 = vsub.s32 0, %v517
        %v519 = vsel %vm513, %v518, %v517
        %vm520 = vcmp.lt.s32.totalorder %v308, 0
        %v521 = vsub.s32 0, %v308
        %v522 = vsel %vm520, %v521, %v308
        %v523 = vshrl.u32 %v522, 4
        %v524 = vand.u32 %v522, 15
        %v525 = vsub.s32 0, %v524
        %v526 = vsel %vm520, %v525, %v524
        %vm527 = vcmp.lt.s32.totalorder %v309, 0
        %v528 = vsub.s32 0, %v309
        %v529 = vsel %vm527, %v528, %v309
        %v530 = vshrl.u32 %v529, 4
        %v531 = vand.u32 %v529, 15
        %v532 = vsub.s32 0, %v531
        %v533 = vsel %vm527, %v532, %v531
        %vm534 = vcmp.ne.s32.totalorder %v316, 0
        %vm535 = vcmp.ne.s32.totalorder %v323, 0
        %vm536 = vcmp.ne.s32.totalorder %v330, 0
        %vm537 = vcmp.ne.s32.totalorder %v337, 0
        %vm538 = vcmp.ne.s32.totalorder %v344, 0
        %vm539 = vcmp.ne.s32.totalorder %v351, 0
        %vm540 = vcmp.ne.s32.totalorder %v358, 0
        %vm541 = vcmp.ne.s32.totalorder %v365, 0
        %vm542 = vcmp.ne.s32.totalorder %v372, 0
        %vm543 = vcmp.ne.s32.totalorder %v379, 0
        %vm544 = vcmp.ne.s32.totalorder %v386, 0
        %vm545 = vcmp.ne.s32.totalorder %v393, 0
        %vm546 = vcmp.ne.s32.totalorder %v400, 0
        %vm547 = vcmp.ne.s32.totalorder %v407, 0
        %vm548 = vcmp.ne.s32.totalorder %v414, 0
        %vm549 = vcmp.ne.s32.totalorder %v421, 0
        %vm550 = vcmp.ne.s32.totalorder %v428, 0
        %vm551 = vcmp.ne.s32.totalorder %v435, 0
        %vm552 = vcmp.ne.s32.totalorder %v442, 0
        %vm553 = vcmp.ne.s32.totalorder %v449, 0
        %vm554 = vcmp.ne.s32.totalorder %v456, 0
        %vm555 = vcmp.ne.s32.totalorder %v463, 0
        %vm556 = vcmp.ne.s32.totalorder %v470, 0
        %vm557 = vcmp.ne.s32.totalorder %v477, 0
        %vm558 = vcmp.ne.s32.totalorder %v484, 0
        %vm559 = vcmp.ne.s32.totalorder %v491, 0
        %vm560 = vcmp.ne.s32.totalorder %v498, 0
        %vm561 = vcmp.ne.s32.totalorder %v505, 0
        %vm562 = vcmp.ne.s32.totalorder %v512, 0
        %vm563 = vcmp.ne.s32.totalorder %v519, 0
        %vm564 = vcmp.ne.s32.totalorder %v526, 0
        %vm565 = vcmp.ne.s32.totalorder %v533, 0
        %vm566 = vcmp.lt.s32.totalorder %v316, 0
        %vm567 = vcmp.lt.s32.totalorder %v323, 0
        %vm568 = vcmp.lt.s32.totalorder %v330, 0
        %vm569 = vcmp.lt.s32.totalorder %v337, 0
        %vm570 = vcmp.lt.s32.totalorder %v344, 0
        %vm571 = vcmp.lt.s32.totalorder %v351, 0
        %vm572 = vcmp.lt.s32.totalorder %v358, 0
        %vm573 = vcmp.lt.s32.totalorder %v365, 0
        %vm574 = vcmp.lt.s32.totalorder %v372, 0
        %vm575 = vcmp.lt.s32.totalorder %v379, 0
        %vm576 = vcmp.lt.s32.totalorder %v386, 0
        %vm577 = vcmp.lt.s32.totalorder %v393, 0
        %vm578 = vcmp.lt.s32.totalorder %v400, 0
        %vm579 = vcmp.lt.s32.totalorder %v407, 0
        %vm580 = vcmp.lt.s32.totalorder %v414, 0
        %vm581 = vcmp.lt.s32.totalorder %v421, 0
        %vm582 = vcmp.lt.s32.totalorder %v428, 0
        %vm583 = vcmp.lt.s32.totalorder %v435, 0
        %vm584 = vcmp.lt.s32.totalorder %v442, 0
        %vm585 = vcmp.lt.s32.totalorder %v449, 0
        %vm586 = vcmp.lt.s32.totalorder %v456, 0
        %vm587 = vcmp.lt.s32.totalorder %v463, 0
        %vm588 = vcmp.lt.s32.totalorder %v470, 0
        %vm589 = vcmp.lt.s32.totalorder %v477, 0
        %vm590 = vcmp.lt.s32.totalorder %v484, 0
        %vm591 = vcmp.lt.s32.totalorder %v491, 0
        %vm592 = vcmp.lt.s32.totalorder %v498, 0
        %vm593 = vcmp.lt.s32.totalorder %v505, 0
        %vm594 = vcmp.lt.s32.totalorder %v512, 0
        %vm595 = vcmp.lt.s32.totalorder %v519, 0
        %vm596 = vcmp.lt.s32.totalorder %v526, 0
        %vm597 = vcmp.lt.s32.totalorder %v533, 0
        %vm598 = vmand %vm566, %vm534
        %vm599 = vmand %vm567, %vm535
        %vm600 = vmand %vm568, %vm536
        %vm601 = vmand %vm569, %vm537
        %vm602 = vmand %vm570, %vm538
        %vm603 = vmand %vm571, %vm539
        %vm604 = vmand %vm572, %vm540
        %vm605 = vmand %vm573, %vm541
        %vm606 = vmand %vm574, %vm542
        %vm607 = vmand %vm575, %vm543
        %vm608 = vmand %vm576, %vm544
        %vm609 = vmand %vm577, %vm545
        %vm610 = vmand %vm578, %vm546
        %vm611 = vmand %vm579, %vm547
        %vm612 = vmand %vm580, %vm548
        %vm613 = vmand %vm581, %vm549
        %vm614 = vmand %vm582, %vm550
        %vm615 = vmand %vm583, %vm551
        %vm616 = vmand %vm584, %vm552
        %vm617 = vmand %vm585, %vm553
        %vm618 = vmand %vm586, %vm554
        %vm619 = vmand %vm587, %vm555
        %vm620 = vmand %vm588, %vm556
        %vm621 = vmand %vm589, %vm557
        %vm622 = vmand %vm590, %vm558
        %vm623 = vmand %vm591, %vm559
        %vm624 = vmand %vm592, %vm560
        %vm625 = vmand %vm593, %vm561
        %vm626 = vmand %vm594, %vm562
        %vm627 = vmand %vm595, %vm563
        %vm628 = vmand %vm596, %vm564
        %vm629 = vmand %vm597, %vm565
        %v630 = vadd.s32 %v316, 16
        %v631 = vadd.s32 %v323, 16
        %v632 = vadd.s32 %v330, 16
        %v633 = vadd.s32 %v337, 16
        %v634 = vadd.s32 %v344, 16
        %v635 = vadd.s32 %v351, 16
        %v636 = vadd.s32 %v358, 16
        %v637 = vadd.s32 %v365, 16
        %v638 = vadd.s32 %v372, 16
        %v639 = vadd.s32 %v379, 16
        %v640 = vadd.s32 %v386, 16
        %v641 = vadd.s32 %v393, 16
        %v642 = vadd.s32 %v400, 16
        %v643 = vadd.s32 %v407, 16
        %v644 = vadd.s32 %v414, 16
        %v645 = vadd.s32 %v421, 16
        %v646 = vadd.s32 %v428, 16
        %v647 = vadd.s32 %v435, 16
        %v648 = vadd.s32 %v442, 16
        %v649 = vadd.s32 %v449, 16
        %v650 = vadd.s32 %v456, 16
        %v651 = vadd.s32 %v463, 16
        %v652 = vadd.s32 %v470, 16
        %v653 = vadd.s32 %v477, 16
        %v654 = vadd.s32 %v484, 16
        %v655 = vadd.s32 %v491, 16
        %v656 = vadd.s32 %v498, 16
        %v657 = vadd.s32 %v505, 16
        %v658 = vadd.s32 %v512, 16
        %v659 = vadd.s32 %v519, 16
        %v660 = vadd.s32 %v526, 16
        %v661 = vadd.s32 %v533, 16
        %v662 = vsel %vm598, %v630, %v316
        %v663 = vsel %vm599, %v631, %v323
        %v664 = vsel %vm600, %v632, %v330
        %v665 = vsel %vm601, %v633, %v337
        %v666 = vsel %vm602, %v634, %v344
        %v667 = vsel %vm603, %v635, %v351
        %v668 = vsel %vm604, %v636, %v358
        %v669 = vsel %vm605, %v637, %v365
        %v670 = vsel %vm606, %v638, %v372
        %v671 = vsel %vm607, %v639, %v379
        %v672 = vsel %vm608, %v640, %v386
        %v673 = vsel %vm609, %v641, %v393
        %v674 = vsel %vm610, %v642, %v400
        %v675 = vsel %vm611, %v643, %v407
        %v676 = vsel %vm612, %v644, %v414
        %v677 = vsel %vm613, %v645, %v421
        %v678 = vsel %vm614, %v646, %v428
        %v679 = vsel %vm615, %v647, %v435
        %v680 = vsel %vm616, %v648, %v442
        %v681 = vsel %vm617, %v649, %v449
        %v682 = vsel %vm618, %v650, %v456
        %v683 = vsel %vm619, %v651, %v463
        %v684 = vsel %vm620, %v652, %v470
        %v685 = vsel %vm621, %v653, %v477
        %v686 = vsel %vm622, %v654, %v484
        %v687 = vsel %vm623, %v655, %v491
        %v688 = vsel %vm624, %v656, %v498
        %v689 = vsel %vm625, %v657, %v505
        %v690 = vsel %vm626, %v658, %v512
        %v691 = vsel %vm627, %v659, %v519
        %v692 = vsel %vm628, %v660, %v526
        %v693 = vsel %vm629, %v661, %v533
        %vm694 = vcmp.ne.s32.totalorder %v662, 0
        %vm695 = vcmp.ne.s32.totalorder %v663, 0
        %vm696 = vcmp.ne.s32.totalorder %v664, 0
        %vm697 = vcmp.ne.s32.totalorder %v665, 0
        %vm698 = vcmp.ne.s32.totalorder %v666, 0
        %vm699 = vcmp.ne.s32.totalorder %v667, 0
        %vm700 = vcmp.ne.s32.totalorder %v668, 0
        %vm701 = vcmp.ne.s32.totalorder %v669, 0
        %vm702 = vcmp.ne.s32.totalorder %v670, 0
        %vm703 = vcmp.ne.s32.totalorder %v671, 0
        %vm704 = vcmp.ne.s32.totalorder %v672, 0
        %vm705 = vcmp.ne.s32.totalorder %v673, 0
        %vm706 = vcmp.ne.s32.totalorder %v674, 0
        %vm707 = vcmp.ne.s32.totalorder %v675, 0
        %vm708 = vcmp.ne.s32.totalorder %v676, 0
        %vm709 = vcmp.ne.s32.totalorder %v677, 0
        %vm710 = vcmp.ne.s32.totalorder %v678, 0
        %vm711 = vcmp.ne.s32.totalorder %v679, 0
        %vm712 = vcmp.ne.s32.totalorder %v680, 0
        %vm713 = vcmp.ne.s32.totalorder %v681, 0
        %vm714 = vcmp.ne.s32.totalorder %v682, 0
        %vm715 = vcmp.ne.s32.totalorder %v683, 0
        %vm716 = vcmp.ne.s32.totalorder %v684, 0
        %vm717 = vcmp.ne.s32.totalorder %v685, 0
        %vm718 = vcmp.ne.s32.totalorder %v686, 0
        %vm719 = vcmp.ne.s32.totalorder %v687, 0
        %vm720 = vcmp.ne.s32.totalorder %v688, 0
        %vm721 = vcmp.ne.s32.totalorder %v689, 0
        %vm722 = vcmp.ne.s32.totalorder %v690, 0
        %vm723 = vcmp.ne.s32.totalorder %v691, 0
        %vm724 = vcmp.ne.s32.totalorder %v692, 0
        %vm725 = vcmp.ne.s32.totalorder %v693, 0
        %vm726 = vcmp.ne.s32.totalorder %v662, 15
        %vm727 = vcmp.ne.s32.totalorder %v663, 15
        %vm728 = vcmp.ne.s32.totalorder %v664, 15
        %vm729 = vcmp.ne.s32.totalorder %v665, 15
        %vm730 = vcmp.ne.s32.totalorder %v666, 15
        %vm731 = vcmp.ne.s32.totalorder %v667, 15
        %vm732 = vcmp.ne.s32.totalorder %v668, 15
        %vm733 = vcmp.ne.s32.totalorder %v669, 15
        %vm734 = vcmp.ne.s32.totalorder %v670, 15
        %vm735 = vcmp.ne.s32.totalorder %v671, 15
        %vm736 = vcmp.ne.s32.totalorder %v672, 15
        %vm737 = vcmp.ne.s32.totalorder %v673, 15
        %vm738 = vcmp.ne.s32.totalorder %v674, 15
        %vm739 = vcmp.ne.s32.totalorder %v675, 15
        %vm740 = vcmp.ne.s32.totalorder %v676, 15
        %vm741 = vcmp.ne.s32.totalorder %v677, 15
        %vm742 = vcmp.ne.s32.totalorder %v678, 15
        %vm743 = vcmp.ne.s32.totalorder %v679, 15
        %vm744 = vcmp.ne.s32.totalorder %v680, 15
        %vm745 = vcmp.ne.s32.totalorder %v681, 15
        %vm746 = vcmp.ne.s32.totalorder %v682, 15
        %vm747 = vcmp.ne.s32.totalorder %v683, 15
        %vm748 = vcmp.ne.s32.totalorder %v684, 15
        %vm749 = vcmp.ne.s32.totalorder %v685, 15
        %vm750 = vcmp.ne.s32.totalorder %v686, 15
        %vm751 = vcmp.ne.s32.totalorder %v687, 15
        %vm752 = vcmp.ne.s32.totalorder %v688, 15
        %vm753 = vcmp.ne.s32.totalorder %v689, 15
        %vm754 = vcmp.ne.s32.totalorder %v690, 15
        %vm755 = vcmp.ne.s32.totalorder %v691, 15
        %vm756 = vcmp.ne.s32.totalorder %v692, 15
        %vm757 = vcmp.ne.s32.totalorder %v693, 15
        %v758 = vld [vmem:[%s236] sm:$0xff]
        %v759 = vld [vmem:[%s236 + $0x8] sm:$0xff]
        %v760 = vld [vmem:[%s236 + $0x10] sm:$0xff]
        %v761 = vld [vmem:[%s236 + $0x18] sm:$0xff]
        %v762 = vld [vmem:[%s236 + $0x20] sm:$0xff]
        %v763 = vld [vmem:[%s236 + $0x28] sm:$0xff]
        %v764 = vld [vmem:[%s236 + $0x30] sm:$0xff]
        %v765 = vld [vmem:[%s236 + $0x38] sm:$0xff]
        %v766 = vld [vmem:[%s236 + $0x40] sm:$0xff]
        %v767 = vld [vmem:[%s236 + $0x48] sm:$0xff]
        %v768 = vld [vmem:[%s236 + $0x50] sm:$0xff]
        %v769 = vld [vmem:[%s236 + $0x58] sm:$0xff]
        %v770 = vld [vmem:[%s236 + $0x60] sm:$0xff]
        %v771 = vld [vmem:[%s236 + $0x68] sm:$0xff]
        %v772 = vld [vmem:[%s236 + $0x70] sm:$0xff]
        %v773 = vld [vmem:[%s236 + $0x78] sm:$0xff]
        %v774 = vld [vmem:[%s236 + $0x80] sm:$0xff]
        %v775 = vld [vmem:[%s236 + $0x88] sm:$0xff]
        %v776 = vld [vmem:[%s236 + $0x90] sm:$0xff]
        %v777 = vld [vmem:[%s236 + $0x98] sm:$0xff]
        %v778 = vld [vmem:[%s236 + $0xa0] sm:$0xff]
        %v779 = vld [vmem:[%s236 + $0xa8] sm:$0xff]
        %v780 = vld [vmem:[%s236 + $0xb0] sm:$0xff]
        %v781 = vld [vmem:[%s236 + $0xb8] sm:$0xff]
        %v782 = vld [vmem:[%s236 + $0xc0] sm:$0xff]
        %v783 = vld [vmem:[%s236 + $0xc8] sm:$0xff]
        %v784 = vld [vmem:[%s236 + $0xd0] sm:$0xff]
        %v785 = vld [vmem:[%s236 + $0xd8] sm:$0xff]
        %v786 = vld [vmem:[%s236 + $0xe0] sm:$0xff]
        %v787 = vld [vmem:[%s236 + $0xe8] sm:$0xff]
        %v788 = vld [vmem:[%s236 + $0xf0] sm:$0xff]
        %v789 = vld [vmem:[%s236 + $0xf8] sm:$0xff]
        %790 = vst [vmem:[#allocation2] sm:$0xff] 0.0
        %791 = vst [vmem:[#allocation2 + $0x8] sm:$0xff] 0.0
        %792 = vst [vmem:[#allocation2 + $0x10] sm:$0xff] 0.0
        %793 = vst [vmem:[#allocation2 + $0x118] sm:$0xff] 0.0
        %794 = vst [vmem:[#allocation2 + $0x120] sm:$0xff] 0.0
        %795 = vst [vmem:[#allocation2 + $0x128] sm:$0xff] 0.0
        %796 = vst [vmem:[#allocation2 + $0x18] sm:$0xff] %v758
        %797 = vst [vmem:[#allocation2 + $0x20] sm:$0xff] %v759
        %798 = vst [vmem:[#allocation2 + $0x28] sm:$0xff] %v760
        %799 = vst [vmem:[#allocation2 + $0x30] sm:$0xff] %v761
        %800 = vst [vmem:[#allocation2 + $0x38] sm:$0xff] %v762
        %801 = vst [vmem:[#allocation2 + $0x40] sm:$0xff] %v763
        %802 = vst [vmem:[#allocation2 + $0x48] sm:$0xff] %v764
        %803 = vst [vmem:[#allocation2 + $0x50] sm:$0xff] %v765
        %804 = vst [vmem:[#allocation2 + $0x58] sm:$0xff] %v766
        %805 = vst [vmem:[#allocation2 + $0x60] sm:$0xff] %v767
        %806 = vst [vmem:[#allocation2 + $0x68] sm:$0xff] %v768
        %807 = vst [vmem:[#allocation2 + $0x70] sm:$0xff] %v769
        %808 = vst [vmem:[#allocation2 + $0x78] sm:$0xff] %v770
        %809 = vst [vmem:[#allocation2 + $0x80] sm:$0xff] %v771
        %810 = vst [vmem:[#allocation2 + $0x88] sm:$0xff] %v772
        %811 = vst [vmem:[#allocation2 + $0x90] sm:$0xff] %v773
        %812 = vst [vmem:[#allocation2 + $0x98] sm:$0xff] %v774
        %813 = vst [vmem:[#allocation2 + $0xa0] sm:$0xff] %v775
        %814 = vst [vmem:[#allocation2 + $0xa8] sm:$0xff] %v776
        %815 = vst [vmem:[#allocation2 + $0xb0] sm:$0xff] %v777
        %816 = vst [vmem:[#allocation2 + $0xb8] sm:$0xff] %v778
        %817 = vst [vmem:[#allocation2 + $0xc0] sm:$0xff] %v779
        %818 = vst [vmem:[#allocation2 + $0xc8] sm:$0xff] %v780
        %819 = vst [vmem:[#allocation2 + $0xd0] sm:$0xff] %v781
        %820 = vst [vmem:[#allocation2 + $0xd8] sm:$0xff] %v782
        %821 = vst [vmem:[#allocation2 + $0xe0] sm:$0xff] %v783
        %822 = vst [vmem:[#allocation2 + $0xe8] sm:$0xff] %v784
        %823 = vst [vmem:[#allocation2 + $0xf0] sm:$0xff] %v785
        %824 = vst [vmem:[#allocation2 + $0xf8] sm:$0xff] %v786
        %825 = vst [vmem:[#allocation2 + $0x100] sm:$0xff] %v787
        %826 = vst [vmem:[#allocation2 + $0x108] sm:$0xff] %v788
        %827 = vst [vmem:[#allocation2 + $0x110] sm:$0xff] %v789
        %v828 = vld [vmem:[#allocation2 + $0x7] sm:$0xff]
        %v829 = vld [vmem:[#allocation2 + $0xf] sm:$0xff]
        %v830 = vld [vmem:[#allocation2 + $0x17] sm:$0xff]
        %v831 = vld [vmem:[#allocation2 + $0x1f] sm:$0xff]
        %v832 = vld [vmem:[#allocation2 + $0x27] sm:$0xff]
        %v833 = vld [vmem:[#allocation2 + $0x2f] sm:$0xff]
        %v834 = vld [vmem:[#allocation2 + $0x37] sm:$0xff]
        %v835 = vld [vmem:[#allocation2 + $0x3f] sm:$0xff]
        %v836 = vld [vmem:[#allocation2 + $0x47] sm:$0xff]
        %v837 = vld [vmem:[#allocation2 + $0x4f] sm:$0xff]
        %v838 = vld [vmem:[#allocation2 + $0x57] sm:$0xff]
        %v839 = vld [vmem:[#allocation2 + $0x5f] sm:$0xff]
        %v840 = vld [vmem:[#allocation2 + $0x67] sm:$0xff]
        %v841 = vld [vmem:[#allocation2 + $0x6f] sm:$0xff]
        %v842 = vld [vmem:[#allocation2 + $0x77] sm:$0xff]
        %v843 = vld [vmem:[#allocation2 + $0x7f] sm:$0xff]
        %v844 = vld [vmem:[#allocation2 + $0x87] sm:$0xff]
        %v845 = vld [vmem:[#allocation2 + $0x8f] sm:$0xff]
        %v846 = vld [vmem:[#allocation2 + $0x97] sm:$0xff]
        %v847 = vld [vmem:[#allocation2 + $0x9f] sm:$0xff]
        %v848 = vld [vmem:[#allocation2 + $0xa7] sm:$0xff]
        %v849 = vld [vmem:[#allocation2 + $0xaf] sm:$0xff]
        %v850 = vld [vmem:[#allocation2 + $0xb7] sm:$0xff]
        %v851 = vld [vmem:[#allocation2 + $0xbf] sm:$0xff]
        %v852 = vld [vmem:[#allocation2 + $0xc7] sm:$0xff]
        %v853 = vld [vmem:[#allocation2 + $0xcf] sm:$0xff]
        %v854 = vld [vmem:[#allocation2 + $0xd7] sm:$0xff]
        %v855 = vld [vmem:[#allocation2 + $0xdf] sm:$0xff]
        %v856 = vld [vmem:[#allocation2 + $0xe7] sm:$0xff]
        %v857 = vld [vmem:[#allocation2 + $0xef] sm:$0xff]
        %v858 = vld [vmem:[#allocation2 + $0xf7] sm:$0xff]
        %v859 = vld [vmem:[#allocation2 + $0xff] sm:$0xff]
        %v860 = vsel %vm694, %v828, 0.0
        %v861 = vsel %vm695, %v829, 0.0
        %v862 = vsel %vm696, %v830, 0.0
        %v863 = vsel %vm697, %v831, 0.0
        %v864 = vsel %vm698, %v832, 0.0
        %v865 = vsel %vm699, %v833, 0.0
        %v866 = vsel %vm700, %v834, 0.0
        %v867 = vsel %vm701, %v835, 0.0
        %v868 = vsel %vm702, %v836, 0.0
        %v869 = vsel %vm703, %v837, 0.0
        %v870 = vsel %vm704, %v838, 0.0
        %v871 = vsel %vm705, %v839, 0.0
        %v872 = vsel %vm706, %v840, 0.0
        %v873 = vsel %vm707, %v841, 0.0
        %v874 = vsel %vm708, %v842, 0.0
        %v875 = vsel %vm709, %v843, 0.0
        %v876 = vsel %vm710, %v844, 0.0
        %v877 = vsel %vm711, %v845, 0.0
        %v878 = vsel %vm712, %v846, 0.0
        %v879 = vsel %vm713, %v847, 0.0
        %v880 = vsel %vm714, %v848, 0.0
        %v881 = vsel %vm715, %v849, 0.0
        %v882 = vsel %vm716, %v850, 0.0
        %v883 = vsel %vm717, %v851, 0.0
        %v884 = vsel %vm718, %v852, 0.0
        %v885 = vsel %vm719, %v853, 0.0
        %v886 = vsel %vm720, %v854, 0.0
        %v887 = vsel %vm721, %v855, 0.0
        %v888 = vsel %vm722, %v856, 0.0
        %v889 = vsel %vm723, %v857, 0.0
        %v890 = vsel %vm724, %v858, 0.0
        %v891 = vsel %vm725, %v859, 0.0
        %v892 = vld [vmem:[#allocation7] sm:$0xff]
        %v893 = vld [vmem:[#allocation7 + $0x8] sm:$0xff]
        %v894 = vld [vmem:[#allocation7 + $0x10] sm:$0xff]
        %v895 = vld [vmem:[#allocation7 + $0x18] sm:$0xff]
        %v896 = vld [vmem:[#allocation7 + $0x20] sm:$0xff]
        %v897 = vld [vmem:[#allocation7 + $0x28] sm:$0xff]
        %v898 = vld [vmem:[#allocation7 + $0x30] sm:$0xff]
        %v899 = vld [vmem:[#allocation7 + $0x38] sm:$0xff]
        %v900 = vld [vmem:[#allocation7 + $0x40] sm:$0xff]
        %v901 = vld [vmem:[#allocation7 + $0x48] sm:$0xff]
        %v902 = vld [vmem:[#allocation7 + $0x50] sm:$0xff]
        %v903 = vld [vmem:[#allocation7 + $0x58] sm:$0xff]
        %v904 = vld [vmem:[#allocation7 + $0x60] sm:$0xff]
        %v905 = vld [vmem:[#allocation7 + $0x68] sm:$0xff]
        %v906 = vld [vmem:[#allocation7 + $0x70] sm:$0xff]
        %v907 = vld [vmem:[#allocation7 + $0x78] sm:$0xff]
        %908 = vmatprep.subr.mxu0 0.0
        %909 = vmatpush1.msra.mxu0 %v892
        %910 = vmatprep.subr.mxu0 0.0
        %911 = vmatpush1.msra.mxu0 %v893
        %912 = vmatprep.subr.mxu0 0.0
        %913 = vmatpush1.msra.mxu0 %v894
        %914 = vmatprep.subr.mxu0 0.0
        %915 = vmatpush1.msra.mxu0 %v895
        %916 = vmatprep.subr.mxu0 0.0
        %917 = vmatpush1.msra.mxu0 %v896
        %918 = vmatprep.subr.mxu0 0.0
        %919 = vmatpush1.msra.mxu0 %v897
        %920 = vmatprep.subr.mxu0 0.0
        %921 = vmatpush1.msra.mxu0 %v898
        %922 = vmatprep.subr.mxu0 0.0
        %923 = vmatpush1.msra.mxu0 %v899
        %924 = vmatprep.subr.mxu0 0.0
        %925 = vmatpush1.msra.mxu0 %v900
        %926 = vmatprep.subr.mxu0 0.0
        %927 = vmatpush1.msra.mxu0 %v901
        %928 = vmatprep.subr.mxu0 0.0
        %929 = vmatpush1.msra.mxu0 %v902
        %930 = vmatprep.subr.mxu0 0.0
        %931 = vmatpush1.msra.mxu0 %v903
        %932 = vmatprep.subr.mxu0 0.0
        %933 = vmatpush1.msra.mxu0 %v904
        %934 = vmatprep.subr.mxu0 0.0
        %935 = vmatpush1.msra.mxu0 %v905
        %936 = vmatprep.subr.mxu0 0.0
        %937 = vmatpush1.msra.mxu0 %v906
        %938 = vmatprep.subr.mxu0 0.0
        %939 = vmatpush1.msra.mxu0 %v907
        %940 = vmatprep.subr.mxu0 0.0
        %941 = vmatpush1.msra.mxu0 0.0
        %942 = vmatprep.subr.mxu0 0.0
        %943 = vmatpush1.msra.mxu0 0.0
        %944 = vmatprep.subr.mxu0 0.0
        %945 = vmatpush1.msra.mxu0 0.0
        %946 = vmatprep.subr.mxu0 0.0
        %947 = vmatpush1.msra.mxu0 0.0
        %948 = vmatprep.subr.mxu0 0.0
        %949 = vmatpush1.msra.mxu0 0.0
        %950 = vmatprep.subr.mxu0 0.0
        %951 = vmatpush1.msra.mxu0 0.0
        %952 = vmatprep.subr.mxu0 0.0
        %953 = vmatpush1.msra.mxu0 0.0
        %954 = vmatprep.subr.mxu0 0.0
        %955 = vmatpush1.msra.mxu0 0.0
        %956 = vmatprep.subr.mxu0 0.0
        %957 = vmatpush1.msra.mxu0 0.0
        %958 = vmatprep.subr.mxu0 0.0
        %959 = vmatpush1.msra.mxu0 0.0
        %960 = vmatprep.subr.mxu0 0.0
        %961 = vmatpush1.msra.mxu0 0.0
        %962 = vmatprep.subr.mxu0 0.0
        %963 = vmatpush1.msra.mxu0 0.0
        %964 = vmatprep.subr.mxu0 0.0
        %965 = vmatpush1.msra.mxu0 0.0
        %966 = vmatprep.subr.mxu0 0.0
        %967 = vmatpush1.msra.mxu0 0.0
        %968 = vmatprep.subr.mxu0 0.0
        %969 = vmatpush1.msra.mxu0 0.0
        %970 = vmatprep.subr.mxu0 0.0
        %971 = vmatpush1.msra.mxu0 0.0
        %972 = vmatprep.mubr.f32.mxu0 0.0
        %973 = vmatmul.mubr.f32.gmra.mrb[0].mxu0 %v860
        %v974 = vpop.f32.mrb[0].mxu0
        %v975 = vadd.f32 0.0, %v974
        %v976 = vpop.f32.mrb[0].mxu0
        %977 = vmatprep.mubr.f32.mxu0 0.0
        %978 = vmatmul.mubr.f32.gmra.mrb[0].mxu0 %v861
        %v979 = vpop.f32.mrb[0].mxu0
        %v980 = vadd.f32 0.0, %v979
        %v981 = vpop.f32.mrb[0].mxu0
        %982 = vmatprep.mubr.f32.mxu0 0.0
        %983 = vmatmul.mubr.f32.gmra.mrb[0].mxu0 %v862
        %v984 = vpop.f32.mrb[0].mxu0
        %v985 = vadd.f32 0.0, %v984
        %v986 = vpop.f32.mrb[0].mxu0
        %987 = vmatprep.mubr.f32.mxu0 0.0
        %988 = vmatmul.mubr.f32.gmra.mrb[0].mxu0 %v863
        %v989 = vpop.f32.mrb[0].mxu0
        %v990 = vadd.f32 0.0, %v989
        %v991 = vpop.f32.mrb[0].mxu0
        %992 = vmatprep.mubr.f32.mxu0 0.0
        %993 = vmatmul.mubr.f32.gmra.mrb[0].mxu0 %v864
        %v994 = vpop.f32.mrb[0].mxu0
        %v995 = vadd.f32 0.0, %v994
        %v996 = vpop.f32.mrb[0].mxu0
        %997 = vmatprep.mubr.f32.mxu0 0.0
        %998 = vmatmul.mubr.f32.gmra.mrb[0].mxu0 %v865
        %v999 = vpop.f32.mrb[0].mxu0
        %v1000 = vadd.f32 0.0, %v999
        %v1001 = vpop.f32.mrb[0].mxu0
        %1002 = vmatprep.mubr.f32.mxu0 0.0
        %1003 = vmatmul.mubr.f32.gmra.mrb[0].mxu0 %v866
        %v1004 = vpop.f32.mrb[0].mxu0
        %v1005 = vadd.f32 0.0, %v1004
        %v1006 = vpop.f32.mrb[0].mxu0
        %1007 = vmatprep.mubr.f32.mxu0 0.0
        %1008 = vmatmul.mubr.f32.gmra.mrb[0].mxu0 %v867
        %v1009 = vpop.f32.mrb[0].mxu0
        %v1010 = vadd.f32 0.0, %v1009
        %v1011 = vpop.f32.mrb[0].mxu0
        %1012 = vmatprep.mubr.f32.mxu0 0.0
        %1013 = vmatmul.mubr.f32.gmra.mrb[0].mxu0 %v868
        %v1014 = vpop.f32.mrb[0].mxu0
        %v1015 = vadd.f32 0.0, %v1014
        %v1016 = vpop.f32.mrb[0].mxu0
        %1017 = vmatprep.mubr.f32.mxu0 0.0
        %1018 = vmatmul.mubr.f32.gmra.mrb[0].mxu0 %v869
        %v1019 = vpop.f32.mrb[0].mxu0
        %v1020 = vadd.f32 0.0, %v1019
        %v1021 = vpop.f32.mrb[0].mxu0
        %1022 = vmatprep.mubr.f32.mxu0 0.0
        %1023 = vmatmul.mubr.f32.gmra.mrb[0].mxu0 %v870
        %v1024 = vpop.f32.mrb[0].mxu0
        %v1025 = vadd.f32 0.0, %v1024
        %v1026 = vpop.f32.mrb[0].mxu0
        %1027 = vmatprep.mubr.f32.mxu0 0.0
        %1028 = vmatmul.mubr.f32.gmra.mrb[0].mxu0 %v871
        %v1029 = vpop.f32.mrb[0].mxu0
        %v1030 = vadd.f32 0.0, %v1029
        %v1031 = vpop.f32.mrb[0].mxu0
        %1032 = vmatprep.mubr.f32.mxu0 0.0
        %1033 = vmatmul.mubr.f32.gmra.mrb[0].mxu0 %v872
        %v1034 = vpop.f32.mrb[0].mxu0
        %v1035 = vadd.f32 0.0, %v1034
        %v1036 = vpop.f32.mrb[0].mxu0
        %1037 = vmatprep.mubr.f32.mxu0 0.0
        %1038 = vmatmul.mubr.f32.gmra.mrb[0].mxu0 %v873
        %v1039 = vpop.f32.mrb[0].mxu0
        %v1040 = vadd.f32 0.0, %v1039
        %v1041 = vpop.f32.mrb[0].mxu0
        %1042 = vmatprep.mubr.f32.mxu0 0.0
        %1043 = vmatmul.mubr.f32.gmra.mrb[0].mxu0 %v874
        %v1044 = vpop.f32.mrb[0].mxu0
        %v1045 = vadd.f32 0.0, %v1044
        %v1046 = vpop.f32.mrb[0].mxu0
        %1047 = vmatprep.mubr.f32.mxu0 0.0
        %1048 = vmatmul.mubr.f32.gmra.mrb[0].mxu0 %v875
        %v1049 = vpop.f32.mrb[0].mxu0
        %v1050 = vadd.f32 0.0, %v1049
        %v1051 = vpop.f32.mrb[0].mxu0
        %1052 = vmatprep.mubr.f32.mxu0 0.0
        %1053 = vmatmul.mubr.f32.gmra.mrb[0].mxu0 %v876
        %v1054 = vpop.f32.mrb[0].mxu0
        %v1055 = vadd.f32 0.0, %v1054
        %v1056 = vpop.f32.mrb[0].mxu0
        %1057 = vmatprep.mubr.f32.mxu0 0.0
        %1058 = vmatmul.mubr.f32.gmra.mrb[0].mxu0 %v877
        %v1059 = vpop.f32.mrb[0].mxu0
        %v1060 = vadd.f32 0.0, %v1059
        %v1061 = vpop.f32.mrb[0].mxu0
        %1062 = vmatprep.mubr.f32.mxu0 0.0
        %1063 = vmatmul.mubr.f32.gmra.mrb[0].mxu0 %v878
        %v1064 = vpop.f32.mrb[0].mxu0
        %v1065 = vadd.f32 0.0, %v1064
        %v1066 = vpop.f32.mrb[0].mxu0
        %1067 = vmatprep.mubr.f32.mxu0 0.0
        %1068 = vmatmul.mubr.f32.gmra.mrb[0].mxu0 %v879
        %v1069 = vpop.f32.mrb[0].mxu0
        %v1070 = vadd.f32 0.0, %v1069
        %v1071 = vpop.f32.mrb[0].mxu0
        %1072 = vmatprep.mubr.f32.mxu0 0.0
        %1073 = vmatmul.mubr.f32.gmra.mrb[0].mxu0 %v880
        %v1074 = vpop.f32.mrb[0].mxu0
        %v1075 = vadd.f32 0.0, %v1074
        %v1076 = vpop.f32.mrb[0].mxu0
        %1077 = vmatprep.mubr.f32.mxu0 0.0
        %1078 = vmatmul.mubr.f32.gmra.mrb[0].mxu0 %v881
        %v1079 = vpop.f32.mrb[0].mxu0
        %v1080 = vadd.f32 0.0, %v1079
        %v1081 = vpop.f32.mrb[0].mxu0
        %1082 = vmatprep.mubr.f32.mxu0 0.0
        %1083 = vmatmul.mubr.f32.gmra.mrb[0].mxu0 %v882
        %v1084 = vpop.f32.mrb[0].mxu0
        %v1085 = vadd.f32 0.0, %v1084
        %v1086 = vpop.f32.mrb[0].mxu0
        %1087 = vmatprep.mubr.f32.mxu0 0.0
        %1088 = vmatmul.mubr.f32.gmra.mrb[0].mxu0 %v883
        %v1089 = vpop.f32.mrb[0].mxu0
        %v1090 = vadd.f32 0.0, %v1089
        %v1091 = vpop.f32.mrb[0].mxu0
        %1092 = vmatprep.mubr.f32.mxu0 0.0
        %1093 = vmatmul.mubr.f32.gmra.mrb[0].mxu0 %v884
        %v1094 = vpop.f32.mrb[0].mxu0
        %v1095 = vadd.f32 0.0, %v1094
        %v1096 = vpop.f32.mrb[0].mxu0
        %1097 = vmatprep.mubr.f32.mxu0 0.0
        %1098 = vmatmul.mubr.f32.gmra.mrb[0].mxu0 %v885
        %v1099 = vpop.f32.mrb[0].mxu0
        %v1100 = vadd.f32 0.0, %v1099
        %v1101 = vpop.f32.mrb[0].mxu0
        %1102 = vmatprep.mubr.f32.mxu0 0.0
        %1103 = vmatmul.mubr.f32.gmra.mrb[0].mxu0 %v886
        %v1104 = vpop.f32.mrb[0].mxu0
        %v1105 = vadd.f32 0.0, %v1104
        %v1106 = vpop.f32.mrb[0].mxu0
        %1107 = vmatprep.mubr.f32.mxu0 0.0
        %1108 = vmatmul.mubr.f32.gmra.mrb[0].mxu0 %v887
        %v1109 = vpop.f32.mrb[0].mxu0
        %v1110 = vadd.f32 0.0, %v1109
        %v1111 = vpop.f32.mrb[0].mxu0
        %1112 = vmatprep.mubr.f32.mxu0 0.0
        %1113 = vmatmul.mubr.f32.gmra.mrb[0].mxu0 %v888
        %v1114 = vpop.f32.mrb[0].mxu0
        %v1115 = vadd.f32 0.0, %v1114
        %v1116 = vpop.f32.mrb[0].mxu0
        %1117 = vmatprep.mubr.f32.mxu0 0.0
        %1118 = vmatmul.mubr.f32.gmra.mrb[0].mxu0 %v889
        %v1119 = vpop.f32.mrb[0].mxu0
        %v1120 = vadd.f32 0.0, %v1119
        %v1121 = vpop.f32.mrb[0].mxu0
        %1122 = vmatprep.mubr.f32.mxu0 0.0
        %1123 = vmatmul.mubr.f32.gmra.mrb[0].mxu0 %v890
        %v1124 = vpop.f32.mrb[0].mxu0
        %v1125 = vadd.f32 0.0, %v1124
        %v1126 = vpop.f32.mrb[0].mxu0
        %1127 = vmatprep.mubr.f32.mxu0 0.0
        %1128 = vmatmul.mubr.f32.gmra.mrb[0].mxu0 %v891
        %v1129 = vpop.f32.mrb[0].mxu0
        %v1130 = vadd.f32 0.0, %v1129
        %v1131 = vpop.f32.mrb[0].mxu0
        %1132 = vdwg.mxu0
        %1133 = vst [vmem:[#allocation3] sm:$0xff] %v975
        %1134 = vst [vmem:[#allocation3 + $0x8] sm:$0xff] %v980
        %1135 = vst [vmem:[#allocation3 + $0x10] sm:$0xff] %v985
        %1136 = vst [vmem:[#allocation3 + $0x18] sm:$0xff] %v990
        %1137 = vst [vmem:[#allocation3 + $0x20] sm:$0xff] %v995
        %1138 = vst [vmem:[#allocation3 + $0x28] sm:$0xff] %v1000
        %1139 = vst [vmem:[#allocation3 + $0x30] sm:$0xff] %v1005
        %1140 = vst [vmem:[#allocation3 + $0x38] sm:$0xff] %v1010
        %1141 = vst [vmem:[#allocation3 + $0x40] sm:$0xff] %v1015
        %1142 = vst [vmem:[#allocation3 + $0x48] sm:$0xff] %v1020
        %1143 = vst [vmem:[#allocation3 + $0x50] sm:$0xff] %v1025
        %1144 = vst [vmem:[#allocation3 + $0x58] sm:$0xff] %v1030
        %1145 = vst [vmem:[#allocation3 + $0x60] sm:$0xff] %v1035
        %1146 = vst [vmem:[#allocation3 + $0x68] sm:$0xff] %v1040
        %1147 = vst [vmem:[#allocation3 + $0x70] sm:$0xff] %v1045
        %1148 = vst [vmem:[#allocation3 + $0x78] sm:$0xff] %v1050
        %1149 = vst [vmem:[#allocation3 + $0x80] sm:$0xff] %v1055
        %1150 = vst [vmem:[#allocation3 + $0x88] sm:$0xff] %v1060
        %1151 = vst [vmem:[#allocation3 + $0x90] sm:$0xff] %v1065
        %1152 = vst [vmem:[#allocation3 + $0x98] sm:$0xff] %v1070
        %1153 = vst [vmem:[#allocation3 + $0xa0] sm:$0xff] %v1075
        %1154 = vst [vmem:[#allocation3 + $0xa8] sm:$0xff] %v1080
        %1155 = vst [vmem:[#allocation3 + $0xb0] sm:$0xff] %v1085
        %1156 = vst [vmem:[#allocation3 + $0xb8] sm:$0xff] %v1090
        %1157 = vst [vmem:[#allocation3 + $0xc0] sm:$0xff] %v1095
        %1158 = vst [vmem:[#allocation3 + $0xc8] sm:$0xff] %v1100
        %1159 = vst [vmem:[#allocation3 + $0xd0] sm:$0xff] %v1105
        %1160 = vst [vmem:[#allocation3 + $0xd8] sm:$0xff] %v1110
        %1161 = vst [vmem:[#allocation3 + $0xe0] sm:$0xff] %v1115
        %1162 = vst [vmem:[#allocation3 + $0xe8] sm:$0xff] %v1120
        %1163 = vst [vmem:[#allocation3 + $0xf0] sm:$0xff] %v1125
        %1164 = vst [vmem:[#allocation3 + $0xf8] sm:$0xff] %v1130
        %v1165 = vld [vmem:[#allocation2 + $0x8] sm:$0xff]
        %v1166 = vld [vmem:[#allocation2 + $0x10] sm:$0xff]
        %v1167 = vld [vmem:[#allocation2 + $0x18] sm:$0xff]
        %v1168 = vld [vmem:[#allocation2 + $0x20] sm:$0xff]
        %v1169 = vld [vmem:[#allocation2 + $0x28] sm:$0xff]
        %v1170 = vld [vmem:[#allocation2 + $0x30] sm:$0xff]
        %v1171 = vld [vmem:[#allocation2 + $0x38] sm:$0xff]
        %v1172 = vld [vmem:[#allocation2 + $0x40] sm:$0xff]
        %v1173 = vld [vmem:[#allocation2 + $0x48] sm:$0xff]
        %v1174 = vld [vmem:[#allocation2 + $0x50] sm:$0xff]
        %v1175 = vld [vmem:[#allocation2 + $0x58] sm:$0xff]
        %v1176 = vld [vmem:[#allocation2 + $0x60] sm:$0xff]
        %v1177 = vld [vmem:[#allocation2 + $0x68] sm:$0xff]
        %v1178 = vld [vmem:[#allocation2 + $0x70] sm:$0xff]
        %v1179 = vld [vmem:[#allocation2 + $0x78] sm:$0xff]
        %v1180 = vld [vmem:[#allocation2 + $0x80] sm:$0xff]
        %v1181 = vld [vmem:[#allocation2 + $0x88] sm:$0xff]
        %v1182 = vld [vmem:[#allocation2 + $0x90] sm:$0xff]
        %v1183 = vld [vmem:[#allocation2 + $0x98] sm:$0xff]
        %v1184 = vld [vmem:[#allocation2 + $0xa0] sm:$0xff]
        %v1185 = vld [vmem:[#allocation2 + $0xa8] sm:$0xff]
        %v1186 = vld [vmem:[#allocation2 + $0xb0] sm:$0xff]
        %v1187 = vld [vmem:[#allocation2 + $0xb8] sm:$0xff]
        %v1188 = vld [vmem:[#allocation2 + $0xc0] sm:$0xff]
        %v1189 = vld [vmem:[#allocation2 + $0xc8] sm:$0xff]
        %v1190 = vld [vmem:[#allocation2 + $0xd0] sm:$0xff]
        %v1191 = vld [vmem:[#allocation2 + $0xd8] sm:$0xff]
        %v1192 = vld [vmem:[#allocation2 + $0xe0] sm:$0xff]
        %v1193 = vld [vmem:[#allocation2 + $0xe8] sm:$0xff]
        %v1194 = vld [vmem:[#allocation2 + $0xf0] sm:$0xff]
        %v1195 = vld [vmem:[#allocation2 + $0xf8] sm:$0xff]
        %v1196 = vld [vmem:[#allocation2 + $0x100] sm:$0xff]
        %s1197 = scalar_lea.vmem [#allocation7], 128
        %v1198 = vld [vmem:[%s1197] sm:$0xff]
        %v1199 = vld [vmem:[%s1197 + $0x8] sm:$0xff]
        %v1200 = vld [vmem:[%s1197 + $0x10] sm:$0xff]
        %v1201 = vld [vmem:[%s1197 + $0x18] sm:$0xff]
        %v1202 = vld [vmem:[%s1197 + $0x20] sm:$0xff]
        %v1203 = vld [vmem:[%s1197 + $0x28] sm:$0xff]
        %v1204 = vld [vmem:[%s1197 + $0x30] sm:$0xff]
        %v1205 = vld [vmem:[%s1197 + $0x38] sm:$0xff]
        %v1206 = vld [vmem:[%s1197 + $0x40] sm:$0xff]
        %v1207 = vld [vmem:[%s1197 + $0x48] sm:$0xff]
        %v1208 = vld [vmem:[%s1197 + $0x50] sm:$0xff]
        %v1209 = vld [vmem:[%s1197 + $0x58] sm:$0xff]
        %v1210 = vld [vmem:[%s1197 + $0x60] sm:$0xff]
        %v1211 = vld [vmem:[%s1197 + $0x68] sm:$0xff]
        %v1212 = vld [vmem:[%s1197 + $0x70] sm:$0xff]
        %v1213 = vld [vmem:[%s1197 + $0x78] sm:$0xff]
        %1214 = vmatprep.subr.mxu0 0.0
        %1215 = vmatpush1.msra.mxu0 %v1198
        %1216 = vmatprep.subr.mxu0 0.0
        %1217 = vmatpush1.msra.mxu0 %v1199
        %1218 = vmatprep.subr.mxu0 0.0
        %1219 = vmatpush1.msra.mxu0 %v1200
        %1220 = vmatprep.subr.mxu0 0.0
        %1221 = vmatpush1.msra.mxu0 %v1201
        %1222 = vmatprep.subr.mxu0 0.0
        %1223 = vmatpush1.msra.mxu0 %v1202
        %1224 = vmatprep.subr.mxu0 0.0
        %1225 = vmatpush1.msra.mxu0 %v1203
        %1226 = vmatprep.subr.mxu0 0.0
        %1227 = vmatpush1.msra.mxu0 %v1204
        %1228 = vmatprep.subr.mxu0 0.0
        %1229 = vmatpush1.msra.mxu0 %v1205
        %1230 = vmatprep.subr.mxu0 0.0
        %1231 = vmatpush1.msra.mxu0 %v1206
        %1232 = vmatprep.subr.mxu0 0.0
        %1233 = vmatpush1.msra.mxu0 %v1207
        %1234 = vmatprep.subr.mxu0 0.0
        %1235 = vmatpush1.msra.mxu0 %v1208
        %1236 = vmatprep.subr.mxu0 0.0
        %1237 = vmatpush1.msra.mxu0 %v1209
        %1238 = vmatprep.subr.mxu0 0.0
        %1239 = vmatpush1.msra.mxu0 %v1210
        %1240 = vmatprep.subr.mxu0 0.0
        %1241 = vmatpush1.msra.mxu0 %v1211
        %1242 = vmatprep.subr.mxu0 0.0
        %1243 = vmatpush1.msra.mxu0 %v1212
        %1244 = vmatprep.subr.mxu0 0.0
        %1245 = vmatpush1.msra.mxu0 %v1213
        %1246 = vmatprep.subr.mxu0 0.0
        %1247 = vmatpush1.msra.mxu0 0.0
        %1248 = vmatprep.subr.mxu0 0.0
        %1249 = vmatpush1.msra.mxu0 0.0
        %1250 = vmatprep.subr.mxu0 0.0
        %1251 = vmatpush1.msra.mxu0 0.0
        %1252 = vmatprep.subr.mxu0 0.0
        %1253 = vmatpush1.msra.mxu0 0.0
        %1254 = vmatprep.subr.mxu0 0.0
        %1255 = vmatpush1.msra.mxu0 0.0
        %1256 = vmatprep.subr.mxu0 0.0
        %1257 = vmatpush1.msra.mxu0 0.0
        %1258 = vmatprep.subr.mxu0 0.0
        %1259 = vmatpush1.msra.mxu0 0.0
        %1260 = vmatprep.subr.mxu0 0.0
        %1261 = vmatpush1.msra.mxu0 0.0
        %1262 = vmatprep.subr.mxu0 0.0
        %1263 = vmatpush1.msra.mxu0 0.0
        %1264 = vmatprep.subr.mxu0 0.0
        %1265 = vmatpush1.msra.mxu0 0.0
        %1266 = vmatprep.subr.mxu0 0.0
        %1267 = vmatpush1.msra.mxu0 0.0
        %1268 = vmatprep.subr.mxu0 0.0
        %1269 = vmatpush1.msra.mxu0 0.0
        %1270 = vmatprep.subr.mxu0 0.0
        %1271 = vmatpush1.msra.mxu0 0.0
        %1272 = vmatprep.subr.mxu0 0.0
        %1273 = vmatpush1.msra.mxu0 0.0
        %1274 = vmatprep.subr.mxu0 0.0
        %1275 = vmatpush1.msra.mxu0 0.0
        %1276 = vmatprep.subr.mxu0 0.0
        %1277 = vmatpush1.msra.mxu0 0.0
        %1278 = vmatprep.mubr.f32.mxu0 0.0
        %1279 = vmatmul.mubr.f32.gmra.mrb[0].mxu0 %v1165
        %v1280 = vpop.f32.mrb[0].mxu0
        %v1281 = vadd.f32 0.0, %v1280
        %v1282 = vpop.f32.mrb[0].mxu0
        %1283 = vmatprep.mubr.f32.mxu0 0.0
        %1284 = vmatmul.mubr.f32.gmra.mrb[0].mxu0 %v1166
        %v1285 = vpop.f32.mrb[0].mxu0
        %v1286 = vadd.f32 0.0, %v1285
        %v1287 = vpop.f32.mrb[0].mxu0
        %1288 = vmatprep.mubr.f32.mxu0 0.0
        %1289 = vmatmul.mubr.f32.gmra.mrb[0].mxu0 %v1167
        %v1290 = vpop.f32.mrb[0].mxu0
        %v1291 = vadd.f32 0.0, %v1290
        %v1292 = vpop.f32.mrb[0].mxu0
        %1293 = vmatprep.mubr.f32.mxu0 0.0
        %1294 = vmatmul.mubr.f32.gmra.mrb[0].mxu0 %v1168
        %v1295 = vpop.f32.mrb[0].mxu0
        %v1296 = vadd.f32 0.0, %v1295
        %v1297 = vpop.f32.mrb[0].mxu0
        %1298 = vmatprep.mubr.f32.mxu0 0.0
        %1299 = vmatmul.mubr.f32.gmra.mrb[0].mxu0 %v1169
        %v1300 = vpop.f32.mrb[0].mxu0
        %v1301 = vadd.f32 0.0, %v1300
        %v1302 = vpop.f32.mrb[0].mxu0
        %1303 = vmatprep.mubr.f32.mxu0 0.0
        %1304 = vmatmul.mubr.f32.gmra.mrb[0].mxu0 %v1170
        %v1305 = vpop.f32.mrb[0].mxu0
        %v1306 = vadd.f32 0.0, %v1305
        %v1307 = vpop.f32.mrb[0].mxu0
        %1308 = vmatprep.mubr.f32.mxu0 0.0
        %1309 = vmatmul.mubr.f32.gmra.mrb[0].mxu0 %v1171
        %v1310 = vpop.f32.mrb[0].mxu0
        %v1311 = vadd.f32 0.0, %v1310
        %v1312 = vpop.f32.mrb[0].mxu0
        %1313 = vmatprep.mubr.f32.mxu0 0.0
        %1314 = vmatmul.mubr.f32.gmra.mrb[0].mxu0 %v1172
        %v1315 = vpop.f32.mrb[0].mxu0
        %v1316 = vadd.f32 0.0, %v1315
        %v1317 = vpop.f32.mrb[0].mxu0
        %1318 = vmatprep.mubr.f32.mxu0 0.0
        %1319 = vmatmul.mubr.f32.gmra.mrb[0].mxu0 %v1173
        %v1320 = vpop.f32.mrb[0].mxu0
        %v1321 = vadd.f32 0.0, %v1320
        %v1322 = vpop.f32.mrb[0].mxu0
        %1323 = vmatprep.mubr.f32.mxu0 0.0
        %1324 = vmatmul.mubr.f32.gmra.mrb[0].mxu0 %v1174
        %v1325 = vpop.f32.mrb[0].mxu0
        %v1326 = vadd.f32 0.0, %v1325
        %v1327 = vpop.f32.mrb[0].mxu0
        %1328 = vmatprep.mubr.f32.mxu0 0.0
        %1329 = vmatmul.mubr.f32.gmra.mrb[0].mxu0 %v1175
        %v1330 = vpop.f32.mrb[0].mxu0
        %v1331 = vadd.f32 0.0, %v1330
        %v1332 = vpop.f32.mrb[0].mxu0
        %1333 = vmatprep.mubr.f32.mxu0 0.0
        %1334 = vmatmul.mubr.f32.gmra.mrb[0].mxu0 %v1176
        %v1335 = vpop.f32.mrb[0].mxu0
        %v1336 = vadd.f32 0.0, %v1335
        %v1337 = vpop.f32.mrb[0].mxu0
        %1338 = vmatprep.mubr.f32.mxu0 0.0
        %1339 = vmatmul.mubr.f32.gmra.mrb[0].mxu0 %v1177
        %v1340 = vpop.f32.mrb[0].mxu0
        %v1341 = vadd.f32 0.0, %v1340
        %v1342 = vpop.f32.mrb[0].mxu0
        %1343 = vmatprep.mubr.f32.mxu0 0.0
        %1344 = vmatmul.mubr.f32.gmra.mrb[0].mxu0 %v1178
        %v1345 = vpop.f32.mrb[0].mxu0
        %v1346 = vadd.f32 0.0, %v1345
        %v1347 = vpop.f32.mrb[0].mxu0
        %1348 = vmatprep.mubr.f32.mxu0 0.0
        %1349 = vmatmul.mubr.f32.gmra.mrb[0].mxu0 %v1179
        %v1350 = vpop.f32.mrb[0].mxu0
        %v1351 = vadd.f32 0.0, %v1350
        %v1352 = vpop.f32.mrb[0].mxu0
        %1353 = vmatprep.mubr.f32.mxu0 0.0
        %1354 = vmatmul.mubr.f32.gmra.mrb[0].mxu0 %v1180
        %v1355 = vpop.f32.mrb[0].mxu0
        %v1356 = vadd.f32 0.0, %v1355
        %v1357 = vpop.f32.mrb[0].mxu0
        %1358 = vmatprep.mubr.f32.mxu0 0.0
        %1359 = vmatmul.mubr.f32.gmra.mrb[0].mxu0 %v1181
        %v1360 = vpop.f32.mrb[0].mxu0
        %v1361 = vadd.f32 0.0, %v1360
        %v1362 = vpop.f32.mrb[0].mxu0
        %1363 = vmatprep.mubr.f32.mxu0 0.0
        %1364 = vmatmul.mubr.f32.gmra.mrb[0].mxu0 %v1182
        %v1365 = vpop.f32.mrb[0].mxu0
        %v1366 = vadd.f32 0.0, %v1365
        %v1367 = vpop.f32.mrb[0].mxu0
        %1368 = vmatprep.mubr.f32.mxu0 0.0
        %1369 = vmatmul.mubr.f32.gmra.mrb[0].mxu0 %v1183
        %v1370 = vpop.f32.mrb[0].mxu0
        %v1371 = vadd.f32 0.0, %v1370
        %v1372 = vpop.f32.mrb[0].mxu0
        %1373 = vmatprep.mubr.f32.mxu0 0.0
        %1374 = vmatmul.mubr.f32.gmra.mrb[0].mxu0 %v1184
        %v1375 = vpop.f32.mrb[0].mxu0
        %v1376 = vadd.f32 0.0, %v1375
        %v1377 = vpop.f32.mrb[0].mxu0
        %1378 = vmatprep.mubr.f32.mxu0 0.0
        %1379 = vmatmul.mubr.f32.gmra.mrb[0].mxu0 %v1185
        %v1380 = vpop.f32.mrb[0].mxu0
        %v1381 = vadd.f32 0.0, %v1380
        %v1382 = vpop.f32.mrb[0].mxu0
        %1383 = vmatprep.mubr.f32.mxu0 0.0
        %1384 = vmatmul.mubr.f32.gmra.mrb[0].mxu0 %v1186
        %v1385 = vpop.f32.mrb[0].mxu0
        %v1386 = vadd.f32 0.0, %v1385
        %v1387 = vpop.f32.mrb[0].mxu0
        %1388 = vmatprep.mubr.f32.mxu0 0.0
        %1389 = vmatmul.mubr.f32.gmra.mrb[0].mxu0 %v1187
        %v1390 = vpop.f32.mrb[0].mxu0
        %v1391 = vadd.f32 0.0, %v1390
        %v1392 = vpop.f32.mrb[0].mxu0
        %1393 = vmatprep.mubr.f32.mxu0 0.0
        %1394 = vmatmul.mubr.f32.gmra.mrb[0].mxu0 %v1188
        %v1395 = vpop.f32.mrb[0].mxu0
        %v1396 = vadd.f32 0.0, %v1395
        %v1397 = vpop.f32.mrb[0].mxu0
        %1398 = vmatprep.mubr.f32.mxu0 0.0
        %1399 = vmatmul.mubr.f32.gmra.mrb[0].mxu0 %v1189
        %v1400 = vpop.f32.mrb[0].mxu0
        %v1401 = vadd.f32 0.0, %v1400
        %v1402 = vpop.f32.mrb[0].mxu0
        %1403 = vmatprep.mubr.f32.mxu0 0.0
        %1404 = vmatmul.mubr.f32.gmra.mrb[0].mxu0 %v1190
        %v1405 = vpop.f32.mrb[0].mxu0
        %v1406 = vadd.f32 0.0, %v1405
        %v1407 = vpop.f32.mrb[0].mxu0
        %1408 = vmatprep.mubr.f32.mxu0 0.0
        %1409 = vmatmul.mubr.f32.gmra.mrb[0].mxu0 %v1191
        %v1410 = vpop.f32.mrb[0].mxu0
        %v1411 = vadd.f32 0.0, %v1410
        %v1412 = vpop.f32.mrb[0].mxu0
        %1413 = vmatprep.mubr.f32.mxu0 0.0
        %1414 = vmatmul.mubr.f32.gmra.mrb[0].mxu0 %v1192
        %v1415 = vpop.f32.mrb[0].mxu0
        %v1416 = vadd.f32 0.0, %v1415
        %v1417 = vpop.f32.mrb[0].mxu0
        %1418 = vmatprep.mubr.f32.mxu0 0.0
        %1419 = vmatmul.mubr.f32.gmra.mrb[0].mxu0 %v1193
        %v1420 = vpop.f32.mrb[0].mxu0
        %v1421 = vadd.f32 0.0, %v1420
        %v1422 = vpop.f32.mrb[0].mxu0
        %1423 = vmatprep.mubr.f32.mxu0 0.0
        %1424 = vmatmul.mubr.f32.gmra.mrb[0].mxu0 %v1194
        %v1425 = vpop.f32.mrb[0].mxu0
        %v1426 = vadd.f32 0.0, %v1425
        %v1427 = vpop.f32.mrb[0].mxu0
        %1428 = vmatprep.mubr.f32.mxu0 0.0
        %1429 = vmatmul.mubr.f32.gmra.mrb[0].mxu0 %v1195
        %v1430 = vpop.f32.mrb[0].mxu0
        %v1431 = vadd.f32 0.0, %v1430
        %v1432 = vpop.f32.mrb[0].mxu0
        %1433 = vmatprep.mubr.f32.mxu0 0.0
        %1434 = vmatmul.mubr.f32.gmra.mrb[0].mxu0 %v1196
        %v1435 = vpop.f32.mrb[0].mxu0
        %v1436 = vadd.f32 0.0, %v1435
        %v1437 = vpop.f32.mrb[0].mxu0
        %1438 = vdwg.mxu0
        %v1439 = vld [vmem:[#allocation3] sm:$0xff]
        %v1440 = vld [vmem:[#allocation3 + $0x8] sm:$0xff]
        %v1441 = vld [vmem:[#allocation3 + $0x10] sm:$0xff]
        %v1442 = vld [vmem:[#allocation3 + $0x18] sm:$0xff]
        %v1443 = vld [vmem:[#allocation3 + $0x20] sm:$0xff]
        %v1444 = vld [vmem:[#allocation3 + $0x28] sm:$0xff]
        %v1445 = vld [vmem:[#allocation3 + $0x30] sm:$0xff]
        %v1446 = vld [vmem:[#allocation3 + $0x38] sm:$0xff]
        %v1447 = vld [vmem:[#allocation3 + $0x40] sm:$0xff]
        %v1448 = vld [vmem:[#allocation3 + $0x48] sm:$0xff]
        %v1449 = vld [vmem:[#allocation3 + $0x50] sm:$0xff]
        %v1450 = vld [vmem:[#allocation3 + $0x58] sm:$0xff]
        %v1451 = vld [vmem:[#allocation3 + $0x60] sm:$0xff]
        %v1452 = vld [vmem:[#allocation3 + $0x68] sm:$0xff]
        %v1453 = vld [vmem:[#allocation3 + $0x70] sm:$0xff]
        %v1454 = vld [vmem:[#allocation3 + $0x78] sm:$0xff]
        %v1455 = vld [vmem:[#allocation3 + $0x80] sm:$0xff]
        %v1456 = vld [vmem:[#allocation3 + $0x88] sm:$0xff]
        %v1457 = vld [vmem:[#allocation3 + $0x90] sm:$0xff]
        %v1458 = vld [vmem:[#allocation3 + $0x98] sm:$0xff]
        %v1459 = vld [vmem:[#allocation3 + $0xa0] sm:$0xff]
        %v1460 = vld [vmem:[#allocation3 + $0xa8] sm:$0xff]
        %v1461 = vld [vmem:[#allocation3 + $0xb0] sm:$0xff]
        %v1462 = vld [vmem:[#allocation3 + $0xb8] sm:$0xff]
        %v1463 = vld [vmem:[#allocation3 + $0xc0] sm:$0xff]
        %v1464 = vld [vmem:[#allocation3 + $0xc8] sm:$0xff]
        %v1465 = vld [vmem:[#allocation3 + $0xd0] sm:$0xff]
        %v1466 = vld [vmem:[#allocation3 + $0xd8] sm:$0xff]
        %v1467 = vld [vmem:[#allocation3 + $0xe0] sm:$0xff]
        %v1468 = vld [vmem:[#allocation3 + $0xe8] sm:$0xff]
        %v1469 = vld [vmem:[#allocation3 + $0xf0] sm:$0xff]
        %v1470 = vld [vmem:[#allocation3 + $0xf8] sm:$0xff]
        %v1471 = vadd.f32 %v1439, %v1281
        %v1472 = vadd.f32 %v1440, %v1286
        %v1473 = vadd.f32 %v1441, %v1291
        %v1474 = vadd.f32 %v1442, %v1296
        %v1475 = vadd.f32 %v1443, %v1301
        %v1476 = vadd.f32 %v1444, %v1306
        %v1477 = vadd.f32 %v1445, %v1311
        %v1478 = vadd.f32 %v1446, %v1316
        %v1479 = vadd.f32 %v1447, %v1321
        %v1480 = vadd.f32 %v1448, %v1326
        %v1481 = vadd.f32 %v1449, %v1331
        %v1482 = vadd.f32 %v1450, %v1336
        %v1483 = vadd.f32 %v1451, %v1341
        %v1484 = vadd.f32 %v1452, %v1346
        %v1485 = vadd.f32 %v1453, %v1351
        %v1486 = vadd.f32 %v1454, %v1356
        %v1487 = vadd.f32 %v1455, %v1361
        %v1488 = vadd.f32 %v1456, %v1366
        %v1489 = vadd.f32 %v1457, %v1371
        %v1490 = vadd.f32 %v1458, %v1376
        %v1491 = vadd.f32 %v1459, %v1381
        %v1492 = vadd.f32 %v1460, %v1386
        %v1493 = vadd.f32 %v1461, %v1391
        %v1494 = vadd.f32 %v1462, %v1396
        %v1495 = vadd.f32 %v1463, %v1401
        %v1496 = vadd.f32 %v1464, %v1406
        %v1497 = vadd.f32 %v1465, %v1411
        %v1498 = vadd.f32 %v1466, %v1416
        %v1499 = vadd.f32 %v1467, %v1421
        %v1500 = vadd.f32 %v1468, %v1426
        %v1501 = vadd.f32 %v1469, %v1431
        %v1502 = vadd.f32 %v1470, %v1436
        %1503 = vst [vmem:[#allocation3] sm:$0xff] %v1471
        %1504 = vst [vmem:[#allocation3 + $0x8] sm:$0xff] %v1472
        %1505 = vst [vmem:[#allocation3 + $0x10] sm:$0xff] %v1473
        %1506 = vst [vmem:[#allocation3 + $0x18] sm:$0xff] %v1474
        %1507 = vst [vmem:[#allocation3 + $0x20] sm:$0xff] %v1475
        %1508 = vst [vmem:[#allocation3 + $0x28] sm:$0xff] %v1476
        %1509 = vst [vmem:[#allocation3 + $0x30] sm:$0xff] %v1477
        %1510 = vst [vmem:[#allocation3 + $0x38] sm:$0xff] %v1478
        %1511 = vst [vmem:[#allocation3 + $0x40] sm:$0xff] %v1479
        %1512 = vst [vmem:[#allocation3 + $0x48] sm:$0xff] %v1480
        %1513 = vst [vmem:[#allocation3 + $0x50] sm:$0xff] %v1481
        %1514 = vst [vmem:[#allocation3 + $0x58] sm:$0xff] %v1482
        %1515 = vst [vmem:[#allocation3 + $0x60] sm:$0xff] %v1483
        %1516 = vst [vmem:[#allocation3 + $0x68] sm:$0xff] %v1484
        %1517 = vst [vmem:[#allocation3 + $0x70] sm:$0xff] %v1485
        %1518 = vst [vmem:[#allocation3 + $0x78] sm:$0xff] %v1486
        %1519 = vst [vmem:[#allocation3 + $0x80] sm:$0xff] %v1487
        %1520 = vst [vmem:[#allocation3 + $0x88] sm:$0xff] %v1488
        %1521 = vst [vmem:[#allocation3 + $0x90] sm:$0xff] %v1489
        %1522 = vst [vmem:[#allocation3 + $0x98] sm:$0xff] %v1490
        %1523 = vst [vmem:[#allocation3 + $0xa0] sm:$0xff] %v1491
        %1524 = vst [vmem:[#allocation3 + $0xa8] sm:$0xff] %v1492
        %1525 = vst [vmem:[#allocation3 + $0xb0] sm:$0xff] %v1493
        %1526 = vst [vmem:[#allocation3 + $0xb8] sm:$0xff] %v1494
        %1527 = vst [vmem:[#allocation3 + $0xc0] sm:$0xff] %v1495
        %1528 = vst [vmem:[#allocation3 + $0xc8] sm:$0xff] %v1496
        %1529 = vst [vmem:[#allocation3 + $0xd0] sm:$0xff] %v1497
        %1530 = vst [vmem:[#allocation3 + $0xd8] sm:$0xff] %v1498
        %1531 = vst [vmem:[#allocation3 + $0xe0] sm:$0xff] %v1499
        %1532 = vst [vmem:[#allocation3 + $0xe8] sm:$0xff] %v1500
        %1533 = vst [vmem:[#allocation3 + $0xf0] sm:$0xff] %v1501
        %1534 = vst [vmem:[#allocation3 + $0xf8] sm:$0xff] %v1502
        %v1535 = vld [vmem:[#allocation2 + $0x9] sm:$0xff]
        %v1536 = vld [vmem:[#allocation2 + $0x11] sm:$0xff]
        %v1537 = vld [vmem:[#allocation2 + $0x19] sm:$0xff]
        %v1538 = vld [vmem:[#allocation2 + $0x21] sm:$0xff]
        %v1539 = vld [vmem:[#allocation2 + $0x29] sm:$0xff]
        %v1540 = vld [vmem:[#allocation2 + $0x31] sm:$0xff]
        %v1541 = vld [vmem:[#allocation2 + $0x39] sm:$0xff]
        %v1542 = vld [vmem:[#allocation2 + $0x41] sm:$0xff]
        %v1543 = vld [vmem:[#allocation2 + $0x49] sm:$0xff]
        %v1544 = vld [vmem:[#allocation2 + $0x51] sm:$0xff]
        %v1545 = vld [vmem:[#allocation2 + $0x59] sm:$0xff]
        %v1546 = vld [vmem:[#allocation2 + $0x61] sm:$0xff]
        %v1547 = vld [vmem:[#allocation2 + $0x69] sm:$0xff]
        %v1548 = vld [vmem:[#allocation2 + $0x71] sm:$0xff]
        %v1549 = vld [vmem:[#allocation2 + $0x79] sm:$0xff]
        %v1550 = vld [vmem:[#allocation2 + $0x81] sm:$0xff]
        %v1551 = vld [vmem:[#allocation2 + $0x89] sm:$0xff]
        %v1552 = vld [vmem:[#allocation2 + $0x91] sm:$0xff]
        %v1553 = vld [vmem:[#allocation2 + $0x99] sm:$0xff]
        %v1554 = vld [vmem:[#allocation2 + $0xa1] sm:$0xff]
        %v1555 = vld [vmem:[#allocation2 + $0xa9] sm:$0xff]
        %v1556 = vld [vmem:[#allocation2 + $0xb1] sm:$0xff]
        %v1557 = vld [vmem:[#allocation2 + $0xb9] sm:$0xff]
        %v1558 = vld [vmem:[#allocation2 + $0xc1] sm:$0xff]
        %v1559 = vld [vmem:[#allocation2 + $0xc9] sm:$0xff]
        %v1560 = vld [vmem:[#allocation2 + $0xd1] sm:$0xff]
        %v1561 = vld [vmem:[#allocation2 + $0xd9] sm:$0xff]
        %v1562 = vld [vmem:[#allocation2 + $0xe1] sm:$0xff]
        %v1563 = vld [vmem:[#allocation2 + $0xe9] sm:$0xff]
        %v1564 = vld [vmem:[#allocation2 + $0xf1] sm:$0xff]
        %v1565 = vld [vmem:[#allocation2 + $0xf9] sm:$0xff]
        %v1566 = vld [vmem:[#allocation2 + $0x101] sm:$0xff]
        %v1567 = vsel %vm726, %v1535, 0.0
        %v1568 = vsel %vm727, %v1536, 0.0
        %v1569 = vsel %vm728, %v1537, 0.0
        %v1570 = vsel %vm729, %v1538, 0.0
        %v1571 = vsel %vm730, %v1539, 0.0
        %v1572 = vsel %vm731, %v1540, 0.0
        %v1573 = vsel %vm732, %v1541, 0.0
        %v1574 = vsel %vm733, %v1542, 0.0
        %v1575 = vsel %vm734, %v1543, 0.0
        %v1576 = vsel %vm735, %v1544, 0.0
        %v1577 = vsel %vm736, %v1545, 0.0
        %v1578 = vsel %vm737, %v1546, 0.0
        %v1579 = vsel %vm738, %v1547, 0.0
        %v1580 = vsel %vm739, %v1548, 0.0
        %v1581 = vsel %vm740, %v1549, 0.0
        %v1582 = vsel %vm741, %v1550, 0.0
        %v1583 = vsel %vm742, %v1551, 0.0
        %v1584 = vsel %vm743, %v1552, 0.0
        %v1585 = vsel %vm744, %v1553, 0.0
        %v1586 = vsel %vm745, %v1554, 0.0
        %v1587 = vsel %vm746, %v1555, 0.0
        %v1588 = vsel %vm747, %v1556, 0.0
        %v1589 = vsel %vm748, %v1557, 0.0
        %v1590 = vsel %vm749, %v1558, 0.0
        %v1591 = vsel %vm750, %v1559, 0.0
        %v1592 = vsel %vm751, %v1560, 0.0
        %v1593 = vsel %vm752, %v1561, 0.0
        %v1594 = vsel %vm753, %v1562, 0.0
        %v1595 = vsel %vm754, %v1563, 0.0
        %v1596 = vsel %vm755, %v1564, 0.0
        %v1597 = vsel %vm756, %v1565, 0.0
        %v1598 = vsel %vm757, %v1566, 0.0
        %s1599 = scalar_lea.vmem [#allocation7], 256
        %v1600 = vld [vmem:[%s1599] sm:$0xff]
        %v1601 = vld [vmem:[%s1599 + $0x8] sm:$0xff]
        %v1602 = vld [vmem:[%s1599 + $0x10] sm:$0xff]
        %v1603 = vld [vmem:[%s1599 + $0x18] sm:$0xff]
        %v1604 = vld [vmem:[%s1599 + $0x20] sm:$0xff]
        %v1605 = vld [vmem:[%s1599 + $0x28] sm:$0xff]
        %v1606 = vld [vmem:[%s1599 + $0x30] sm:$0xff]
        %v1607 = vld [vmem:[%s1599 + $0x38] sm:$0xff]
        %v1608 = vld [vmem:[%s1599 + $0x40] sm:$0xff]
        %v1609 = vld [vmem:[%s1599 + $0x48] sm:$0xff]
        %v1610 = vld [vmem:[%s1599 + $0x50] sm:$0xff]
        %v1611 = vld [vmem:[%s1599 + $0x58] sm:$0xff]
        %v1612 = vld [vmem:[%s1599 + $0x60] sm:$0xff]
        %v1613 = vld [vmem:[%s1599 + $0x68] sm:$0xff]
        %v1614 = vld [vmem:[%s1599 + $0x70] sm:$0xff]
        %v1615 = vld [vmem:[%s1599 + $0x78] sm:$0xff]
        %1616 = vmatprep.subr.mxu0 0.0
        %1617 = vmatpush1.msra.mxu0 %v1600
        %1618 = vmatprep.subr.mxu0 0.0
        %1619 = vmatpush1.msra.mxu0 %v1601
        %1620 = vmatprep.subr.mxu0 0.0
        %1621 = vmatpush1.msra.mxu0 %v1602
        %1622 = vmatprep.subr.mxu0 0.0
        %1623 = vmatpush1.msra.mxu0 %v1603
        %1624 = vmatprep.subr.mxu0 0.0
        %1625 = vmatpush1.msra.mxu0 %v1604
        %1626 = vmatprep.subr.mxu0 0.0
        %1627 = vmatpush1.msra.mxu0 %v1605
        %1628 = vmatprep.subr.mxu0 0.0
        %1629 = vmatpush1.msra.mxu0 %v1606
        %1630 = vmatprep.subr.mxu0 0.0
        %1631 = vmatpush1.msra.mxu0 %v1607
        %1632 = vmatprep.subr.mxu0 0.0
        %1633 = vmatpush1.msra.mxu0 %v1608
        %1634 = vmatprep.subr.mxu0 0.0
        %1635 = vmatpush1.msra.mxu0 %v1609
        %1636 = vmatprep.subr.mxu0 0.0
        %1637 = vmatpush1.msra.mxu0 %v1610
        %1638 = vmatprep.subr.mxu0 0.0
        %1639 = vmatpush1.msra.mxu0 %v1611
        %1640 = vmatprep.subr.mxu0 0.0
        %1641 = vmatpush1.msra.mxu0 %v1612
        %1642 = vmatprep.subr.mxu0 0.0
        %1643 = vmatpush1.msra.mxu0 %v1613
        %1644 = vmatprep.subr.mxu0 0.0
        %1645 = vmatpush1.msra.mxu0 %v1614
        %1646 = vmatprep.subr.mxu0 0.0
        %1647 = vmatpush1.msra.mxu0 %v1615
        %1648 = vmatprep.subr.mxu0 0.0
        %1649 = vmatpush1.msra.mxu0 0.0
        %1650 = vmatprep.subr.mxu0 0.0
        %1651 = vmatpush1.msra.mxu0 0.0
        %1652 = vmatprep.subr.mxu0 0.0
        %1653 = vmatpush1.msra.mxu0 0.0
        %1654 = vmatprep.subr.mxu0 0.0
        %1655 = vmatpush1.msra.mxu0 0.0
        %1656 = vmatprep.subr.mxu0 0.0
        %1657 = vmatpush1.msra.mxu0 0.0
        %1658 = vmatprep.subr.mxu0 0.0
        %1659 = vmatpush1.msra.mxu0 0.0
        %1660 = vmatprep.subr.mxu0 0.0
        %1661 = vmatpush1.msra.mxu0 0.0
        %1662 = vmatprep.subr.mxu0 0.0
        %1663 = vmatpush1.msra.mxu0 0.0
        %1664 = vmatprep.subr.mxu0 0.0
        %1665 = vmatpush1.msra.mxu0 0.0
        %1666 = vmatprep.subr.mxu0 0.0
        %1667 = vmatpush1.msra.mxu0 0.0
        %1668 = vmatprep.subr.mxu0 0.0
        %1669 = vmatpush1.msra.mxu0 0.0
        %1670 = vmatprep.subr.mxu0 0.0
        %1671 = vmatpush1.msra.mxu0 0.0
        %1672 = vmatprep.subr.mxu0 0.0
        %1673 = vmatpush1.msra.mxu0 0.0
        %1674 = vmatprep.subr.mxu0 0.0
        %1675 = vmatpush1.msra.mxu0 0.0
        %1676 = vmatprep.subr.mxu0 0.0
        %1677 = vmatpush1.msra.mxu0 0.0
        %1678 = vmatprep.subr.mxu0 0.0
        %1679 = vmatpush1.msra.mxu0 0.0
        %1680 = vmatprep.mubr.f32.mxu0 0.0
        %1681 = vmatmul.mubr.f32.gmra.mrb[0].mxu0 %v1567
        %v1682 = vpop.f32.mrb[0].mxu0
        %v1683 = vadd.f32 0.0, %v1682
        %v1684 = vpop.f32.mrb[0].mxu0
        %1685 = vmatprep.mubr.f32.mxu0 0.0
        %1686 = vmatmul.mubr.f32.gmra.mrb[0].mxu0 %v1568
        %v1687 = vpop.f32.mrb[0].mxu0
        %v1688 = vadd.f32 0.0, %v1687
        %v1689 = vpop.f32.mrb[0].mxu0
        %1690 = vmatprep.mubr.f32.mxu0 0.0
        %1691 = vmatmul.mubr.f32.gmra.mrb[0].mxu0 %v1569
        %v1692 = vpop.f32.mrb[0].mxu0
        %v1693 = vadd.f32 0.0, %v1692
        %v1694 = vpop.f32.mrb[0].mxu0
        %1695 = vmatprep.mubr.f32.mxu0 0.0
        %1696 = vmatmul.mubr.f32.gmra.mrb[0].mxu0 %v1570
        %v1697 = vpop.f32.mrb[0].mxu0
        %v1698 = vadd.f32 0.0, %v1697
        %v1699 = vpop.f32.mrb[0].mxu0
        %1700 = vmatprep.mubr.f32.mxu0 0.0
        %1701 = vmatmul.mubr.f32.gmra.mrb[0].mxu0 %v1571
        %v1702 = vpop.f32.mrb[0].mxu0
        %v1703 = vadd.f32 0.0, %v1702
        %v1704 = vpop.f32.mrb[0].mxu0
        %1705 = vmatprep.mubr.f32.mxu0 0.0
        %1706 = vmatmul.mubr.f32.gmra.mrb[0].mxu0 %v1572
        %v1707 = vpop.f32.mrb[0].mxu0
        %v1708 = vadd.f32 0.0, %v1707
        %v1709 = vpop.f32.mrb[0].mxu0
        %1710 = vmatprep.mubr.f32.mxu0 0.0
        %1711 = vmatmul.mubr.f32.gmra.mrb[0].mxu0 %v1573
        %v1712 = vpop.f32.mrb[0].mxu0
        %v1713 = vadd.f32 0.0, %v1712
        %v1714 = vpop.f32.mrb[0].mxu0
        %1715 = vmatprep.mubr.f32.mxu0 0.0
        %1716 = vmatmul.mubr.f32.gmra.mrb[0].mxu0 %v1574
        %v1717 = vpop.f32.mrb[0].mxu0
        %v1718 = vadd.f32 0.0, %v1717
        %v1719 = vpop.f32.mrb[0].mxu0
        %1720 = vmatprep.mubr.f32.mxu0 0.0
        %1721 = vmatmul.mubr.f32.gmra.mrb[0].mxu0 %v1575
        %v1722 = vpop.f32.mrb[0].mxu0
        %v1723 = vadd.f32 0.0, %v1722
        %v1724 = vpop.f32.mrb[0].mxu0
        %1725 = vmatprep.mubr.f32.mxu0 0.0
        %1726 = vmatmul.mubr.f32.gmra.mrb[0].mxu0 %v1576
        %v1727 = vpop.f32.mrb[0].mxu0
        %v1728 = vadd.f32 0.0, %v1727
        %v1729 = vpop.f32.mrb[0].mxu0
        %1730 = vmatprep.mubr.f32.mxu0 0.0
        %1731 = vmatmul.mubr.f32.gmra.mrb[0].mxu0 %v1577
        %v1732 = vpop.f32.mrb[0].mxu0
        %v1733 = vadd.f32 0.0, %v1732
        %v1734 = vpop.f32.mrb[0].mxu0
        %1735 = vmatprep.mubr.f32.mxu0 0.0
        %1736 = vmatmul.mubr.f32.gmra.mrb[0].mxu0 %v1578
        %v1737 = vpop.f32.mrb[0].mxu0
        %v1738 = vadd.f32 0.0, %v1737
        %v1739 = vpop.f32.mrb[0].mxu0
        %1740 = vmatprep.mubr.f32.mxu0 0.0
        %1741 = vmatmul.mubr.f32.gmra.mrb[0].mxu0 %v1579
        %v1742 = vpop.f32.mrb[0].mxu0
        %v1743 = vadd.f32 0.0, %v1742
        %v1744 = vpop.f32.mrb[0].mxu0
        %1745 = vmatprep.mubr.f32.mxu0 0.0
        %1746 = vmatmul.mubr.f32.gmra.mrb[0].mxu0 %v1580
        %v1747 = vpop.f32.mrb[0].mxu0
        %v1748 = vadd.f32 0.0, %v1747
        %v1749 = vpop.f32.mrb[0].mxu0
        %1750 = vmatprep.mubr.f32.mxu0 0.0
        %1751 = vmatmul.mubr.f32.gmra.mrb[0].mxu0 %v1581
        %v1752 = vpop.f32.mrb[0].mxu0
        %v1753 = vadd.f32 0.0, %v1752
        %v1754 = vpop.f32.mrb[0].mxu0
        %1755 = vmatprep.mubr.f32.mxu0 0.0
        %1756 = vmatmul.mubr.f32.gmra.mrb[0].mxu0 %v1582
        %v1757 = vpop.f32.mrb[0].mxu0
        %v1758 = vadd.f32 0.0, %v1757
        %v1759 = vpop.f32.mrb[0].mxu0
        %1760 = vmatprep.mubr.f32.mxu0 0.0
        %1761 = vmatmul.mubr.f32.gmra.mrb[0].mxu0 %v1583
        %v1762 = vpop.f32.mrb[0].mxu0
        %v1763 = vadd.f32 0.0, %v1762
        %v1764 = vpop.f32.mrb[0].mxu0
        %1765 = vmatprep.mubr.f32.mxu0 0.0
        %1766 = vmatmul.mubr.f32.gmra.mrb[0].mxu0 %v1584
        %v1767 = vpop.f32.mrb[0].mxu0
        %v1768 = vadd.f32 0.0, %v1767
        %v1769 = vpop.f32.mrb[0].mxu0
        %1770 = vmatprep.mubr.f32.mxu0 0.0
        %1771 = vmatmul.mubr.f32.gmra.mrb[0].mxu0 %v1585
        %v1772 = vpop.f32.mrb[0].mxu0
        %v1773 = vadd.f32 0.0, %v1772
        %v1774 = vpop.f32.mrb[0].mxu0
        %1775 = vmatprep.mubr.f32.mxu0 0.0
        %1776 = vmatmul.mubr.f32.gmra.mrb[0].mxu0 %v1586
        %v1777 = vpop.f32.mrb[0].mxu0
        %v1778 = vadd.f32 0.0, %v1777
        %v1779 = vpop.f32.mrb[0].mxu0
        %1780 = vmatprep.mubr.f32.mxu0 0.0
        %1781 = vmatmul.mubr.f32.gmra.mrb[0].mxu0 %v1587
        %v1782 = vpop.f32.mrb[0].mxu0
        %v1783 = vadd.f32 0.0, %v1782
        %v1784 = vpop.f32.mrb[0].mxu0
        %1785 = vmatprep.mubr.f32.mxu0 0.0
        %1786 = vmatmul.mubr.f32.gmra.mrb[0].mxu0 %v1588
        %v1787 = vpop.f32.mrb[0].mxu0
        %v1788 = vadd.f32 0.0, %v1787
        %v1789 = vpop.f32.mrb[0].mxu0
        %1790 = vmatprep.mubr.f32.mxu0 0.0
        %1791 = vmatmul.mubr.f32.gmra.mrb[0].mxu0 %v1589
        %v1792 = vpop.f32.mrb[0].mxu0
        %v1793 = vadd.f32 0.0, %v1792
        %v1794 = vpop.f32.mrb[0].mxu0
        %1795 = vmatprep.mubr.f32.mxu0 0.0
        %1796 = vmatmul.mubr.f32.gmra.mrb[0].mxu0 %v1590
        %v1797 = vpop.f32.mrb[0].mxu0
        %v1798 = vadd.f32 0.0, %v1797
        %v1799 = vpop.f32.mrb[0].mxu0
        %1800 = vmatprep.mubr.f32.mxu0 0.0
        %1801 = vmatmul.mubr.f32.gmra.mrb[0].mxu0 %v1591
        %v1802 = vpop.f32.mrb[0].mxu0
        %v1803 = vadd.f32 0.0, %v1802
        %v1804 = vpop.f32.mrb[0].mxu0
        %1805 = vmatprep.mubr.f32.mxu0 0.0
        %1806 = vmatmul.mubr.f32.gmra.mrb[0].mxu0 %v1592
        %v1807 = vpop.f32.mrb[0].mxu0
        %v1808 = vadd.f32 0.0, %v1807
        %v1809 = vpop.f32.mrb[0].mxu0
        %1810 = vmatprep.mubr.f32.mxu0 0.0
        %1811 = vmatmul.mubr.f32.gmra.mrb[0].mxu0 %v1593
        %v1812 = vpop.f32.mrb[0].mxu0
        %v1813 = vadd.f32 0.0, %v1812
        %v1814 = vpop.f32.mrb[0].mxu0
        %1815 = vmatprep.mubr.f32.mxu0 0.0
        %1816 = vmatmul.mubr.f32.gmra.mrb[0].mxu0 %v1594
        %v1817 = vpop.f32.mrb[0].mxu0
        %v1818 = vadd.f32 0.0, %v1817
        %v1819 = vpop.f32.mrb[0].mxu0
        %1820 = vmatprep.mubr.f32.mxu0 0.0
        %1821 = vmatmul.mubr.f32.gmra.mrb[0].mxu0 %v1595
        %v1822 = vpop.f32.mrb[0].mxu0
        %v1823 = vadd.f32 0.0, %v1822
        %v1824 = vpop.f32.mrb[0].mxu0
        %1825 = vmatprep.mubr.f32.mxu0 0.0
        %1826 = vmatmul.mubr.f32.gmra.mrb[0].mxu0 %v1596
        %v1827 = vpop.f32.mrb[0].mxu0
        %v1828 = vadd.f32 0.0, %v1827
        %v1829 = vpop.f32.mrb[0].mxu0
        %1830 = vmatprep.mubr.f32.mxu0 0.0
        %1831 = vmatmul.mubr.f32.gmra.mrb[0].mxu0 %v1597
        %v1832 = vpop.f32.mrb[0].mxu0
        %v1833 = vadd.f32 0.0, %v1832
        %v1834 = vpop.f32.mrb[0].mxu0
        %1835 = vmatprep.mubr.f32.mxu0 0.0
        %1836 = vmatmul.mubr.f32.gmra.mrb[0].mxu0 %v1598
        %v1837 = vpop.f32.mrb[0].mxu0
        %v1838 = vadd.f32 0.0, %v1837
        %v1839 = vpop.f32.mrb[0].mxu0
        %1840 = vdwg.mxu0
        %v1841 = vld [vmem:[#allocation3] sm:$0xff]
        %v1842 = vld [vmem:[#allocation3 + $0x8] sm:$0xff]
        %v1843 = vld [vmem:[#allocation3 + $0x10] sm:$0xff]
        %v1844 = vld [vmem:[#allocation3 + $0x18] sm:$0xff]
        %v1845 = vld [vmem:[#allocation3 + $0x20] sm:$0xff]
        %v1846 = vld [vmem:[#allocation3 + $0x28] sm:$0xff]
        %v1847 = vld [vmem:[#allocation3 + $0x30] sm:$0xff]
        %v1848 = vld [vmem:[#allocation3 + $0x38] sm:$0xff]
        %v1849 = vld [vmem:[#allocation3 + $0x40] sm:$0xff]
        %v1850 = vld [vmem:[#allocation3 + $0x48] sm:$0xff]
        %v1851 = vld [vmem:[#allocation3 + $0x50] sm:$0xff]
        %v1852 = vld [vmem:[#allocation3 + $0x58] sm:$0xff]
        %v1853 = vld [vmem:[#allocation3 + $0x60] sm:$0xff]
        %v1854 = vld [vmem:[#allocation3 + $0x68] sm:$0xff]
        %v1855 = vld [vmem:[#allocation3 + $0x70] sm:$0xff]
        %v1856 = vld [vmem:[#allocation3 + $0x78] sm:$0xff]
        %v1857 = vld [vmem:[#allocation3 + $0x80] sm:$0xff]
        %v1858 = vld [vmem:[#allocation3 + $0x88] sm:$0xff]
        %v1859 = vld [vmem:[#allocation3 + $0x90] sm:$0xff]
        %v1860 = vld [vmem:[#allocation3 + $0x98] sm:$0xff]
        %v1861 = vld [vmem:[#allocation3 + $0xa0] sm:$0xff]
        %v1862 = vld [vmem:[#allocation3 + $0xa8] sm:$0xff]
        %v1863 = vld [vmem:[#allocation3 + $0xb0] sm:$0xff]
        %v1864 = vld [vmem:[#allocation3 + $0xb8] sm:$0xff]
        %v1865 = vld [vmem:[#allocation3 + $0xc0] sm:$0xff]
        %v1866 = vld [vmem:[#allocation3 + $0xc8] sm:$0xff]
        %v1867 = vld [vmem:[#allocation3 + $0xd0] sm:$0xff]
        %v1868 = vld [vmem:[#allocation3 + $0xd8] sm:$0xff]
        %v1869 = vld [vmem:[#allocation3 + $0xe0] sm:$0xff]
        %v1870 = vld [vmem:[#allocation3 + $0xe8] sm:$0xff]
        %v1871 = vld [vmem:[#allocation3 + $0xf0] sm:$0xff]
        %v1872 = vld [vmem:[#allocation3 + $0xf8] sm:$0xff]
        %v1873 = vadd.f32 %v1841, %v1683
        %v1874 = vadd.f32 %v1842, %v1688
        %v1875 = vadd.f32 %v1843, %v1693
        %v1876 = vadd.f32 %v1844, %v1698
        %v1877 = vadd.f32 %v1845, %v1703
        %v1878 = vadd.f32 %v1846, %v1708
        %v1879 = vadd.f32 %v1847, %v1713
        %v1880 = vadd.f32 %v1848, %v1718
        %v1881 = vadd.f32 %v1849, %v1723
        %v1882 = vadd.f32 %v1850, %v1728
        %v1883 = vadd.f32 %v1851, %v1733
        %v1884 = vadd.f32 %v1852, %v1738
        %v1885 = vadd.f32 %v1853, %v1743
        %v1886 = vadd.f32 %v1854, %v1748
        %v1887 = vadd.f32 %v1855, %v1753
        %v1888 = vadd.f32 %v1856, %v1758
        %v1889 = vadd.f32 %v1857, %v1763
        %v1890 = vadd.f32 %v1858, %v1768
        %v1891 = vadd.f32 %v1859, %v1773
        %v1892 = vadd.f32 %v1860, %v1778
        %v1893 = vadd.f32 %v1861, %v1783
        %v1894 = vadd.f32 %v1862, %v1788
        %v1895 = vadd.f32 %v1863, %v1793
        %v1896 = vadd.f32 %v1864, %v1798
        %v1897 = vadd.f32 %v1865, %v1803
        %v1898 = vadd.f32 %v1866, %v1808
        %v1899 = vadd.f32 %v1867, %v1813
        %v1900 = vadd.f32 %v1868, %v1818
        %v1901 = vadd.f32 %v1869, %v1823
        %v1902 = vadd.f32 %v1870, %v1828
        %v1903 = vadd.f32 %v1871, %v1833
        %v1904 = vadd.f32 %v1872, %v1838
        %1905 = vst [vmem:[#allocation3] sm:$0xff] %v1873
        %1906 = vst [vmem:[#allocation3 + $0x8] sm:$0xff] %v1874
        %1907 = vst [vmem:[#allocation3 + $0x10] sm:$0xff] %v1875
        %1908 = vst [vmem:[#allocation3 + $0x18] sm:$0xff] %v1876
        %1909 = vst [vmem:[#allocation3 + $0x20] sm:$0xff] %v1877
        %1910 = vst [vmem:[#allocation3 + $0x28] sm:$0xff] %v1878
        %1911 = vst [vmem:[#allocation3 + $0x30] sm:$0xff] %v1879
        %1912 = vst [vmem:[#allocation3 + $0x38] sm:$0xff] %v1880
        %1913 = vst [vmem:[#allocation3 + $0x40] sm:$0xff] %v1881
        %1914 = vst [vmem:[#allocation3 + $0x48] sm:$0xff] %v1882
        %1915 = vst [vmem:[#allocation3 + $0x50] sm:$0xff] %v1883
        %1916 = vst [vmem:[#allocation3 + $0x58] sm:$0xff] %v1884
        %1917 = vst [vmem:[#allocation3 + $0x60] sm:$0xff] %v1885
        %1918 = vst [vmem:[#allocation3 + $0x68] sm:$0xff] %v1886
        %1919 = vst [vmem:[#allocation3 + $0x70] sm:$0xff] %v1887
        %1920 = vst [vmem:[#allocation3 + $0x78] sm:$0xff] %v1888
        %1921 = vst [vmem:[#allocation3 + $0x80] sm:$0xff] %v1889
        %1922 = vst [vmem:[#allocation3 + $0x88] sm:$0xff] %v1890
        %1923 = vst [vmem:[#allocation3 + $0x90] sm:$0xff] %v1891
        %1924 = vst [vmem:[#allocation3 + $0x98] sm:$0xff] %v1892
        %1925 = vst [vmem:[#allocation3 + $0xa0] sm:$0xff] %v1893
        %1926 = vst [vmem:[#allocation3 + $0xa8] sm:$0xff] %v1894
        %1927 = vst [vmem:[#allocation3 + $0xb0] sm:$0xff] %v1895
        %1928 = vst [vmem:[#allocation3 + $0xb8] sm:$0xff] %v1896
        %1929 = vst [vmem:[#allocation3 + $0xc0] sm:$0xff] %v1897
        %1930 = vst [vmem:[#allocation3 + $0xc8] sm:$0xff] %v1898
        %1931 = vst [vmem:[#allocation3 + $0xd0] sm:$0xff] %v1899
        %1932 = vst [vmem:[#allocation3 + $0xd8] sm:$0xff] %v1900
        %1933 = vst [vmem:[#allocation3 + $0xe0] sm:$0xff] %v1901
        %1934 = vst [vmem:[#allocation3 + $0xe8] sm:$0xff] %v1902
        %1935 = vst [vmem:[#allocation3 + $0xf0] sm:$0xff] %v1903
        %1936 = vst [vmem:[#allocation3 + $0xf8] sm:$0xff] %v1904
        %v1937 = vld [vmem:[#allocation2 + $0x17] sm:$0xff]
        %v1938 = vld [vmem:[#allocation2 + $0x1f] sm:$0xff]
        %v1939 = vld [vmem:[#allocation2 + $0x27] sm:$0xff]
        %v1940 = vld [vmem:[#allocation2 + $0x2f] sm:$0xff]
        %v1941 = vld [vmem:[#allocation2 + $0x37] sm:$0xff]
        %v1942 = vld [vmem:[#allocation2 + $0x3f] sm:$0xff]
        %v1943 = vld [vmem:[#allocation2 + $0x47] sm:$0xff]
        %v1944 = vld [vmem:[#allocation2 + $0x4f] sm:$0xff]
        %v1945 = vld [vmem:[#allocation2 + $0x57] sm:$0xff]
        %v1946 = vld [vmem:[#allocation2 + $0x5f] sm:$0xff]
        %v1947 = vld [vmem:[#allocation2 + $0x67] sm:$0xff]
        %v1948 = vld [vmem:[#allocation2 + $0x6f] sm:$0xff]
        %v1949 = vld [vmem:[#allocation2 + $0x77] sm:$0xff]
        %v1950 = vld [vmem:[#allocation2 + $0x7f] sm:$0xff]
        %v1951 = vld [vmem:[#allocation2 + $0x87] sm:$0xff]
        %v1952 = vld [vmem:[#allocation2 + $0x8f] sm:$0xff]
        %v1953 = vld [vmem:[#allocation2 + $0x97] sm:$0xff]
        %v1954 = vld [vmem:[#allocation2 + $0x9f] sm:$0xff]
        %v1955 = vld [vmem:[#allocation2 + $0xa7] sm:$0xff]
        %v1956 = vld [vmem:[#allocation2 + $0xaf] sm:$0xff]
        %v1957 = vld [vmem:[#allocation2 + $0xb7] sm:$0xff]
        %v1958 = vld [vmem:[#allocation2 + $0xbf] sm:$0xff]
        %v1959 = vld [vmem:[#allocation2 + $0xc7] sm:$0xff]
        %v1960 = vld [vmem:[#allocation2 + $0xcf] sm:$0xff]
        %v1961 = vld [vmem:[#allocation2 + $0xd7] sm:$0xff]
        %v1962 = vld [vmem:[#allocation2 + $0xdf] sm:$0xff]
        %v1963 = vld [vmem:[#allocation2 + $0xe7] sm:$0xff]
        %v1964 = vld [vmem:[#allocation2 + $0xef] sm:$0xff]
        %v1965 = vld [vmem:[#allocation2 + $0xf7] sm:$0xff]
        %v1966 = vld [vmem:[#allocation2 + $0xff] sm:$0xff]
        %v1967 = vld [vmem:[#allocation2 + $0x107] sm:$0xff]
        %v1968 = vld [vmem:[#allocation2 + $0x10f] sm:$0xff]
        %v1969 = vsel %vm694, %v1937, 0.0
        %v1970 = vsel %vm695, %v1938, 0.0
        %v1971 = vsel %vm696, %v1939, 0.0
        %v1972 = vsel %vm697, %v1940, 0.0
        %v1973 = vsel %vm698, %v1941, 0.0
        %v1974 = vsel %vm699, %v1942, 0.0
        %v1975 = vsel %vm700, %v1943, 0.0
        %v1976 = vsel %vm701, %v1944, 0.0
        %v1977 = vsel %vm702, %v1945, 0.0
        %v1978 = vsel %vm703, %v1946, 0.0
        %v1979 = vsel %vm704, %v1947, 0.0
        %v1980 = vsel %vm705, %v1948, 0.0
        %v1981 = vsel %vm706, %v1949, 0.0
        %v1982 = vsel %vm707, %v1950, 0.0
        %v1983 = vsel %vm708, %v1951, 0.0
        %v1984 = vsel %vm709, %v1952, 0.0
        %v1985 = vsel %vm710, %v1953, 0.0
        %v1986 = vsel %vm711, %v1954, 0.0
        %v1987 = vsel %vm712, %v1955, 0.0
        %v1988 = vsel %vm713, %v1956, 0.0
        %v1989 = vsel %vm714, %v1957, 0.0
        %v1990 = vsel %vm715, %v1958, 0.0
        %v1991 = vsel %vm716, %v1959, 0.0
        %v1992 = vsel %vm717, %v1960, 0.0
        %v1993 = vsel %vm718, %v1961, 0.0
        %v1994 = vsel %vm719, %v1962, 0.0
        %v1995 = vsel %vm720, %v1963, 0.0
        %v1996 = vsel %vm721, %v1964, 0.0
        %v1997 = vsel %vm722, %v1965, 0.0
        %v1998 = vsel %vm723, %v1966, 0.0
        %v1999 = vsel %vm724, %v1967, 0.0
        %v2000 = vsel %vm725, %v1968, 0.0
        %s2001 = scalar_lea.vmem [#allocation7], 384
        %v2002 = vld [vmem:[%s2001] sm:$0xff]
        %v2003 = vld [vmem:[%s2001 + $0x8] sm:$0xff]
        %v2004 = vld [vmem:[%s2001 + $0x10] sm:$0xff]
        %v2005 = vld [vmem:[%s2001 + $0x18] sm:$0xff]
        %v2006 = vld [vmem:[%s2001 + $0x20] sm:$0xff]
        %v2007 = vld [vmem:[%s2001 + $0x28] sm:$0xff]
        %v2008 = vld [vmem:[%s2001 + $0x30] sm:$0xff]
        %v2009 = vld [vmem:[%s2001 + $0x38] sm:$0xff]
        %v2010 = vld [vmem:[%s2001 + $0x40] sm:$0xff]
        %v2011 = vld [vmem:[%s2001 + $0x48] sm:$0xff]
        %v2012 = vld [vmem:[%s2001 + $0x50] sm:$0xff]
        %v2013 = vld [vmem:[%s2001 + $0x58] sm:$0xff]
        %v2014 = vld [vmem:[%s2001 + $0x60] sm:$0xff]
        %v2015 = vld [vmem:[%s2001 + $0x68] sm:$0xff]
        %v2016 = vld [vmem:[%s2001 + $0x70] sm:$0xff]
        %v2017 = vld [vmem:[%s2001 + $0x78] sm:$0xff]
        %2018 = vmatprep.subr.mxu0 0.0
        %2019 = vmatpush1.msra.mxu0 %v2002
        %2020 = vmatprep.subr.mxu0 0.0
        %2021 = vmatpush1.msra.mxu0 %v2003
        %2022 = vmatprep.subr.mxu0 0.0
        %2023 = vmatpush1.msra.mxu0 %v2004
        %2024 = vmatprep.subr.mxu0 0.0
        %2025 = vmatpush1.msra.mxu0 %v2005
        %2026 = vmatprep.subr.mxu0 0.0
        %2027 = vmatpush1.msra.mxu0 %v2006
        %2028 = vmatprep.subr.mxu0 0.0
        %2029 = vmatpush1.msra.mxu0 %v2007
        %2030 = vmatprep.subr.mxu0 0.0
        %2031 = vmatpush1.msra.mxu0 %v2008
        %2032 = vmatprep.subr.mxu0 0.0
        %2033 = vmatpush1.msra.mxu0 %v2009
        %2034 = vmatprep.subr.mxu0 0.0
        %2035 = vmatpush1.msra.mxu0 %v2010
        %2036 = vmatprep.subr.mxu0 0.0
        %2037 = vmatpush1.msra.mxu0 %v2011
        %2038 = vmatprep.subr.mxu0 0.0
        %2039 = vmatpush1.msra.mxu0 %v2012
        %2040 = vmatprep.subr.mxu0 0.0
        %2041 = vmatpush1.msra.mxu0 %v2013
        %2042 = vmatprep.subr.mxu0 0.0
        %2043 = vmatpush1.msra.mxu0 %v2014
        %2044 = vmatprep.subr.mxu0 0.0
        %2045 = vmatpush1.msra.mxu0 %v2015
        %2046 = vmatprep.subr.mxu0 0.0
        %2047 = vmatpush1.msra.mxu0 %v2016
        %2048 = vmatprep.subr.mxu0 0.0
        %2049 = vmatpush1.msra.mxu0 %v2017
        %2050 = vmatprep.subr.mxu0 0.0
        %2051 = vmatpush1.msra.mxu0 0.0
        %2052 = vmatprep.subr.mxu0 0.0
        %2053 = vmatpush1.msra.mxu0 0.0
        %2054 = vmatprep.subr.mxu0 0.0
        %2055 = vmatpush1.msra.mxu0 0.0
        %2056 = vmatprep.subr.mxu0 0.0
        %2057 = vmatpush1.msra.mxu0 0.0
        %2058 = vmatprep.subr.mxu0 0.0
        %2059 = vmatpush1.msra.mxu0 0.0
        %2060 = vmatprep.subr.mxu0 0.0
        %2061 = vmatpush1.msra.mxu0 0.0
        %2062 = vmatprep.subr.mxu0 0.0
        %2063 = vmatpush1.msra.mxu0 0.0
        %2064 = vmatprep.subr.mxu0 0.0
        %2065 = vmatpush1.msra.mxu0 0.0
        %2066 = vmatprep.subr.mxu0 0.0
        %2067 = vmatpush1.msra.mxu0 0.0
        %2068 = vmatprep.subr.mxu0 0.0
        %2069 = vmatpush1.msra.mxu0 0.0
        %2070 = vmatprep.subr.mxu0 0.0
        %2071 = vmatpush1.msra.mxu0 0.0
        %2072 = vmatprep.subr.mxu0 0.0
        %2073 = vmatpush1.msra.mxu0 0.0
        %2074 = vmatprep.subr.mxu0 0.0
        %2075 = vmatpush1.msra.mxu0 0.0
        %2076 = vmatprep.subr.mxu0 0.0
        %2077 = vmatpush1.msra.mxu0 0.0
        %2078 = vmatprep.subr.mxu0 0.0
        %2079 = vmatpush1.msra.mxu0 0.0
        %2080 = vmatprep.subr.mxu0 0.0
        %2081 = vmatpush1.msra.mxu0 0.0
        %2082 = vmatprep.mubr.f32.mxu0 0.0
        %2083 = vmatmul.mubr.f32.gmra.mrb[0].mxu0 %v1969
        %v2084 = vpop.f32.mrb[0].mxu0
        %v2085 = vadd.f32 0.0, %v2084
        %v2086 = vpop.f32.mrb[0].mxu0
        %2087 = vmatprep.mubr.f32.mxu0 0.0
        %2088 = vmatmul.mubr.f32.gmra.mrb[0].mxu0 %v1970
        %v2089 = vpop.f32.mrb[0].mxu0
        %v2090 = vadd.f32 0.0, %v2089
        %v2091 = vpop.f32.mrb[0].mxu0
        %2092 = vmatprep.mubr.f32.mxu0 0.0
        %2093 = vmatmul.mubr.f32.gmra.mrb[0].mxu0 %v1971
        %v2094 = vpop.f32.mrb[0].mxu0
        %v2095 = vadd.f32 0.0, %v2094
        %v2096 = vpop.f32.mrb[0].mxu0
        %2097 = vmatprep.mubr.f32.mxu0 0.0
        %2098 = vmatmul.mubr.f32.gmra.mrb[0].mxu0 %v1972
        %v2099 = vpop.f32.mrb[0].mxu0
        %v2100 = vadd.f32 0.0, %v2099
        %v2101 = vpop.f32.mrb[0].mxu0
        %2102 = vmatprep.mubr.f32.mxu0 0.0
        %2103 = vmatmul.mubr.f32.gmra.mrb[0].mxu0 %v1973
        %v2104 = vpop.f32.mrb[0].mxu0
        %v2105 = vadd.f32 0.0, %v2104
        %v2106 = vpop.f32.mrb[0].mxu0
        %2107 = vmatprep.mubr.f32.mxu0 0.0
        %2108 = vmatmul.mubr.f32.gmra.mrb[0].mxu0 %v1974
        %v2109 = vpop.f32.mrb[0].mxu0
        %v2110 = vadd.f32 0.0, %v2109
        %v2111 = vpop.f32.mrb[0].mxu0
        %2112 = vmatprep.mubr.f32.mxu0 0.0
        %2113 = vmatmul.mubr.f32.gmra.mrb[0].mxu0 %v1975
        %v2114 = vpop.f32.mrb[0].mxu0
        %v2115 = vadd.f32 0.0, %v2114
        %v2116 = vpop.f32.mrb[0].mxu0
        %2117 = vmatprep.mubr.f32.mxu0 0.0
        %2118 = vmatmul.mubr.f32.gmra.mrb[0].mxu0 %v1976
        %v2119 = vpop.f32.mrb[0].mxu0
        %v2120 = vadd.f32 0.0, %v2119
        %v2121 = vpop.f32.mrb[0].mxu0
        %2122 = vmatprep.mubr.f32.mxu0 0.0
        %2123 = vmatmul.mubr.f32.gmra.mrb[0].mxu0 %v1977
        %v2124 = vpop.f32.mrb[0].mxu0
        %v2125 = vadd.f32 0.0, %v2124
        %v2126 = vpop.f32.mrb[0].mxu0
        %2127 = vmatprep.mubr.f32.mxu0 0.0
        %2128 = vmatmul.mubr.f32.gmra.mrb[0].mxu0 %v1978
        %v2129 = vpop.f32.mrb[0].mxu0
        %v2130 = vadd.f32 0.0, %v2129
        %v2131 = vpop.f32.mrb[0].mxu0
        %2132 = vmatprep.mubr.f32.mxu0 0.0
        %2133 = vmatmul.mubr.f32.gmra.mrb[0].mxu0 %v1979
        %v2134 = vpop.f32.mrb[0].mxu0
        %v2135 = vadd.f32 0.0, %v2134
        %v2136 = vpop.f32.mrb[0].mxu0
        %2137 = vmatprep.mubr.f32.mxu0 0.0
        %2138 = vmatmul.mubr.f32.gmra.mrb[0].mxu0 %v1980
        %v2139 = vpop.f32.mrb[0].mxu0
        %v2140 = vadd.f32 0.0, %v2139
        %v2141 = vpop.f32.mrb[0].mxu0
        %2142 = vmatprep.mubr.f32.mxu0 0.0
        %2143 = vmatmul.mubr.f32.gmra.mrb[0].mxu0 %v1981
        %v2144 = vpop.f32.mrb[0].mxu0
        %v2145 = vadd.f32 0.0, %v2144
        %v2146 = vpop.f32.mrb[0].mxu0
        %2147 = vmatprep.mubr.f32.mxu0 0.0
        %2148 = vmatmul.mubr.f32.gmra.mrb[0].mxu0 %v1982
        %v2149 = vpop.f32.mrb[0].mxu0
        %v2150 = vadd.f32 0.0, %v2149
        %v2151 = vpop.f32.mrb[0].mxu0
        %2152 = vmatprep.mubr.f32.mxu0 0.0
        %2153 = vmatmul.mubr.f32.gmra.mrb[0].mxu0 %v1983
        %v2154 = vpop.f32.mrb[0].mxu0
        %v2155 = vadd.f32 0.0, %v2154
        %v2156 = vpop.f32.mrb[0].mxu0
        %2157 = vmatprep.mubr.f32.mxu0 0.0
        %2158 = vmatmul.mubr.f32.gmra.mrb[0].mxu0 %v1984
        %v2159 = vpop.f32.mrb[0].mxu0
        %v2160 = vadd.f32 0.0, %v2159
        %v2161 = vpop.f32.mrb[0].mxu0
        %2162 = vmatprep.mubr.f32.mxu0 0.0
        %2163 = vmatmul.mubr.f32.gmra.mrb[0].mxu0 %v1985
        %v2164 = vpop.f32.mrb[0].mxu0
        %v2165 = vadd.f32 0.0, %v2164
        %v2166 = vpop.f32.mrb[0].mxu0
        %2167 = vmatprep.mubr.f32.mxu0 0.0
        %2168 = vmatmul.mubr.f32.gmra.mrb[0].mxu0 %v1986
        %v2169 = vpop.f32.mrb[0].mxu0
        %v2170 = vadd.f32 0.0, %v2169
        %v2171 = vpop.f32.mrb[0].mxu0
        %2172 = vmatprep.mubr.f32.mxu0 0.0
        %2173 = vmatmul.mubr.f32.gmra.mrb[0].mxu0 %v1987
        %v2174 = vpop.f32.mrb[0].mxu0
        %v2175 = vadd.f32 0.0, %v2174
        %v2176 = vpop.f32.mrb[0].mxu0
        %2177 = vmatprep.mubr.f32.mxu0 0.0
        %2178 = vmatmul.mubr.f32.gmra.mrb[0].mxu0 %v1988
        %v2179 = vpop.f32.mrb[0].mxu0
        %v2180 = vadd.f32 0.0, %v2179
        %v2181 = vpop.f32.mrb[0].mxu0
        %2182 = vmatprep.mubr.f32.mxu0 0.0
        %2183 = vmatmul.mubr.f32.gmra.mrb[0].mxu0 %v1989
        %v2184 = vpop.f32.mrb[0].mxu0
        %v2185 = vadd.f32 0.0, %v2184
        %v2186 = vpop.f32.mrb[0].mxu0
        %2187 = vmatprep.mubr.f32.mxu0 0.0
        %2188 = vmatmul.mubr.f32.gmra.mrb[0].mxu0 %v1990
        %v2189 = vpop.f32.mrb[0].mxu0
        %v2190 = vadd.f32 0.0, %v2189
        %v2191 = vpop.f32.mrb[0].mxu0
        %2192 = vmatprep.mubr.f32.mxu0 0.0
        %2193 = vmatmul.mubr.f32.gmra.mrb[0].mxu0 %v1991
        %v2194 = vpop.f32.mrb[0].mxu0
        %v2195 = vadd.f32 0.0, %v2194
        %v2196 = vpop.f32.mrb[0].mxu0
        %2197 = vmatprep.mubr.f32.mxu0 0.0
        %2198 = vmatmul.mubr.f32.gmra.mrb[0].mxu0 %v1992
        %v2199 = vpop.f32.mrb[0].mxu0
        %v2200 = vadd.f32 0.0, %v2199
        %v2201 = vpop.f32.mrb[0].mxu0
        %2202 = vmatprep.mubr.f32.mxu0 0.0
        %2203 = vmatmul.mubr.f32.gmra.mrb[0].mxu0 %v1993
        %v2204 = vpop.f32.mrb[0].mxu0
        %v2205 = vadd.f32 0.0, %v2204
        %v2206 = vpop.f32.mrb[0].mxu0
        %2207 = vmatprep.mubr.f32.mxu0 0.0
        %2208 = vmatmul.mubr.f32.gmra.mrb[0].mxu0 %v1994
        %v2209 = vpop.f32.mrb[0].mxu0
        %v2210 = vadd.f32 0.0, %v2209
        %v2211 = vpop.f32.mrb[0].mxu0
        %2212 = vmatprep.mubr.f32.mxu0 0.0
        %2213 = vmatmul.mubr.f32.gmra.mrb[0].mxu0 %v1995
        %v2214 = vpop.f32.mrb[0].mxu0
        %v2215 = vadd.f32 0.0, %v2214
        %v2216 = vpop.f32.mrb[0].mxu0
        %2217 = vmatprep.mubr.f32.mxu0 0.0
        %2218 = vmatmul.mubr.f32.gmra.mrb[0].mxu0 %v1996
        %v2219 = vpop.f32.mrb[0].mxu0
        %v2220 = vadd.f32 0.0, %v2219
        %v2221 = vpop.f32.mrb[0].mxu0
        %2222 = vmatprep.mubr.f32.mxu0 0.0
        %2223 = vmatmul.mubr.f32.gmra.mrb[0].mxu0 %v1997
        %v2224 = vpop.f32.mrb[0].mxu0
        %v2225 = vadd.f32 0.0, %v2224
        %v2226 = vpop.f32.mrb[0].mxu0
        %2227 = vmatprep.mubr.f32.mxu0 0.0
        %2228 = vmatmul.mubr.f32.gmra.mrb[0].mxu0 %v1998
        %v2229 = vpop.f32.mrb[0].mxu0
        %v2230 = vadd.f32 0.0, %v2229
        %v2231 = vpop.f32.mrb[0].mxu0
        %2232 = vmatprep.mubr.f32.mxu0 0.0
        %2233 = vmatmul.mubr.f32.gmra.mrb[0].mxu0 %v1999
        %v2234 = vpop.f32.mrb[0].mxu0
        %v2235 = vadd.f32 0.0, %v2234
        %v2236 = vpop.f32.mrb[0].mxu0
        %2237 = vmatprep.mubr.f32.mxu0 0.0
        %2238 = vmatmul.mubr.f32.gmra.mrb[0].mxu0 %v2000
        %v2239 = vpop.f32.mrb[0].mxu0
        %v2240 = vadd.f32 0.0, %v2239
        %v2241 = vpop.f32.mrb[0].mxu0
        %2242 = vdwg.mxu0
        %v2243 = vld [vmem:[#allocation3] sm:$0xff]
        %v2244 = vld [vmem:[#allocation3 + $0x8] sm:$0xff]
        %v2245 = vld [vmem:[#allocation3 + $0x10] sm:$0xff]
        %v2246 = vld [vmem:[#allocation3 + $0x18] sm:$0xff]
        %v2247 = vld [vmem:[#allocation3 + $0x20] sm:$0xff]
        %v2248 = vld [vmem:[#allocation3 + $0x28] sm:$0xff]
        %v2249 = vld [vmem:[#allocation3 + $0x30] sm:$0xff]
        %v2250 = vld [vmem:[#allocation3 + $0x38] sm:$0xff]
        %v2251 = vld [vmem:[#allocation3 + $0x40] sm:$0xff]
        %v2252 = vld [vmem:[#allocation3 + $0x48] sm:$0xff]
        %v2253 = vld [vmem:[#allocation3 + $0x50] sm:$0xff]
        %v2254 = vld [vmem:[#allocation3 + $0x58] sm:$0xff]
        %v2255 = vld [vmem:[#allocation3 + $0x60] sm:$0xff]
        %v2256 = vld [vmem:[#allocation3 + $0x68] sm:$0xff]
        %v2257 = vld [vmem:[#allocation3 + $0x70] sm:$0xff]
        %v2258 = vld [vmem:[#allocation3 + $0x78] sm:$0xff]
        %v2259 = vld [vmem:[#allocation3 + $0x80] sm:$0xff]
        %v2260 = vld [vmem:[#allocation3 + $0x88] sm:$0xff]
        %v2261 = vld [vmem:[#allocation3 + $0x90] sm:$0xff]
        %v2262 = vld [vmem:[#allocation3 + $0x98] sm:$0xff]
        %v2263 = vld [vmem:[#allocation3 + $0xa0] sm:$0xff]
        %v2264 = vld [vmem:[#allocation3 + $0xa8] sm:$0xff]
        %v2265 = vld [vmem:[#allocation3 + $0xb0] sm:$0xff]
        %v2266 = vld [vmem:[#allocation3 + $0xb8] sm:$0xff]
        %v2267 = vld [vmem:[#allocation3 + $0xc0] sm:$0xff]
        %v2268 = vld [vmem:[#allocation3 + $0xc8] sm:$0xff]
        %v2269 = vld [vmem:[#allocation3 + $0xd0] sm:$0xff]
        %v2270 = vld [vmem:[#allocation3 + $0xd8] sm:$0xff]
        %v2271 = vld [vmem:[#allocation3 + $0xe0] sm:$0xff]
        %v2272 = vld [vmem:[#allocation3 + $0xe8] sm:$0xff]
        %v2273 = vld [vmem:[#allocation3 + $0xf0] sm:$0xff]
        %v2274 = vld [vmem:[#allocation3 + $0xf8] sm:$0xff]
        %v2275 = vadd.f32 %v2243, %v2085
        %v2276 = vadd.f32 %v2244, %v2090
        %v2277 = vadd.f32 %v2245, %v2095
        %v2278 = vadd.f32 %v2246, %v2100
        %v2279 = vadd.f32 %v2247, %v2105
        %v2280 = vadd.f32 %v2248, %v2110
        %v2281 = vadd.f32 %v2249, %v2115
        %v2282 = vadd.f32 %v2250, %v2120
        %v2283 = vadd.f32 %v2251, %v2125
        %v2284 = vadd.f32 %v2252, %v2130
        %v2285 = vadd.f32 %v2253, %v2135
        %v2286 = vadd.f32 %v2254, %v2140
        %v2287 = vadd.f32 %v2255, %v2145
        %v2288 = vadd.f32 %v2256, %v2150
        %v2289 = vadd.f32 %v2257, %v2155
        %v2290 = vadd.f32 %v2258, %v2160
        %v2291 = vadd.f32 %v2259, %v2165
        %v2292 = vadd.f32 %v2260, %v2170
        %v2293 = vadd.f32 %v2261, %v2175
        %v2294 = vadd.f32 %v2262, %v2180
        %v2295 = vadd.f32 %v2263, %v2185
        %v2296 = vadd.f32 %v2264, %v2190
        %v2297 = vadd.f32 %v2265, %v2195
        %v2298 = vadd.f32 %v2266, %v2200
        %v2299 = vadd.f32 %v2267, %v2205
        %v2300 = vadd.f32 %v2268, %v2210
        %v2301 = vadd.f32 %v2269, %v2215
        %v2302 = vadd.f32 %v2270, %v2220
        %v2303 = vadd.f32 %v2271, %v2225
        %v2304 = vadd.f32 %v2272, %v2230
        %v2305 = vadd.f32 %v2273, %v2235
        %v2306 = vadd.f32 %v2274, %v2240
        %2307 = vst [vmem:[#allocation3] sm:$0xff] %v2275
        %2308 = vst [vmem:[#allocation3 + $0x8] sm:$0xff] %v2276
        %2309 = vst [vmem:[#allocation3 + $0x10] sm:$0xff] %v2277
        %2310 = vst [vmem:[#allocation3 + $0x18] sm:$0xff] %v2278
        %2311 = vst [vmem:[#allocation3 + $0x20] sm:$0xff] %v2279
        %2312 = vst [vmem:[#allocation3 + $0x28] sm:$0xff] %v2280
        %2313 = vst [vmem:[#allocation3 + $0x30] sm:$0xff] %v2281
        %2314 = vst [vmem:[#allocation3 + $0x38] sm:$0xff] %v2282
        %2315 = vst [vmem:[#allocation3 + $0x40] sm:$0xff] %v2283
        %2316 = vst [vmem:[#allocation3 + $0x48] sm:$0xff] %v2284
        %2317 = vst [vmem:[#allocation3 + $0x50] sm:$0xff] %v2285
        %2318 = vst [vmem:[#allocation3 + $0x58] sm:$0xff] %v2286
        %2319 = vst [vmem:[#allocation3 + $0x60] sm:$0xff] %v2287
        %2320 = vst [vmem:[#allocation3 + $0x68] sm:$0xff] %v2288
        %2321 = vst [vmem:[#allocation3 + $0x70] sm:$0xff] %v2289
        %2322 = vst [vmem:[#allocation3 + $0x78] sm:$0xff] %v2290
        %2323 = vst [vmem:[#allocation3 + $0x80] sm:$0xff] %v2291
        %2324 = vst [vmem:[#allocation3 + $0x88] sm:$0xff] %v2292
        %2325 = vst [vmem:[#allocation3 + $0x90] sm:$0xff] %v2293
        %2326 = vst [vmem:[#allocation3 + $0x98] sm:$0xff] %v2294
        %2327 = vst [vmem:[#allocation3 + $0xa0] sm:$0xff] %v2295
        %2328 = vst [vmem:[#allocation3 + $0xa8] sm:$0xff] %v2296
        %2329 = vst [vmem:[#allocation3 + $0xb0] sm:$0xff] %v2297
        %2330 = vst [vmem:[#allocation3 + $0xb8] sm:$0xff] %v2298
        %2331 = vst [vmem:[#allocation3 + $0xc0] sm:$0xff] %v2299
        %2332 = vst [vmem:[#allocation3 + $0xc8] sm:$0xff] %v2300
        %2333 = vst [vmem:[#allocation3 + $0xd0] sm:$0xff] %v2301
        %2334 = vst [vmem:[#allocation3 + $0xd8] sm:$0xff] %v2302
        %2335 = vst [vmem:[#allocation3 + $0xe0] sm:$0xff] %v2303
        %2336 = vst [vmem:[#allocation3 + $0xe8] sm:$0xff] %v2304
        %2337 = vst [vmem:[#allocation3 + $0xf0] sm:$0xff] %v2305
        %2338 = vst [vmem:[#allocation3 + $0xf8] sm:$0xff] %v2306
        %v2339 = vld [vmem:[#allocation2 + $0x18] sm:$0xff]
        %v2340 = vld [vmem:[#allocation2 + $0x20] sm:$0xff]
        %v2341 = vld [vmem:[#allocation2 + $0x28] sm:$0xff]
        %v2342 = vld [vmem:[#allocation2 + $0x30] sm:$0xff]
        %v2343 = vld [vmem:[#allocation2 + $0x38] sm:$0xff]
        %v2344 = vld [vmem:[#allocation2 + $0x40] sm:$0xff]
        %v2345 = vld [vmem:[#allocation2 + $0x48] sm:$0xff]
        %v2346 = vld [vmem:[#allocation2 + $0x50] sm:$0xff]
        %v2347 = vld [vmem:[#allocation2 + $0x58] sm:$0xff]
        %v2348 = vld [vmem:[#allocation2 + $0x60] sm:$0xff]
        %v2349 = vld [vmem:[#allocation2 + $0x68] sm:$0xff]
        %v2350 = vld [vmem:[#allocation2 + $0x70] sm:$0xff]
        %v2351 = vld [vmem:[#allocation2 + $0x78] sm:$0xff]
        %v2352 = vld [vmem:[#allocation2 + $0x80] sm:$0xff]
        %v2353 = vld [vmem:[#allocation2 + $0x88] sm:$0xff]
        %v2354 = vld [vmem:[#allocation2 + $0x90] sm:$0xff]
        %v2355 = vld [vmem:[#allocation2 + $0x98] sm:$0xff]
        %v2356 = vld [vmem:[#allocation2 + $0xa0] sm:$0xff]
        %v2357 = vld [vmem:[#allocation2 + $0xa8] sm:$0xff]
        %v2358 = vld [vmem:[#allocation2 + $0xb0] sm:$0xff]
        %v2359 = vld [vmem:[#allocation2 + $0xb8] sm:$0xff]
        %v2360 = vld [vmem:[#allocation2 + $0xc0] sm:$0xff]
        %v2361 = vld [vmem:[#allocation2 + $0xc8] sm:$0xff]
        %v2362 = vld [vmem:[#allocation2 + $0xd0] sm:$0xff]
        %v2363 = vld [vmem:[#allocation2 + $0xd8] sm:$0xff]
        %v2364 = vld [vmem:[#allocation2 + $0xe0] sm:$0xff]
        %v2365 = vld [vmem:[#allocation2 + $0xe8] sm:$0xff]
        %v2366 = vld [vmem:[#allocation2 + $0xf0] sm:$0xff]
        %v2367 = vld [vmem:[#allocation2 + $0xf8] sm:$0xff]
        %v2368 = vld [vmem:[#allocation2 + $0x100] sm:$0xff]
        %v2369 = vld [vmem:[#allocation2 + $0x108] sm:$0xff]
        %v2370 = vld [vmem:[#allocation2 + $0x110] sm:$0xff]
        %s2371 = scalar_lea.vmem [#allocation7], 512
        %v2372 = vld [vmem:[%s2371] sm:$0xff]
        %v2373 = vld [vmem:[%s2371 + $0x8] sm:$0xff]
        %v2374 = vld [vmem:[%s2371 + $0x10] sm:$0xff]
        %v2375 = vld [vmem:[%s2371 + $0x18] sm:$0xff]
        %v2376 = vld [vmem:[%s2371 + $0x20] sm:$0xff]
        %v2377 = vld [vmem:[%s2371 + $0x28] sm:$0xff]
        %v2378 = vld [vmem:[%s2371 + $0x30] sm:$0xff]
        %v2379 = vld [vmem:[%s2371 + $0x38] sm:$0xff]
        %v2380 = vld [vmem:[%s2371 + $0x40] sm:$0xff]
        %v2381 = vld [vmem:[%s2371 + $0x48] sm:$0xff]
        %v2382 = vld [vmem:[%s2371 + $0x50] sm:$0xff]
        %v2383 = vld [vmem:[%s2371 + $0x58] sm:$0xff]
        %v2384 = vld [vmem:[%s2371 + $0x60] sm:$0xff]
        %v2385 = vld [vmem:[%s2371 + $0x68] sm:$0xff]
        %v2386 = vld [vmem:[%s2371 + $0x70] sm:$0xff]
        %v2387 = vld [vmem:[%s2371 + $0x78] sm:$0xff]
        %2388 = vmatprep.subr.mxu0 0.0
        %2389 = vmatpush1.msra.mxu0 %v2372
        %2390 = vmatprep.subr.mxu0 0.0
        %2391 = vmatpush1.msra.mxu0 %v2373
        %2392 = vmatprep.subr.mxu0 0.0
        %2393 = vmatpush1.msra.mxu0 %v2374
        %2394 = vmatprep.subr.mxu0 0.0
        %2395 = vmatpush1.msra.mxu0 %v2375
        %2396 = vmatprep.subr.mxu0 0.0
        %2397 = vmatpush1.msra.mxu0 %v2376
        %2398 = vmatprep.subr.mxu0 0.0
        %2399 = vmatpush1.msra.mxu0 %v2377
        %2400 = vmatprep.subr.mxu0 0.0
        %2401 = vmatpush1.msra.mxu0 %v2378
        %2402 = vmatprep.subr.mxu0 0.0
        %2403 = vmatpush1.msra.mxu0 %v2379
        %2404 = vmatprep.subr.mxu0 0.0
        %2405 = vmatpush1.msra.mxu0 %v2380
        %2406 = vmatprep.subr.mxu0 0.0
        %2407 = vmatpush1.msra.mxu0 %v2381
        %2408 = vmatprep.subr.mxu0 0.0
        %2409 = vmatpush1.msra.mxu0 %v2382
        %2410 = vmatprep.subr.mxu0 0.0
        %2411 = vmatpush1.msra.mxu0 %v2383
        %2412 = vmatprep.subr.mxu0 0.0
        %2413 = vmatpush1.msra.mxu0 %v2384
        %2414 = vmatprep.subr.mxu0 0.0
        %2415 = vmatpush1.msra.mxu0 %v2385
        %2416 = vmatprep.subr.mxu0 0.0
        %2417 = vmatpush1.msra.mxu0 %v2386
        %2418 = vmatprep.subr.mxu0 0.0
        %2419 = vmatpush1.msra.mxu0 %v2387
        %2420 = vmatprep.subr.mxu0 0.0
        %2421 = vmatpush1.msra.mxu0 0.0
        %2422 = vmatprep.subr.mxu0 0.0
        %2423 = vmatpush1.msra.mxu0 0.0
        %2424 = vmatprep.subr.mxu0 0.0
        %2425 = vmatpush1.msra.mxu0 0.0
        %2426 = vmatprep.subr.mxu0 0.0
        %2427 = vmatpush1.msra.mxu0 0.0
        %2428 = vmatprep.subr.mxu0 0.0
        %2429 = vmatpush1.msra.mxu0 0.0
        %2430 = vmatprep.subr.mxu0 0.0
        %2431 = vmatpush1.msra.mxu0 0.0
        %2432 = vmatprep.subr.mxu0 0.0
        %2433 = vmatpush1.msra.mxu0 0.0
        %2434 = vmatprep.subr.mxu0 0.0
        %2435 = vmatpush1.msra.mxu0 0.0
        %2436 = vmatprep.subr.mxu0 0.0
        %2437 = vmatpush1.msra.mxu0 0.0
        %2438 = vmatprep.subr.mxu0 0.0
        %2439 = vmatpush1.msra.mxu0 0.0
        %2440 = vmatprep.subr.mxu0 0.0
        %2441 = vmatpush1.msra.mxu0 0.0
        %2442 = vmatprep.subr.mxu0 0.0
        %2443 = vmatpush1.msra.mxu0 0.0
        %2444 = vmatprep.subr.mxu0 0.0
        %2445 = vmatpush1.msra.mxu0 0.0
        %2446 = vmatprep.subr.mxu0 0.0
        %2447 = vmatpush1.msra.mxu0 0.0
        %2448 = vmatprep.subr.mxu0 0.0
        %2449 = vmatpush1.msra.mxu0 0.0
        %2450 = vmatprep.subr.mxu0 0.0
        %2451 = vmatpush1.msra.mxu0 0.0
        %2452 = vmatprep.mubr.f32.mxu0 0.0
        %2453 = vmatmul.mubr.f32.gmra.mrb[0].mxu0 %v2339
        %v2454 = vpop.f32.mrb[0].mxu0
        %v2455 = vadd.f32 0.0, %v2454
        %v2456 = vpop.f32.mrb[0].mxu0
        %2457 = vmatprep.mubr.f32.mxu0 0.0
        %2458 = vmatmul.mubr.f32.gmra.mrb[0].mxu0 %v2340
        %v2459 = vpop.f32.mrb[0].mxu0
        %v2460 = vadd.f32 0.0, %v2459
        %v2461 = vpop.f32.mrb[0].mxu0
        %2462 = vmatprep.mubr.f32.mxu0 0.0
        %2463 = vmatmul.mubr.f32.gmra.mrb[0].mxu0 %v2341
        %v2464 = vpop.f32.mrb[0].mxu0
        %v2465 = vadd.f32 0.0, %v2464
        %v2466 = vpop.f32.mrb[0].mxu0
        %2467 = vmatprep.mubr.f32.mxu0 0.0
        %2468 = vmatmul.mubr.f32.gmra.mrb[0].mxu0 %v2342
        %v2469 = vpop.f32.mrb[0].mxu0
        %v2470 = vadd.f32 0.0, %v2469
        %v2471 = vpop.f32.mrb[0].mxu0
        %2472 = vmatprep.mubr.f32.mxu0 0.0
        %2473 = vmatmul.mubr.f32.gmra.mrb[0].mxu0 %v2343
        %v2474 = vpop.f32.mrb[0].mxu0
        %v2475 = vadd.f32 0.0, %v2474
        %v2476 = vpop.f32.mrb[0].mxu0
        %2477 = vmatprep.mubr.f32.mxu0 0.0
        %2478 = vmatmul.mubr.f32.gmra.mrb[0].mxu0 %v2344
        %v2479 = vpop.f32.mrb[0].mxu0
        %v2480 = vadd.f32 0.0, %v2479
        %v2481 = vpop.f32.mrb[0].mxu0
        %2482 = vmatprep.mubr.f32.mxu0 0.0
        %2483 = vmatmul.mubr.f32.gmra.mrb[0].mxu0 %v2345
        %v2484 = vpop.f32.mrb[0].mxu0
        %v2485 = vadd.f32 0.0, %v2484
        %v2486 = vpop.f32.mrb[0].mxu0
        %2487 = vmatprep.mubr.f32.mxu0 0.0
        %2488 = vmatmul.mubr.f32.gmra.mrb[0].mxu0 %v2346
        %v2489 = vpop.f32.mrb[0].mxu0
        %v2490 = vadd.f32 0.0, %v2489
        %v2491 = vpop.f32.mrb[0].mxu0
        %2492 = vmatprep.mubr.f32.mxu0 0.0
        %2493 = vmatmul.mubr.f32.gmra.mrb[0].mxu0 %v2347
        %v2494 = vpop.f32.mrb[0].mxu0
        %v2495 = vadd.f32 0.0, %v2494
        %v2496 = vpop.f32.mrb[0].mxu0
        %2497 = vmatprep.mubr.f32.mxu0 0.0
        %2498 = vmatmul.mubr.f32.gmra.mrb[0].mxu0 %v2348
        %v2499 = vpop.f32.mrb[0].mxu0
        %v2500 = vadd.f32 0.0, %v2499
        %v2501 = vpop.f32.mrb[0].mxu0
        %2502 = vmatprep.mubr.f32.mxu0 0.0
        %2503 = vmatmul.mubr.f32.gmra.mrb[0].mxu0 %v2349
        %v2504 = vpop.f32.mrb[0].mxu0
        %v2505 = vadd.f32 0.0, %v2504
        %v2506 = vpop.f32.mrb[0].mxu0
        %2507 = vmatprep.mubr.f32.mxu0 0.0
        %2508 = vmatmul.mubr.f32.gmra.mrb[0].mxu0 %v2350
        %v2509 = vpop.f32.mrb[0].mxu0
        %v2510 = vadd.f32 0.0, %v2509
        %v2511 = vpop.f32.mrb[0].mxu0
        %2512 = vmatprep.mubr.f32.mxu0 0.0
        %2513 = vmatmul.mubr.f32.gmra.mrb[0].mxu0 %v2351
        %v2514 = vpop.f32.mrb[0].mxu0
        %v2515 = vadd.f32 0.0, %v2514
        %v2516 = vpop.f32.mrb[0].mxu0
        %2517 = vmatprep.mubr.f32.mxu0 0.0
        %2518 = vmatmul.mubr.f32.gmra.mrb[0].mxu0 %v2352
        %v2519 = vpop.f32.mrb[0].mxu0
        %v2520 = vadd.f32 0.0, %v2519
        %v2521 = vpop.f32.mrb[0].mxu0
        %2522 = vmatprep.mubr.f32.mxu0 0.0
        %2523 = vmatmul.mubr.f32.gmra.mrb[0].mxu0 %v2353
        %v2524 = vpop.f32.mrb[0].mxu0
        %v2525 = vadd.f32 0.0, %v2524
        %v2526 = vpop.f32.mrb[0].mxu0
        %2527 = vmatprep.mubr.f32.mxu0 0.0
        %2528 = vmatmul.mubr.f32.gmra.mrb[0].mxu0 %v2354
        %v2529 = vpop.f32.mrb[0].mxu0
        %v2530 = vadd.f32 0.0, %v2529
        %v2531 = vpop.f32.mrb[0].mxu0
        %2532 = vmatprep.mubr.f32.mxu0 0.0
        %2533 = vmatmul.mubr.f32.gmra.mrb[0].mxu0 %v2355
        %v2534 = vpop.f32.mrb[0].mxu0
        %v2535 = vadd.f32 0.0, %v2534
        %v2536 = vpop.f32.mrb[0].mxu0
        %2537 = vmatprep.mubr.f32.mxu0 0.0
        %2538 = vmatmul.mubr.f32.gmra.mrb[0].mxu0 %v2356
        %v2539 = vpop.f32.mrb[0].mxu0
        %v2540 = vadd.f32 0.0, %v2539
        %v2541 = vpop.f32.mrb[0].mxu0
        %2542 = vmatprep.mubr.f32.mxu0 0.0
        %2543 = vmatmul.mubr.f32.gmra.mrb[0].mxu0 %v2357
        %v2544 = vpop.f32.mrb[0].mxu0
        %v2545 = vadd.f32 0.0, %v2544
        %v2546 = vpop.f32.mrb[0].mxu0
        %2547 = vmatprep.mubr.f32.mxu0 0.0
        %2548 = vmatmul.mubr.f32.gmra.mrb[0].mxu0 %v2358
        %v2549 = vpop.f32.mrb[0].mxu0
        %v2550 = vadd.f32 0.0, %v2549
        %v2551 = vpop.f32.mrb[0].mxu0
        %2552 = vmatprep.mubr.f32.mxu0 0.0
        %2553 = vmatmul.mubr.f32.gmra.mrb[0].mxu0 %v2359
        %v2554 = vpop.f32.mrb[0].mxu0
        %v2555 = vadd.f32 0.0, %v2554
        %v2556 = vpop.f32.mrb[0].mxu0
        %2557 = vmatprep.mubr.f32.mxu0 0.0
        %2558 = vmatmul.mubr.f32.gmra.mrb[0].mxu0 %v2360
        %v2559 = vpop.f32.mrb[0].mxu0
        %v2560 = vadd.f32 0.0, %v2559
        %v2561 = vpop.f32.mrb[0].mxu0
        %2562 = vmatprep.mubr.f32.mxu0 0.0
        %2563 = vmatmul.mubr.f32.gmra.mrb[0].mxu0 %v2361
        %v2564 = vpop.f32.mrb[0].mxu0
        %v2565 = vadd.f32 0.0, %v2564
        %v2566 = vpop.f32.mrb[0].mxu0
        %2567 = vmatprep.mubr.f32.mxu0 0.0
        %2568 = vmatmul.mubr.f32.gmra.mrb[0].mxu0 %v2362
        %v2569 = vpop.f32.mrb[0].mxu0
        %v2570 = vadd.f32 0.0, %v2569
        %v2571 = vpop.f32.mrb[0].mxu0
        %2572 = vmatprep.mubr.f32.mxu0 0.0
        %2573 = vmatmul.mubr.f32.gmra.mrb[0].mxu0 %v2363
        %v2574 = vpop.f32.mrb[0].mxu0
        %v2575 = vadd.f32 0.0, %v2574
        %v2576 = vpop.f32.mrb[0].mxu0
        %2577 = vmatprep.mubr.f32.mxu0 0.0
        %2578 = vmatmul.mubr.f32.gmra.mrb[0].mxu0 %v2364
        %v2579 = vpop.f32.mrb[0].mxu0
        %v2580 = vadd.f32 0.0, %v2579
        %v2581 = vpop.f32.mrb[0].mxu0
        %2582 = vmatprep.mubr.f32.mxu0 0.0
        %2583 = vmatmul.mubr.f32.gmra.mrb[0].mxu0 %v2365
        %v2584 = vpop.f32.mrb[0].mxu0
        %v2585 = vadd.f32 0.0, %v2584
        %v2586 = vpop.f32.mrb[0].mxu0
        %2587 = vmatprep.mubr.f32.mxu0 0.0
        %2588 = vmatmul.mubr.f32.gmra.mrb[0].mxu0 %v2366
        %v2589 = vpop.f32.mrb[0].mxu0
        %v2590 = vadd.f32 0.0, %v2589
        %v2591 = vpop.f32.mrb[0].mxu0
        %2592 = vmatprep.mubr.f32.mxu0 0.0
        %2593 = vmatmul.mubr.f32.gmra.mrb[0].mxu0 %v2367
        %v2594 = vpop.f32.mrb[0].mxu0
        %v2595 = vadd.f32 0.0, %v2594
        %v2596 = vpop.f32.mrb[0].mxu0
        %2597 = vmatprep.mubr.f32.mxu0 0.0
        %2598 = vmatmul.mubr.f32.gmra.mrb[0].mxu0 %v2368
        %v2599 = vpop.f32.mrb[0].mxu0
        %v2600 = vadd.f32 0.0, %v2599
        %v2601 = vpop.f32.mrb[0].mxu0
        %2602 = vmatprep.mubr.f32.mxu0 0.0
        %2603 = vmatmul.mubr.f32.gmra.mrb[0].mxu0 %v2369
        %v2604 = vpop.f32.mrb[0].mxu0
        %v2605 = vadd.f32 0.0, %v2604
        %v2606 = vpop.f32.mrb[0].mxu0
        %2607 = vmatprep.mubr.f32.mxu0 0.0
        %2608 = vmatmul.mubr.f32.gmra.mrb[0].mxu0 %v2370
        %v2609 = vpop.f32.mrb[0].mxu0
        %v2610 = vadd.f32 0.0, %v2609
        %v2611 = vpop.f32.mrb[0].mxu0
        %2612 = vdwg.mxu0
        %v2613 = vld [vmem:[#allocation3] sm:$0xff]
        %v2614 = vld [vmem:[#allocation3 + $0x8] sm:$0xff]
        %v2615 = vld [vmem:[#allocation3 + $0x10] sm:$0xff]
        %v2616 = vld [vmem:[#allocation3 + $0x18] sm:$0xff]
        %v2617 = vld [vmem:[#allocation3 + $0x20] sm:$0xff]
        %v2618 = vld [vmem:[#allocation3 + $0x28] sm:$0xff]
        %v2619 = vld [vmem:[#allocation3 + $0x30] sm:$0xff]
        %v2620 = vld [vmem:[#allocation3 + $0x38] sm:$0xff]
        %v2621 = vld [vmem:[#allocation3 + $0x40] sm:$0xff]
        %v2622 = vld [vmem:[#allocation3 + $0x48] sm:$0xff]
        %v2623 = vld [vmem:[#allocation3 + $0x50] sm:$0xff]
        %v2624 = vld [vmem:[#allocation3 + $0x58] sm:$0xff]
        %v2625 = vld [vmem:[#allocation3 + $0x60] sm:$0xff]
        %v2626 = vld [vmem:[#allocation3 + $0x68] sm:$0xff]
        %v2627 = vld [vmem:[#allocation3 + $0x70] sm:$0xff]
        %v2628 = vld [vmem:[#allocation3 + $0x78] sm:$0xff]
        %v2629 = vld [vmem:[#allocation3 + $0x80] sm:$0xff]
        %v2630 = vld [vmem:[#allocation3 + $0x88] sm:$0xff]
        %v2631 = vld [vmem:[#allocation3 + $0x90] sm:$0xff]
        %v2632 = vld [vmem:[#allocation3 + $0x98] sm:$0xff]
        %v2633 = vld [vmem:[#allocation3 + $0xa0] sm:$0xff]
        %v2634 = vld [vmem:[#allocation3 + $0xa8] sm:$0xff]
        %v2635 = vld [vmem:[#allocation3 + $0xb0] sm:$0xff]
        %v2636 = vld [vmem:[#allocation3 + $0xb8] sm:$0xff]
        %v2637 = vld [vmem:[#allocation3 + $0xc0] sm:$0xff]
        %v2638 = vld [vmem:[#allocation3 + $0xc8] sm:$0xff]
        %v2639 = vld [vmem:[#allocation3 + $0xd0] sm:$0xff]
        %v2640 = vld [vmem:[#allocation3 + $0xd8] sm:$0xff]
        %v2641 = vld [vmem:[#allocation3 + $0xe0] sm:$0xff]
        %v2642 = vld [vmem:[#allocation3 + $0xe8] sm:$0xff]
        %v2643 = vld [vmem:[#allocation3 + $0xf0] sm:$0xff]
        %v2644 = vld [vmem:[#allocation3 + $0xf8] sm:$0xff]
        %v2645 = vadd.f32 %v2613, %v2455
        %v2646 = vadd.f32 %v2614, %v2460
        %v2647 = vadd.f32 %v2615, %v2465
        %v2648 = vadd.f32 %v2616, %v2470
        %v2649 = vadd.f32 %v2617, %v2475
        %v2650 = vadd.f32 %v2618, %v2480
        %v2651 = vadd.f32 %v2619, %v2485
        %v2652 = vadd.f32 %v2620, %v2490
        %v2653 = vadd.f32 %v2621, %v2495
        %v2654 = vadd.f32 %v2622, %v2500
        %v2655 = vadd.f32 %v2623, %v2505
        %v2656 = vadd.f32 %v2624, %v2510
        %v2657 = vadd.f32 %v2625, %v2515
        %v2658 = vadd.f32 %v2626, %v2520
        %v2659 = vadd.f32 %v2627, %v2525
        %v2660 = vadd.f32 %v2628, %v2530
        %v2661 = vadd.f32 %v2629, %v2535
        %v2662 = vadd.f32 %v2630, %v2540
        %v2663 = vadd.f32 %v2631, %v2545
        %v2664 = vadd.f32 %v2632, %v2550
        %v2665 = vadd.f32 %v2633, %v2555
        %v2666 = vadd.f32 %v2634, %v2560
        %v2667 = vadd.f32 %v2635, %v2565
        %v2668 = vadd.f32 %v2636, %v2570
        %v2669 = vadd.f32 %v2637, %v2575
        %v2670 = vadd.f32 %v2638, %v2580
        %v2671 = vadd.f32 %v2639, %v2585
        %v2672 = vadd.f32 %v2640, %v2590
        %v2673 = vadd.f32 %v2641, %v2595
        %v2674 = vadd.f32 %v2642, %v2600
        %v2675 = vadd.f32 %v2643, %v2605
        %v2676 = vadd.f32 %v2644, %v2610
        %2677 = vst [vmem:[#allocation3] sm:$0xff] %v2645
        %2678 = vst [vmem:[#allocation3 + $0x8] sm:$0xff] %v2646
        %2679 = vst [vmem:[#allocation3 + $0x10] sm:$0xff] %v2647
        %2680 = vst [vmem:[#allocation3 + $0x18] sm:$0xff] %v2648
        %2681 = vst [vmem:[#allocation3 + $0x20] sm:$0xff] %v2649
        %2682 = vst [vmem:[#allocation3 + $0x28] sm:$0xff] %v2650
        %2683 = vst [vmem:[#allocation3 + $0x30] sm:$0xff] %v2651
        %2684 = vst [vmem:[#allocation3 + $0x38] sm:$0xff] %v2652
        %2685 = vst [vmem:[#allocation3 + $0x40] sm:$0xff] %v2653
        %2686 = vst [vmem:[#allocation3 + $0x48] sm:$0xff] %v2654
        %2687 = vst [vmem:[#allocation3 + $0x50] sm:$0xff] %v2655
        %2688 = vst [vmem:[#allocation3 + $0x58] sm:$0xff] %v2656
        %2689 = vst [vmem:[#allocation3 + $0x60] sm:$0xff] %v2657
        %2690 = vst [vmem:[#allocation3 + $0x68] sm:$0xff] %v2658
        %2691 = vst [vmem:[#allocation3 + $0x70] sm:$0xff] %v2659
        %2692 = vst [vmem:[#allocation3 + $0x78] sm:$0xff] %v2660
        %2693 = vst [vmem:[#allocation3 + $0x80] sm:$0xff] %v2661
        %2694 = vst [vmem:[#allocation3 + $0x88] sm:$0xff] %v2662
        %2695 = vst [vmem:[#allocation3 + $0x90] sm:$0xff] %v2663
        %2696 = vst [vmem:[#allocation3 + $0x98] sm:$0xff] %v2664
        %2697 = vst [vmem:[#allocation3 + $0xa0] sm:$0xff] %v2665
        %2698 = vst [vmem:[#allocation3 + $0xa8] sm:$0xff] %v2666
        %2699 = vst [vmem:[#allocation3 + $0xb0] sm:$0xff] %v2667
        %2700 = vst [vmem:[#allocation3 + $0xb8] sm:$0xff] %v2668
        %2701 = vst [vmem:[#allocation3 + $0xc0] sm:$0xff] %v2669
        %2702 = vst [vmem:[#allocation3 + $0xc8] sm:$0xff] %v2670
        %2703 = vst [vmem:[#allocation3 + $0xd0] sm:$0xff] %v2671
        %2704 = vst [vmem:[#allocation3 + $0xd8] sm:$0xff] %v2672
        %2705 = vst [vmem:[#allocation3 + $0xe0] sm:$0xff] %v2673
        %2706 = vst [vmem:[#allocation3 + $0xe8] sm:$0xff] %v2674
        %2707 = vst [vmem:[#allocation3 + $0xf0] sm:$0xff] %v2675
        %2708 = vst [vmem:[#allocation3 + $0xf8] sm:$0xff] %v2676
        %v2709 = vld [vmem:[#allocation2 + $0x19] sm:$0xff]
        %v2710 = vld [vmem:[#allocation2 + $0x21] sm:$0xff]
        %v2711 = vld [vmem:[#allocation2 + $0x29] sm:$0xff]
        %v2712 = vld [vmem:[#allocation2 + $0x31] sm:$0xff]
        %v2713 = vld [vmem:[#allocation2 + $0x39] sm:$0xff]
        %v2714 = vld [vmem:[#allocation2 + $0x41] sm:$0xff]
        %v2715 = vld [vmem:[#allocation2 + $0x49] sm:$0xff]
        %v2716 = vld [vmem:[#allocation2 + $0x51] sm:$0xff]
        %v2717 = vld [vmem:[#allocation2 + $0x59] sm:$0xff]
        %v2718 = vld [vmem:[#allocation2 + $0x61] sm:$0xff]
        %v2719 = vld [vmem:[#allocation2 + $0x69] sm:$0xff]
        %v2720 = vld [vmem:[#allocation2 + $0x71] sm:$0xff]
        %v2721 = vld [vmem:[#allocation2 + $0x79] sm:$0xff]
        %v2722 = vld [vmem:[#allocation2 + $0x81] sm:$0xff]
        %v2723 = vld [vmem:[#allocation2 + $0x89] sm:$0xff]
        %v2724 = vld [vmem:[#allocation2 + $0x91] sm:$0xff]
        %v2725 = vld [vmem:[#allocation2 + $0x99] sm:$0xff]
        %v2726 = vld [vmem:[#allocation2 + $0xa1] sm:$0xff]
        %v2727 = vld [vmem:[#allocation2 + $0xa9] sm:$0xff]
        %v2728 = vld [vmem:[#allocation2 + $0xb1] sm:$0xff]
        %v2729 = vld [vmem:[#allocation2 + $0xb9] sm:$0xff]
        %v2730 = vld [vmem:[#allocation2 + $0xc1] sm:$0xff]
        %v2731 = vld [vmem:[#allocation2 + $0xc9] sm:$0xff]
        %v2732 = vld [vmem:[#allocation2 + $0xd1] sm:$0xff]
        %v2733 = vld [vmem:[#allocation2 + $0xd9] sm:$0xff]
        %v2734 = vld [vmem:[#allocation2 + $0xe1] sm:$0xff]
        %v2735 = vld [vmem:[#allocation2 + $0xe9] sm:$0xff]
        %v2736 = vld [vmem:[#allocation2 + $0xf1] sm:$0xff]
        %v2737 = vld [vmem:[#allocation2 + $0xf9] sm:$0xff]
        %v2738 = vld [vmem:[#allocation2 + $0x101] sm:$0xff]
        %v2739 = vld [vmem:[#allocation2 + $0x109] sm:$0xff]
        %v2740 = vld [vmem:[#allocation2 + $0x111] sm:$0xff]
        %v2741 = vsel %vm726, %v2709, 0.0
        %v2742 = vsel %vm727, %v2710, 0.0
        %v2743 = vsel %vm728, %v2711, 0.0
        %v2744 = vsel %vm729, %v2712, 0.0
        %v2745 = vsel %vm730, %v2713, 0.0
        %v2746 = vsel %vm731, %v2714, 0.0
        %v2747 = vsel %vm732, %v2715, 0.0
        %v2748 = vsel %vm733, %v2716, 0.0
        %v2749 = vsel %vm734, %v2717, 0.0
        %v2750 = vsel %vm735, %v2718, 0.0
        %v2751 = vsel %vm736, %v2719, 0.0
        %v2752 = vsel %vm737, %v2720, 0.0
        %v2753 = vsel %vm738, %v2721, 0.0
        %v2754 = vsel %vm739, %v2722, 0.0
        %v2755 = vsel %vm740, %v2723, 0.0
        %v2756 = vsel %vm741, %v2724, 0.0
        %v2757 = vsel %vm742, %v2725, 0.0
        %v2758 = vsel %vm743, %v2726, 0.0
        %v2759 = vsel %vm744, %v2727, 0.0
        %v2760 = vsel %vm745, %v2728, 0.0
        %v2761 = vsel %vm746, %v2729, 0.0
        %v2762 = vsel %vm747, %v2730, 0.0
        %v2763 = vsel %vm748, %v2731, 0.0
        %v2764 = vsel %vm749, %v2732, 0.0
        %v2765 = vsel %vm750, %v2733, 0.0
        %v2766 = vsel %vm751, %v2734, 0.0
        %v2767 = vsel %vm752, %v2735, 0.0
        %v2768 = vsel %vm753, %v2736, 0.0
        %v2769 = vsel %vm754, %v2737, 0.0
        %v2770 = vsel %vm755, %v2738, 0.0
        %v2771 = vsel %vm756, %v2739, 0.0
        %v2772 = vsel %vm757, %v2740, 0.0
        %s2773 = scalar_lea.vmem [#allocation7], 640
        %v2774 = vld [vmem:[%s2773] sm:$0xff]
        %v2775 = vld [vmem:[%s2773 + $0x8] sm:$0xff]
        %v2776 = vld [vmem:[%s2773 + $0x10] sm:$0xff]
        %v2777 = vld [vmem:[%s2773 + $0x18] sm:$0xff]
        %v2778 = vld [vmem:[%s2773 + $0x20] sm:$0xff]
        %v2779 = vld [vmem:[%s2773 + $0x28] sm:$0xff]
        %v2780 = vld [vmem:[%s2773 + $0x30] sm:$0xff]
        %v2781 = vld [vmem:[%s2773 + $0x38] sm:$0xff]
        %v2782 = vld [vmem:[%s2773 + $0x40] sm:$0xff]
        %v2783 = vld [vmem:[%s2773 + $0x48] sm:$0xff]
        %v2784 = vld [vmem:[%s2773 + $0x50] sm:$0xff]
        %v2785 = vld [vmem:[%s2773 + $0x58] sm:$0xff]
        %v2786 = vld [vmem:[%s2773 + $0x60] sm:$0xff]
        %v2787 = vld [vmem:[%s2773 + $0x68] sm:$0xff]
        %v2788 = vld [vmem:[%s2773 + $0x70] sm:$0xff]
        %v2789 = vld [vmem:[%s2773 + $0x78] sm:$0xff]
        %2790 = vmatprep.subr.mxu0 0.0
        %2791 = vmatpush1.msra.mxu0 %v2774
        %2792 = vmatprep.subr.mxu0 0.0
        %2793 = vmatpush1.msra.mxu0 %v2775
        %2794 = vmatprep.subr.mxu0 0.0
        %2795 = vmatpush1.msra.mxu0 %v2776
        %2796 = vmatprep.subr.mxu0 0.0
        %2797 = vmatpush1.msra.mxu0 %v2777
        %2798 = vmatprep.subr.mxu0 0.0
        %2799 = vmatpush1.msra.mxu0 %v2778
        %2800 = vmatprep.subr.mxu0 0.0
        %2801 = vmatpush1.msra.mxu0 %v2779
        %2802 = vmatprep.subr.mxu0 0.0
        %2803 = vmatpush1.msra.mxu0 %v2780
        %2804 = vmatprep.subr.mxu0 0.0
        %2805 = vmatpush1.msra.mxu0 %v2781
        %2806 = vmatprep.subr.mxu0 0.0
        %2807 = vmatpush1.msra.mxu0 %v2782
        %2808 = vmatprep.subr.mxu0 0.0
        %2809 = vmatpush1.msra.mxu0 %v2783
        %2810 = vmatprep.subr.mxu0 0.0
        %2811 = vmatpush1.msra.mxu0 %v2784
        %2812 = vmatprep.subr.mxu0 0.0
        %2813 = vmatpush1.msra.mxu0 %v2785
        %2814 = vmatprep.subr.mxu0 0.0
        %2815 = vmatpush1.msra.mxu0 %v2786
        %2816 = vmatprep.subr.mxu0 0.0
        %2817 = vmatpush1.msra.mxu0 %v2787
        %2818 = vmatprep.subr.mxu0 0.0
        %2819 = vmatpush1.msra.mxu0 %v2788
        %2820 = vmatprep.subr.mxu0 0.0
        %2821 = vmatpush1.msra.mxu0 %v2789
        %2822 = vmatprep.subr.mxu0 0.0
        %2823 = vmatpush1.msra.mxu0 0.0
        %2824 = vmatprep.subr.mxu0 0.0
        %2825 = vmatpush1.msra.mxu0 0.0
        %2826 = vmatprep.subr.mxu0 0.0
        %2827 = vmatpush1.msra.mxu0 0.0
        %2828 = vmatprep.subr.mxu0 0.0
        %2829 = vmatpush1.msra.mxu0 0.0
        %2830 = vmatprep.subr.mxu0 0.0
        %2831 = vmatpush1.msra.mxu0 0.0
        %2832 = vmatprep.subr.mxu0 0.0
        %2833 = vmatpush1.msra.mxu0 0.0
        %2834 = vmatprep.subr.mxu0 0.0
        %2835 = vmatpush1.msra.mxu0 0.0
        %2836 = vmatprep.subr.mxu0 0.0
        %2837 = vmatpush1.msra.mxu0 0.0
        %2838 = vmatprep.subr.mxu0 0.0
        %2839 = vmatpush1.msra.mxu0 0.0
        %2840 = vmatprep.subr.mxu0 0.0
        %2841 = vmatpush1.msra.mxu0 0.0
        %2842 = vmatprep.subr.mxu0 0.0
        %2843 = vmatpush1.msra.mxu0 0.0
        %2844 = vmatprep.subr.mxu0 0.0
        %2845 = vmatpush1.msra.mxu0 0.0
        %2846 = vmatprep.subr.mxu0 0.0
        %2847 = vmatpush1.msra.mxu0 0.0
        %2848 = vmatprep.subr.mxu0 0.0
        %2849 = vmatpush1.msra.mxu0 0.0
        %2850 = vmatprep.subr.mxu0 0.0
        %2851 = vmatpush1.msra.mxu0 0.0
        %2852 = vmatprep.subr.mxu0 0.0
        %2853 = vmatpush1.msra.mxu0 0.0
        %2854 = vmatprep.mubr.f32.mxu0 0.0
        %2855 = vmatmul.mubr.f32.gmra.mrb[0].mxu0 %v2741
        %v2856 = vpop.f32.mrb[0].mxu0
        %v2857 = vadd.f32 0.0, %v2856
        %v2858 = vpop.f32.mrb[0].mxu0
        %2859 = vmatprep.mubr.f32.mxu0 0.0
        %2860 = vmatmul.mubr.f32.gmra.mrb[0].mxu0 %v2742
        %v2861 = vpop.f32.mrb[0].mxu0
        %v2862 = vadd.f32 0.0, %v2861
        %v2863 = vpop.f32.mrb[0].mxu0
        %2864 = vmatprep.mubr.f32.mxu0 0.0
        %2865 = vmatmul.mubr.f32.gmra.mrb[0].mxu0 %v2743
        %v2866 = vpop.f32.mrb[0].mxu0
        %v2867 = vadd.f32 0.0, %v2866
        %v2868 = vpop.f32.mrb[0].mxu0
        %2869 = vmatprep.mubr.f32.mxu0 0.0
        %2870 = vmatmul.mubr.f32.gmra.mrb[0].mxu0 %v2744
        %v2871 = vpop.f32.mrb[0].mxu0
        %v2872 = vadd.f32 0.0, %v2871
        %v2873 = vpop.f32.mrb[0].mxu0
        %2874 = vmatprep.mubr.f32.mxu0 0.0
        %2875 = vmatmul.mubr.f32.gmra.mrb[0].mxu0 %v2745
        %v2876 = vpop.f32.mrb[0].mxu0
        %v2877 = vadd.f32 0.0, %v2876
        %v2878 = vpop.f32.mrb[0].mxu0
        %2879 = vmatprep.mubr.f32.mxu0 0.0
        %2880 = vmatmul.mubr.f32.gmra.mrb[0].mxu0 %v2746
        %v2881 = vpop.f32.mrb[0].mxu0
        %v2882 = vadd.f32 0.0, %v2881
        %v2883 = vpop.f32.mrb[0].mxu0
        %2884 = vmatprep.mubr.f32.mxu0 0.0
        %2885 = vmatmul.mubr.f32.gmra.mrb[0].mxu0 %v2747
        %v2886 = vpop.f32.mrb[0].mxu0
        %v2887 = vadd.f32 0.0, %v2886
        %v2888 = vpop.f32.mrb[0].mxu0
        %2889 = vmatprep.mubr.f32.mxu0 0.0
        %2890 = vmatmul.mubr.f32.gmra.mrb[0].mxu0 %v2748
        %v2891 = vpop.f32.mrb[0].mxu0
        %v2892 = vadd.f32 0.0, %v2891
        %v2893 = vpop.f32.mrb[0].mxu0
        %2894 = vmatprep.mubr.f32.mxu0 0.0
        %2895 = vmatmul.mubr.f32.gmra.mrb[0].mxu0 %v2749
        %v2896 = vpop.f32.mrb[0].mxu0
        %v2897 = vadd.f32 0.0, %v2896
        %v2898 = vpop.f32.mrb[0].mxu0
        %2899 = vmatprep.mubr.f32.mxu0 0.0
        %2900 = vmatmul.mubr.f32.gmra.mrb[0].mxu0 %v2750
        %v2901 = vpop.f32.mrb[0].mxu0
        %v2902 = vadd.f32 0.0, %v2901
        %v2903 = vpop.f32.mrb[0].mxu0
        %2904 = vmatprep.mubr.f32.mxu0 0.0
        %2905 = vmatmul.mubr.f32.gmra.mrb[0].mxu0 %v2751
        %v2906 = vpop.f32.mrb[0].mxu0
        %v2907 = vadd.f32 0.0, %v2906
        %v2908 = vpop.f32.mrb[0].mxu0
        %2909 = vmatprep.mubr.f32.mxu0 0.0
        %2910 = vmatmul.mubr.f32.gmra.mrb[0].mxu0 %v2752
        %v2911 = vpop.f32.mrb[0].mxu0
        %v2912 = vadd.f32 0.0, %v2911
        %v2913 = vpop.f32.mrb[0].mxu0
        %2914 = vmatprep.mubr.f32.mxu0 0.0
        %2915 = vmatmul.mubr.f32.gmra.mrb[0].mxu0 %v2753
        %v2916 = vpop.f32.mrb[0].mxu0
        %v2917 = vadd.f32 0.0, %v2916
        %v2918 = vpop.f32.mrb[0].mxu0
        %2919 = vmatprep.mubr.f32.mxu0 0.0
        %2920 = vmatmul.mubr.f32.gmra.mrb[0].mxu0 %v2754
        %v2921 = vpop.f32.mrb[0].mxu0
        %v2922 = vadd.f32 0.0, %v2921
        %v2923 = vpop.f32.mrb[0].mxu0
        %2924 = vmatprep.mubr.f32.mxu0 0.0
        %2925 = vmatmul.mubr.f32.gmra.mrb[0].mxu0 %v2755
        %v2926 = vpop.f32.mrb[0].mxu0
        %v2927 = vadd.f32 0.0, %v2926
        %v2928 = vpop.f32.mrb[0].mxu0
        %2929 = vmatprep.mubr.f32.mxu0 0.0
        %2930 = vmatmul.mubr.f32.gmra.mrb[0].mxu0 %v2756
        %v2931 = vpop.f32.mrb[0].mxu0
        %v2932 = vadd.f32 0.0, %v2931
        %v2933 = vpop.f32.mrb[0].mxu0
        %2934 = vmatprep.mubr.f32.mxu0 0.0
        %2935 = vmatmul.mubr.f32.gmra.mrb[0].mxu0 %v2757
        %v2936 = vpop.f32.mrb[0].mxu0
        %v2937 = vadd.f32 0.0, %v2936
        %v2938 = vpop.f32.mrb[0].mxu0
        %2939 = vmatprep.mubr.f32.mxu0 0.0
        %2940 = vmatmul.mubr.f32.gmra.mrb[0].mxu0 %v2758
        %v2941 = vpop.f32.mrb[0].mxu0
        %v2942 = vadd.f32 0.0, %v2941
        %v2943 = vpop.f32.mrb[0].mxu0
        %2944 = vmatprep.mubr.f32.mxu0 0.0
        %2945 = vmatmul.mubr.f32.gmra.mrb[0].mxu0 %v2759
        %v2946 = vpop.f32.mrb[0].mxu0
        %v2947 = vadd.f32 0.0, %v2946
        %v2948 = vpop.f32.mrb[0].mxu0
        %2949 = vmatprep.mubr.f32.mxu0 0.0
        %2950 = vmatmul.mubr.f32.gmra.mrb[0].mxu0 %v2760
        %v2951 = vpop.f32.mrb[0].mxu0
        %v2952 = vadd.f32 0.0, %v2951
        %v2953 = vpop.f32.mrb[0].mxu0
        %2954 = vmatprep.mubr.f32.mxu0 0.0
        %2955 = vmatmul.mubr.f32.gmra.mrb[0].mxu0 %v2761
        %v2956 = vpop.f32.mrb[0].mxu0
        %v2957 = vadd.f32 0.0, %v2956
        %v2958 = vpop.f32.mrb[0].mxu0
        %2959 = vmatprep.mubr.f32.mxu0 0.0
        %2960 = vmatmul.mubr.f32.gmra.mrb[0].mxu0 %v2762
        %v2961 = vpop.f32.mrb[0].mxu0
        %v2962 = vadd.f32 0.0, %v2961
        %v2963 = vpop.f32.mrb[0].mxu0
        %2964 = vmatprep.mubr.f32.mxu0 0.0
        %2965 = vmatmul.mubr.f32.gmra.mrb[0].mxu0 %v2763
        %v2966 = vpop.f32.mrb[0].mxu0
        %v2967 = vadd.f32 0.0, %v2966
        %v2968 = vpop.f32.mrb[0].mxu0
        %2969 = vmatprep.mubr.f32.mxu0 0.0
        %2970 = vmatmul.mubr.f32.gmra.mrb[0].mxu0 %v2764
        %v2971 = vpop.f32.mrb[0].mxu0
        %v2972 = vadd.f32 0.0, %v2971
        %v2973 = vpop.f32.mrb[0].mxu0
        %2974 = vmatprep.mubr.f32.mxu0 0.0
        %2975 = vmatmul.mubr.f32.gmra.mrb[0].mxu0 %v2765
        %v2976 = vpop.f32.mrb[0].mxu0
        %v2977 = vadd.f32 0.0, %v2976
        %v2978 = vpop.f32.mrb[0].mxu0
        %2979 = vmatprep.mubr.f32.mxu0 0.0
        %2980 = vmatmul.mubr.f32.gmra.mrb[0].mxu0 %v2766
        %v2981 = vpop.f32.mrb[0].mxu0
        %v2982 = vadd.f32 0.0, %v2981
        %v2983 = vpop.f32.mrb[0].mxu0
        %2984 = vmatprep.mubr.f32.mxu0 0.0
        %2985 = vmatmul.mubr.f32.gmra.mrb[0].mxu0 %v2767
        %v2986 = vpop.f32.mrb[0].mxu0
        %v2987 = vadd.f32 0.0, %v2986
        %v2988 = vpop.f32.mrb[0].mxu0
        %2989 = vmatprep.mubr.f32.mxu0 0.0
        %2990 = vmatmul.mubr.f32.gmra.mrb[0].mxu0 %v2768
        %v2991 = vpop.f32.mrb[0].mxu0
        %v2992 = vadd.f32 0.0, %v2991
        %v2993 = vpop.f32.mrb[0].mxu0
        %2994 = vmatprep.mubr.f32.mxu0 0.0
        %2995 = vmatmul.mubr.f32.gmra.mrb[0].mxu0 %v2769
        %v2996 = vpop.f32.mrb[0].mxu0
        %v2997 = vadd.f32 0.0, %v2996
        %v2998 = vpop.f32.mrb[0].mxu0
        %2999 = vmatprep.mubr.f32.mxu0 0.0
        %3000 = vmatmul.mubr.f32.gmra.mrb[0].mxu0 %v2770
        %v3001 = vpop.f32.mrb[0].mxu0
        %v3002 = vadd.f32 0.0, %v3001
        %v3003 = vpop.f32.mrb[0].mxu0
        %3004 = vmatprep.mubr.f32.mxu0 0.0
        %3005 = vmatmul.mubr.f32.gmra.mrb[0].mxu0 %v2771
        %v3006 = vpop.f32.mrb[0].mxu0
        %v3007 = vadd.f32 0.0, %v3006
        %v3008 = vpop.f32.mrb[0].mxu0
        %3009 = vmatprep.mubr.f32.mxu0 0.0
        %3010 = vmatmul.mubr.f32.gmra.mrb[0].mxu0 %v2772
        %v3011 = vpop.f32.mrb[0].mxu0
        %v3012 = vadd.f32 0.0, %v3011
        %v3013 = vpop.f32.mrb[0].mxu0
        %3014 = vdwg.mxu0
        %v3015 = vld [vmem:[#allocation3] sm:$0xff]
        %v3016 = vld [vmem:[#allocation3 + $0x8] sm:$0xff]
        %v3017 = vld [vmem:[#allocation3 + $0x10] sm:$0xff]
        %v3018 = vld [vmem:[#allocation3 + $0x18] sm:$0xff]
        %v3019 = vld [vmem:[#allocation3 + $0x20] sm:$0xff]
        %v3020 = vld [vmem:[#allocation3 + $0x28] sm:$0xff]
        %v3021 = vld [vmem:[#allocation3 + $0x30] sm:$0xff]
        %v3022 = vld [vmem:[#allocation3 + $0x38] sm:$0xff]
        %v3023 = vld [vmem:[#allocation3 + $0x40] sm:$0xff]
        %v3024 = vld [vmem:[#allocation3 + $0x48] sm:$0xff]
        %v3025 = vld [vmem:[#allocation3 + $0x50] sm:$0xff]
        %v3026 = vld [vmem:[#allocation3 + $0x58] sm:$0xff]
        %v3027 = vld [vmem:[#allocation3 + $0x60] sm:$0xff]
        %v3028 = vld [vmem:[#allocation3 + $0x68] sm:$0xff]
        %v3029 = vld [vmem:[#allocation3 + $0x70] sm:$0xff]
        %v3030 = vld [vmem:[#allocation3 + $0x78] sm:$0xff]
        %v3031 = vld [vmem:[#allocation3 + $0x80] sm:$0xff]
        %v3032 = vld [vmem:[#allocation3 + $0x88] sm:$0xff]
        %v3033 = vld [vmem:[#allocation3 + $0x90] sm:$0xff]
        %v3034 = vld [vmem:[#allocation3 + $0x98] sm:$0xff]
        %v3035 = vld [vmem:[#allocation3 + $0xa0] sm:$0xff]
        %v3036 = vld [vmem:[#allocation3 + $0xa8] sm:$0xff]
        %v3037 = vld [vmem:[#allocation3 + $0xb0] sm:$0xff]
        %v3038 = vld [vmem:[#allocation3 + $0xb8] sm:$0xff]
        %v3039 = vld [vmem:[#allocation3 + $0xc0] sm:$0xff]
        %v3040 = vld [vmem:[#allocation3 + $0xc8] sm:$0xff]
        %v3041 = vld [vmem:[#allocation3 + $0xd0] sm:$0xff]
        %v3042 = vld [vmem:[#allocation3 + $0xd8] sm:$0xff]
        %v3043 = vld [vmem:[#allocation3 + $0xe0] sm:$0xff]
        %v3044 = vld [vmem:[#allocation3 + $0xe8] sm:$0xff]
        %v3045 = vld [vmem:[#allocation3 + $0xf0] sm:$0xff]
        %v3046 = vld [vmem:[#allocation3 + $0xf8] sm:$0xff]
        %v3047 = vadd.f32 %v3015, %v2857
        %v3048 = vadd.f32 %v3016, %v2862
        %v3049 = vadd.f32 %v3017, %v2867
        %v3050 = vadd.f32 %v3018, %v2872
        %v3051 = vadd.f32 %v3019, %v2877
        %v3052 = vadd.f32 %v3020, %v2882
        %v3053 = vadd.f32 %v3021, %v2887
        %v3054 = vadd.f32 %v3022, %v2892
        %v3055 = vadd.f32 %v3023, %v2897
        %v3056 = vadd.f32 %v3024, %v2902
        %v3057 = vadd.f32 %v3025, %v2907
        %v3058 = vadd.f32 %v3026, %v2912
        %v3059 = vadd.f32 %v3027, %v2917
        %v3060 = vadd.f32 %v3028, %v2922
        %v3061 = vadd.f32 %v3029, %v2927
        %v3062 = vadd.f32 %v3030, %v2932
        %v3063 = vadd.f32 %v3031, %v2937
        %v3064 = vadd.f32 %v3032, %v2942
        %v3065 = vadd.f32 %v3033, %v2947
        %v3066 = vadd.f32 %v3034, %v2952
        %v3067 = vadd.f32 %v3035, %v2957
        %v3068 = vadd.f32 %v3036, %v2962
        %v3069 = vadd.f32 %v3037, %v2967
        %v3070 = vadd.f32 %v3038, %v2972
        %v3071 = vadd.f32 %v3039, %v2977
        %v3072 = vadd.f32 %v3040, %v2982
        %v3073 = vadd.f32 %v3041, %v2987
        %v3074 = vadd.f32 %v3042, %v2992
        %v3075 = vadd.f32 %v3043, %v2997
        %v3076 = vadd.f32 %v3044, %v3002
        %v3077 = vadd.f32 %v3045, %v3007
        %v3078 = vadd.f32 %v3046, %v3012
        %3079 = vst [vmem:[#allocation3] sm:$0xff] %v3047
        %3080 = vst [vmem:[#allocation3 + $0x8] sm:$0xff] %v3048
        %3081 = vst [vmem:[#allocation3 + $0x10] sm:$0xff] %v3049
        %3082 = vst [vmem:[#allocation3 + $0x18] sm:$0xff] %v3050
        %3083 = vst [vmem:[#allocation3 + $0x20] sm:$0xff] %v3051
        %3084 = vst [vmem:[#allocation3 + $0x28] sm:$0xff] %v3052
        %3085 = vst [vmem:[#allocation3 + $0x30] sm:$0xff] %v3053
        %3086 = vst [vmem:[#allocation3 + $0x38] sm:$0xff] %v3054
        %3087 = vst [vmem:[#allocation3 + $0x40] sm:$0xff] %v3055
        %3088 = vst [vmem:[#allocation3 + $0x48] sm:$0xff] %v3056
        %3089 = vst [vmem:[#allocation3 + $0x50] sm:$0xff] %v3057
        %3090 = vst [vmem:[#allocation3 + $0x58] sm:$0xff] %v3058
        %3091 = vst [vmem:[#allocation3 + $0x60] sm:$0xff] %v3059
        %3092 = vst [vmem:[#allocation3 + $0x68] sm:$0xff] %v3060
        %3093 = vst [vmem:[#allocation3 + $0x70] sm:$0xff] %v3061
        %3094 = vst [vmem:[#allocation3 + $0x78] sm:$0xff] %v3062
        %3095 = vst [vmem:[#allocation3 + $0x80] sm:$0xff] %v3063
        %3096 = vst [vmem:[#allocation3 + $0x88] sm:$0xff] %v3064
        %3097 = vst [vmem:[#allocation3 + $0x90] sm:$0xff] %v3065
        %3098 = vst [vmem:[#allocation3 + $0x98] sm:$0xff] %v3066
        %3099 = vst [vmem:[#allocation3 + $0xa0] sm:$0xff] %v3067
        %3100 = vst [vmem:[#allocation3 + $0xa8] sm:$0xff] %v3068
        %3101 = vst [vmem:[#allocation3 + $0xb0] sm:$0xff] %v3069
        %3102 = vst [vmem:[#allocation3 + $0xb8] sm:$0xff] %v3070
        %3103 = vst [vmem:[#allocation3 + $0xc0] sm:$0xff] %v3071
        %3104 = vst [vmem:[#allocation3 + $0xc8] sm:$0xff] %v3072
        %3105 = vst [vmem:[#allocation3 + $0xd0] sm:$0xff] %v3073
        %3106 = vst [vmem:[#allocation3 + $0xd8] sm:$0xff] %v3074
        %3107 = vst [vmem:[#allocation3 + $0xe0] sm:$0xff] %v3075
        %3108 = vst [vmem:[#allocation3 + $0xe8] sm:$0xff] %v3076
        %3109 = vst [vmem:[#allocation3 + $0xf0] sm:$0xff] %v3077
        %3110 = vst [vmem:[#allocation3 + $0xf8] sm:$0xff] %v3078
        %v3111 = vld [vmem:[#allocation2 + $0x27] sm:$0xff]
        %v3112 = vld [vmem:[#allocation2 + $0x2f] sm:$0xff]
        %v3113 = vld [vmem:[#allocation2 + $0x37] sm:$0xff]
        %v3114 = vld [vmem:[#allocation2 + $0x3f] sm:$0xff]
        %v3115 = vld [vmem:[#allocation2 + $0x47] sm:$0xff]
        %v3116 = vld [vmem:[#allocation2 + $0x4f] sm:$0xff]
        %v3117 = vld [vmem:[#allocation2 + $0x57] sm:$0xff]
        %v3118 = vld [vmem:[#allocation2 + $0x5f] sm:$0xff]
        %v3119 = vld [vmem:[#allocation2 + $0x67] sm:$0xff]
        %v3120 = vld [vmem:[#allocation2 + $0x6f] sm:$0xff]
        %v3121 = vld [vmem:[#allocation2 + $0x77] sm:$0xff]
        %v3122 = vld [vmem:[#allocation2 + $0x7f] sm:$0xff]
        %v3123 = vld [vmem:[#allocation2 + $0x87] sm:$0xff]
        %v3124 = vld [vmem:[#allocation2 + $0x8f] sm:$0xff]
        %v3125 = vld [vmem:[#allocation2 + $0x97] sm:$0xff]
        %v3126 = vld [vmem:[#allocation2 + $0x9f] sm:$0xff]
        %v3127 = vld [vmem:[#allocation2 + $0xa7] sm:$0xff]
        %v3128 = vld [vmem:[#allocation2 + $0xaf] sm:$0xff]
        %v3129 = vld [vmem:[#allocation2 + $0xb7] sm:$0xff]
        %v3130 = vld [vmem:[#allocation2 + $0xbf] sm:$0xff]
        %v3131 = vld [vmem:[#allocation2 + $0xc7] sm:$0xff]
        %v3132 = vld [vmem:[#allocation2 + $0xcf] sm:$0xff]
        %v3133 = vld [vmem:[#allocation2 + $0xd7] sm:$0xff]
        %v3134 = vld [vmem:[#allocation2 + $0xdf] sm:$0xff]
        %v3135 = vld [vmem:[#allocation2 + $0xe7] sm:$0xff]
        %v3136 = vld [vmem:[#allocation2 + $0xef] sm:$0xff]
        %v3137 = vld [vmem:[#allocation2 + $0xf7] sm:$0xff]
        %v3138 = vld [vmem:[#allocation2 + $0xff] sm:$0xff]
        %v3139 = vld [vmem:[#allocation2 + $0x107] sm:$0xff]
        %v3140 = vld [vmem:[#allocation2 + $0x10f] sm:$0xff]
        %v3141 = vld [vmem:[#allocation2 + $0x117] sm:$0xff]
        %v3142 = vld [vmem:[#allocation2 + $0x11f] sm:$0xff]
        %v3143 = vsel %vm694, %v3111, 0.0
        %v3144 = vsel %vm695, %v3112, 0.0
        %v3145 = vsel %vm696, %v3113, 0.0
        %v3146 = vsel %vm697, %v3114, 0.0
        %v3147 = vsel %vm698, %v3115, 0.0
        %v3148 = vsel %vm699, %v3116, 0.0
        %v3149 = vsel %vm700, %v3117, 0.0
        %v3150 = vsel %vm701, %v3118, 0.0
        %v3151 = vsel %vm702, %v3119, 0.0
        %v3152 = vsel %vm703, %v3120, 0.0
        %v3153 = vsel %vm704, %v3121, 0.0
        %v3154 = vsel %vm705, %v3122, 0.0
        %v3155 = vsel %vm706, %v3123, 0.0
        %v3156 = vsel %vm707, %v3124, 0.0
        %v3157 = vsel %vm708, %v3125, 0.0
        %v3158 = vsel %vm709, %v3126, 0.0
        %v3159 = vsel %vm710, %v3127, 0.0
        %v3160 = vsel %vm711, %v3128, 0.0
        %v3161 = vsel %vm712, %v3129, 0.0
        %v3162 = vsel %vm713, %v3130, 0.0
        %v3163 = vsel %vm714, %v3131, 0.0
        %v3164 = vsel %vm715, %v3132, 0.0
        %v3165 = vsel %vm716, %v3133, 0.0
        %v3166 = vsel %vm717, %v3134, 0.0
        %v3167 = vsel %vm718, %v3135, 0.0
        %v3168 = vsel %vm719, %v3136, 0.0
        %v3169 = vsel %vm720, %v3137, 0.0
        %v3170 = vsel %vm721, %v3138, 0.0
        %v3171 = vsel %vm722, %v3139, 0.0
        %v3172 = vsel %vm723, %v3140, 0.0
        %v3173 = vsel %vm724, %v3141, 0.0
        %v3174 = vsel %vm725, %v3142, 0.0
        %s3175 = scalar_lea.vmem [#allocation7], 768
        %v3176 = vld [vmem:[%s3175] sm:$0xff]
        %v3177 = vld [vmem:[%s3175 + $0x8] sm:$0xff]
        %v3178 = vld [vmem:[%s3175 + $0x10] sm:$0xff]
        %v3179 = vld [vmem:[%s3175 + $0x18] sm:$0xff]
        %v3180 = vld [vmem:[%s3175 + $0x20] sm:$0xff]
        %v3181 = vld [vmem:[%s3175 + $0x28] sm:$0xff]
        %v3182 = vld [vmem:[%s3175 + $0x30] sm:$0xff]
        %v3183 = vld [vmem:[%s3175 + $0x38] sm:$0xff]
        %v3184 = vld [vmem:[%s3175 + $0x40] sm:$0xff]
        %v3185 = vld [vmem:[%s3175 + $0x48] sm:$0xff]
        %v3186 = vld [vmem:[%s3175 + $0x50] sm:$0xff]
        %v3187 = vld [vmem:[%s3175 + $0x58] sm:$0xff]
        %v3188 = vld [vmem:[%s3175 + $0x60] sm:$0xff]
        %v3189 = vld [vmem:[%s3175 + $0x68] sm:$0xff]
        %v3190 = vld [vmem:[%s3175 + $0x70] sm:$0xff]
        %v3191 = vld [vmem:[%s3175 + $0x78] sm:$0xff]
        %3192 = vmatprep.subr.mxu0 0.0
        %3193 = vmatpush1.msra.mxu0 %v3176
        %3194 = vmatprep.subr.mxu0 0.0
        %3195 = vmatpush1.msra.mxu0 %v3177
        %3196 = vmatprep.subr.mxu0 0.0
        %3197 = vmatpush1.msra.mxu0 %v3178
        %3198 = vmatprep.subr.mxu0 0.0
        %3199 = vmatpush1.msra.mxu0 %v3179
        %3200 = vmatprep.subr.mxu0 0.0
        %3201 = vmatpush1.msra.mxu0 %v3180
        %3202 = vmatprep.subr.mxu0 0.0
        %3203 = vmatpush1.msra.mxu0 %v3181
        %3204 = vmatprep.subr.mxu0 0.0
        %3205 = vmatpush1.msra.mxu0 %v3182
        %3206 = vmatprep.subr.mxu0 0.0
        %3207 = vmatpush1.msra.mxu0 %v3183
        %3208 = vmatprep.subr.mxu0 0.0
        %3209 = vmatpush1.msra.mxu0 %v3184
        %3210 = vmatprep.subr.mxu0 0.0
        %3211 = vmatpush1.msra.mxu0 %v3185
        %3212 = vmatprep.subr.mxu0 0.0
        %3213 = vmatpush1.msra.mxu0 %v3186
        %3214 = vmatprep.subr.mxu0 0.0
        %3215 = vmatpush1.msra.mxu0 %v3187
        %3216 = vmatprep.subr.mxu0 0.0
        %3217 = vmatpush1.msra.mxu0 %v3188
        %3218 = vmatprep.subr.mxu0 0.0
        %3219 = vmatpush1.msra.mxu0 %v3189
        %3220 = vmatprep.subr.mxu0 0.0
        %3221 = vmatpush1.msra.mxu0 %v3190
        %3222 = vmatprep.subr.mxu0 0.0
        %3223 = vmatpush1.msra.mxu0 %v3191
        %3224 = vmatprep.subr.mxu0 0.0
        %3225 = vmatpush1.msra.mxu0 0.0
        %3226 = vmatprep.subr.mxu0 0.0
        %3227 = vmatpush1.msra.mxu0 0.0
        %3228 = vmatprep.subr.mxu0 0.0
        %3229 = vmatpush1.msra.mxu0 0.0
        %3230 = vmatprep.subr.mxu0 0.0
        %3231 = vmatpush1.msra.mxu0 0.0
        %3232 = vmatprep.subr.mxu0 0.0
        %3233 = vmatpush1.msra.mxu0 0.0
        %3234 = vmatprep.subr.mxu0 0.0
        %3235 = vmatpush1.msra.mxu0 0.0
        %3236 = vmatprep.subr.mxu0 0.0
        %3237 = vmatpush1.msra.mxu0 0.0
        %3238 = vmatprep.subr.mxu0 0.0
        %3239 = vmatpush1.msra.mxu0 0.0
        %3240 = vmatprep.subr.mxu0 0.0
        %3241 = vmatpush1.msra.mxu0 0.0
        %3242 = vmatprep.subr.mxu0 0.0
        %3243 = vmatpush1.msra.mxu0 0.0
        %3244 = vmatprep.subr.mxu0 0.0
        %3245 = vmatpush1.msra.mxu0 0.0
        %3246 = vmatprep.subr.mxu0 0.0
        %3247 = vmatpush1.msra.mxu0 0.0
        %3248 = vmatprep.subr.mxu0 0.0
        %3249 = vmatpush1.msra.mxu0 0.0
        %3250 = vmatprep.subr.mxu0 0.0
        %3251 = vmatpush1.msra.mxu0 0.0
        %3252 = vmatprep.subr.mxu0 0.0
        %3253 = vmatpush1.msra.mxu0 0.0
        %3254 = vmatprep.subr.mxu0 0.0
        %3255 = vmatpush1.msra.mxu0 0.0
        %3256 = vmatprep.mubr.f32.mxu0 0.0
        %3257 = vmatmul.mubr.f32.gmra.mrb[0].mxu0 %v3143
        %v3258 = vpop.f32.mrb[0].mxu0
        %v3259 = vadd.f32 0.0, %v3258
        %v3260 = vpop.f32.mrb[0].mxu0
        %3261 = vmatprep.mubr.f32.mxu0 0.0
        %3262 = vmatmul.mubr.f32.gmra.mrb[0].mxu0 %v3144
        %v3263 = vpop.f32.mrb[0].mxu0
        %v3264 = vadd.f32 0.0, %v3263
        %v3265 = vpop.f32.mrb[0].mxu0
        %3266 = vmatprep.mubr.f32.mxu0 0.0
        %3267 = vmatmul.mubr.f32.gmra.mrb[0].mxu0 %v3145
        %v3268 = vpop.f32.mrb[0].mxu0
        %v3269 = vadd.f32 0.0, %v3268
        %v3270 = vpop.f32.mrb[0].mxu0
        %3271 = vmatprep.mubr.f32.mxu0 0.0
        %3272 = vmatmul.mubr.f32.gmra.mrb[0].mxu0 %v3146
        %v3273 = vpop.f32.mrb[0].mxu0
        %v3274 = vadd.f32 0.0, %v3273
        %v3275 = vpop.f32.mrb[0].mxu0
        %3276 = vmatprep.mubr.f32.mxu0 0.0
        %3277 = vmatmul.mubr.f32.gmra.mrb[0].mxu0 %v3147
        %v3278 = vpop.f32.mrb[0].mxu0
        %v3279 = vadd.f32 0.0, %v3278
        %v3280 = vpop.f32.mrb[0].mxu0
        %3281 = vmatprep.mubr.f32.mxu0 0.0
        %3282 = vmatmul.mubr.f32.gmra.mrb[0].mxu0 %v3148
        %v3283 = vpop.f32.mrb[0].mxu0
        %v3284 = vadd.f32 0.0, %v3283
        %v3285 = vpop.f32.mrb[0].mxu0
        %3286 = vmatprep.mubr.f32.mxu0 0.0
        %3287 = vmatmul.mubr.f32.gmra.mrb[0].mxu0 %v3149
        %v3288 = vpop.f32.mrb[0].mxu0
        %v3289 = vadd.f32 0.0, %v3288
        %v3290 = vpop.f32.mrb[0].mxu0
        %3291 = vmatprep.mubr.f32.mxu0 0.0
        %3292 = vmatmul.mubr.f32.gmra.mrb[0].mxu0 %v3150
        %v3293 = vpop.f32.mrb[0].mxu0
        %v3294 = vadd.f32 0.0, %v3293
        %v3295 = vpop.f32.mrb[0].mxu0
        %3296 = vmatprep.mubr.f32.mxu0 0.0
        %3297 = vmatmul.mubr.f32.gmra.mrb[0].mxu0 %v3151
        %v3298 = vpop.f32.mrb[0].mxu0
        %v3299 = vadd.f32 0.0, %v3298
        %v3300 = vpop.f32.mrb[0].mxu0
        %3301 = vmatprep.mubr.f32.mxu0 0.0
        %3302 = vmatmul.mubr.f32.gmra.mrb[0].mxu0 %v3152
        %v3303 = vpop.f32.mrb[0].mxu0
        %v3304 = vadd.f32 0.0, %v3303
        %v3305 = vpop.f32.mrb[0].mxu0
        %3306 = vmatprep.mubr.f32.mxu0 0.0
        %3307 = vmatmul.mubr.f32.gmra.mrb[0].mxu0 %v3153
        %v3308 = vpop.f32.mrb[0].mxu0
        %v3309 = vadd.f32 0.0, %v3308
        %v3310 = vpop.f32.mrb[0].mxu0
        %3311 = vmatprep.mubr.f32.mxu0 0.0
        %3312 = vmatmul.mubr.f32.gmra.mrb[0].mxu0 %v3154
        %v3313 = vpop.f32.mrb[0].mxu0
        %v3314 = vadd.f32 0.0, %v3313
        %v3315 = vpop.f32.mrb[0].mxu0
        %3316 = vmatprep.mubr.f32.mxu0 0.0
        %3317 = vmatmul.mubr.f32.gmra.mrb[0].mxu0 %v3155
        %v3318 = vpop.f32.mrb[0].mxu0
        %v3319 = vadd.f32 0.0, %v3318
        %v3320 = vpop.f32.mrb[0].mxu0
        %3321 = vmatprep.mubr.f32.mxu0 0.0
        %3322 = vmatmul.mubr.f32.gmra.mrb[0].mxu0 %v3156
        %v3323 = vpop.f32.mrb[0].mxu0
        %v3324 = vadd.f32 0.0, %v3323
        %v3325 = vpop.f32.mrb[0].mxu0
        %3326 = vmatprep.mubr.f32.mxu0 0.0
        %3327 = vmatmul.mubr.f32.gmra.mrb[0].mxu0 %v3157
        %v3328 = vpop.f32.mrb[0].mxu0
        %v3329 = vadd.f32 0.0, %v3328
        %v3330 = vpop.f32.mrb[0].mxu0
        %3331 = vmatprep.mubr.f32.mxu0 0.0
        %3332 = vmatmul.mubr.f32.gmra.mrb[0].mxu0 %v3158
        %v3333 = vpop.f32.mrb[0].mxu0
        %v3334 = vadd.f32 0.0, %v3333
        %v3335 = vpop.f32.mrb[0].mxu0
        %3336 = vmatprep.mubr.f32.mxu0 0.0
        %3337 = vmatmul.mubr.f32.gmra.mrb[0].mxu0 %v3159
        %v3338 = vpop.f32.mrb[0].mxu0
        %v3339 = vadd.f32 0.0, %v3338
        %v3340 = vpop.f32.mrb[0].mxu0
        %3341 = vmatprep.mubr.f32.mxu0 0.0
        %3342 = vmatmul.mubr.f32.gmra.mrb[0].mxu0 %v3160
        %v3343 = vpop.f32.mrb[0].mxu0
        %v3344 = vadd.f32 0.0, %v3343
        %v3345 = vpop.f32.mrb[0].mxu0
        %3346 = vmatprep.mubr.f32.mxu0 0.0
        %3347 = vmatmul.mubr.f32.gmra.mrb[0].mxu0 %v3161
        %v3348 = vpop.f32.mrb[0].mxu0
        %v3349 = vadd.f32 0.0, %v3348
        %v3350 = vpop.f32.mrb[0].mxu0
        %3351 = vmatprep.mubr.f32.mxu0 0.0
        %3352 = vmatmul.mubr.f32.gmra.mrb[0].mxu0 %v3162
        %v3353 = vpop.f32.mrb[0].mxu0
        %v3354 = vadd.f32 0.0, %v3353
        %v3355 = vpop.f32.mrb[0].mxu0
        %3356 = vmatprep.mubr.f32.mxu0 0.0
        %3357 = vmatmul.mubr.f32.gmra.mrb[0].mxu0 %v3163
        %v3358 = vpop.f32.mrb[0].mxu0
        %v3359 = vadd.f32 0.0, %v3358
        %v3360 = vpop.f32.mrb[0].mxu0
        %3361 = vmatprep.mubr.f32.mxu0 0.0
        %3362 = vmatmul.mubr.f32.gmra.mrb[0].mxu0 %v3164
        %v3363 = vpop.f32.mrb[0].mxu0
        %v3364 = vadd.f32 0.0, %v3363
        %v3365 = vpop.f32.mrb[0].mxu0
        %3366 = vmatprep.mubr.f32.mxu0 0.0
        %3367 = vmatmul.mubr.f32.gmra.mrb[0].mxu0 %v3165
        %v3368 = vpop.f32.mrb[0].mxu0
        %v3369 = vadd.f32 0.0, %v3368
        %v3370 = vpop.f32.mrb[0].mxu0
        %3371 = vmatprep.mubr.f32.mxu0 0.0
        %3372 = vmatmul.mubr.f32.gmra.mrb[0].mxu0 %v3166
        %v3373 = vpop.f32.mrb[0].mxu0
        %v3374 = vadd.f32 0.0, %v3373
        %v3375 = vpop.f32.mrb[0].mxu0
        %3376 = vmatprep.mubr.f32.mxu0 0.0
        %3377 = vmatmul.mubr.f32.gmra.mrb[0].mxu0 %v3167
        %v3378 = vpop.f32.mrb[0].mxu0
        %v3379 = vadd.f32 0.0, %v3378
        %v3380 = vpop.f32.mrb[0].mxu0
        %3381 = vmatprep.mubr.f32.mxu0 0.0
        %3382 = vmatmul.mubr.f32.gmra.mrb[0].mxu0 %v3168
        %v3383 = vpop.f32.mrb[0].mxu0
        %v3384 = vadd.f32 0.0, %v3383
        %v3385 = vpop.f32.mrb[0].mxu0
        %3386 = vmatprep.mubr.f32.mxu0 0.0
        %3387 = vmatmul.mubr.f32.gmra.mrb[0].mxu0 %v3169
        %v3388 = vpop.f32.mrb[0].mxu0
        %v3389 = vadd.f32 0.0, %v3388
        %v3390 = vpop.f32.mrb[0].mxu0
        %3391 = vmatprep.mubr.f32.mxu0 0.0
        %3392 = vmatmul.mubr.f32.gmra.mrb[0].mxu0 %v3170
        %v3393 = vpop.f32.mrb[0].mxu0
        %v3394 = vadd.f32 0.0, %v3393
        %v3395 = vpop.f32.mrb[0].mxu0
        %3396 = vmatprep.mubr.f32.mxu0 0.0
        %3397 = vmatmul.mubr.f32.gmra.mrb[0].mxu0 %v3171
        %v3398 = vpop.f32.mrb[0].mxu0
        %v3399 = vadd.f32 0.0, %v3398
        %v3400 = vpop.f32.mrb[0].mxu0
        %3401 = vmatprep.mubr.f32.mxu0 0.0
        %3402 = vmatmul.mubr.f32.gmra.mrb[0].mxu0 %v3172
        %v3403 = vpop.f32.mrb[0].mxu0
        %v3404 = vadd.f32 0.0, %v3403
        %v3405 = vpop.f32.mrb[0].mxu0
        %3406 = vmatprep.mubr.f32.mxu0 0.0
        %3407 = vmatmul.mubr.f32.gmra.mrb[0].mxu0 %v3173
        %v3408 = vpop.f32.mrb[0].mxu0
        %v3409 = vadd.f32 0.0, %v3408
        %v3410 = vpop.f32.mrb[0].mxu0
        %3411 = vmatprep.mubr.f32.mxu0 0.0
        %3412 = vmatmul.mubr.f32.gmra.mrb[0].mxu0 %v3174
        %v3413 = vpop.f32.mrb[0].mxu0
        %v3414 = vadd.f32 0.0, %v3413
        %v3415 = vpop.f32.mrb[0].mxu0
        %3416 = vdwg.mxu0
        %v3417 = vld [vmem:[#allocation3] sm:$0xff]
        %v3418 = vld [vmem:[#allocation3 + $0x8] sm:$0xff]
        %v3419 = vld [vmem:[#allocation3 + $0x10] sm:$0xff]
        %v3420 = vld [vmem:[#allocation3 + $0x18] sm:$0xff]
        %v3421 = vld [vmem:[#allocation3 + $0x20] sm:$0xff]
        %v3422 = vld [vmem:[#allocation3 + $0x28] sm:$0xff]
        %v3423 = vld [vmem:[#allocation3 + $0x30] sm:$0xff]
        %v3424 = vld [vmem:[#allocation3 + $0x38] sm:$0xff]
        %v3425 = vld [vmem:[#allocation3 + $0x40] sm:$0xff]
        %v3426 = vld [vmem:[#allocation3 + $0x48] sm:$0xff]
        %v3427 = vld [vmem:[#allocation3 + $0x50] sm:$0xff]
        %v3428 = vld [vmem:[#allocation3 + $0x58] sm:$0xff]
        %v3429 = vld [vmem:[#allocation3 + $0x60] sm:$0xff]
        %v3430 = vld [vmem:[#allocation3 + $0x68] sm:$0xff]
        %v3431 = vld [vmem:[#allocation3 + $0x70] sm:$0xff]
        %v3432 = vld [vmem:[#allocation3 + $0x78] sm:$0xff]
        %v3433 = vld [vmem:[#allocation3 + $0x80] sm:$0xff]
        %v3434 = vld [vmem:[#allocation3 + $0x88] sm:$0xff]
        %v3435 = vld [vmem:[#allocation3 + $0x90] sm:$0xff]
        %v3436 = vld [vmem:[#allocation3 + $0x98] sm:$0xff]
        %v3437 = vld [vmem:[#allocation3 + $0xa0] sm:$0xff]
        %v3438 = vld [vmem:[#allocation3 + $0xa8] sm:$0xff]
        %v3439 = vld [vmem:[#allocation3 + $0xb0] sm:$0xff]
        %v3440 = vld [vmem:[#allocation3 + $0xb8] sm:$0xff]
        %v3441 = vld [vmem:[#allocation3 + $0xc0] sm:$0xff]
        %v3442 = vld [vmem:[#allocation3 + $0xc8] sm:$0xff]
        %v3443 = vld [vmem:[#allocation3 + $0xd0] sm:$0xff]
        %v3444 = vld [vmem:[#allocation3 + $0xd8] sm:$0xff]
        %v3445 = vld [vmem:[#allocation3 + $0xe0] sm:$0xff]
        %v3446 = vld [vmem:[#allocation3 + $0xe8] sm:$0xff]
        %v3447 = vld [vmem:[#allocation3 + $0xf0] sm:$0xff]
        %v3448 = vld [vmem:[#allocation3 + $0xf8] sm:$0xff]
        %v3449 = vadd.f32 %v3417, %v3259
        %v3450 = vadd.f32 %v3418, %v3264
        %v3451 = vadd.f32 %v3419, %v3269
        %v3452 = vadd.f32 %v3420, %v3274
        %v3453 = vadd.f32 %v3421, %v3279
        %v3454 = vadd.f32 %v3422, %v3284
        %v3455 = vadd.f32 %v3423, %v3289
        %v3456 = vadd.f32 %v3424, %v3294
        %v3457 = vadd.f32 %v3425, %v3299
        %v3458 = vadd.f32 %v3426, %v3304
        %v3459 = vadd.f32 %v3427, %v3309
        %v3460 = vadd.f32 %v3428, %v3314
        %v3461 = vadd.f32 %v3429, %v3319
        %v3462 = vadd.f32 %v3430, %v3324
        %v3463 = vadd.f32 %v3431, %v3329
        %v3464 = vadd.f32 %v3432, %v3334
        %v3465 = vadd.f32 %v3433, %v3339
        %v3466 = vadd.f32 %v3434, %v3344
        %v3467 = vadd.f32 %v3435, %v3349
        %v3468 = vadd.f32 %v3436, %v3354
        %v3469 = vadd.f32 %v3437, %v3359
        %v3470 = vadd.f32 %v3438, %v3364
        %v3471 = vadd.f32 %v3439, %v3369
        %v3472 = vadd.f32 %v3440, %v3374
        %v3473 = vadd.f32 %v3441, %v3379
        %v3474 = vadd.f32 %v3442, %v3384
        %v3475 = vadd.f32 %v3443, %v3389
        %v3476 = vadd.f32 %v3444, %v3394
        %v3477 = vadd.f32 %v3445, %v3399
        %v3478 = vadd.f32 %v3446, %v3404
        %v3479 = vadd.f32 %v3447, %v3409
        %v3480 = vadd.f32 %v3448, %v3414
        %3481 = vst [vmem:[#allocation3] sm:$0xff] %v3449
        %3482 = vst [vmem:[#allocation3 + $0x8] sm:$0xff] %v3450
        %3483 = vst [vmem:[#allocation3 + $0x10] sm:$0xff] %v3451
        %3484 = vst [vmem:[#allocation3 + $0x18] sm:$0xff] %v3452
        %3485 = vst [vmem:[#allocation3 + $0x20] sm:$0xff] %v3453
        %3486 = vst [vmem:[#allocation3 + $0x28] sm:$0xff] %v3454
        %3487 = vst [vmem:[#allocation3 + $0x30] sm:$0xff] %v3455
        %3488 = vst [vmem:[#allocation3 + $0x38] sm:$0xff] %v3456
        %3489 = vst [vmem:[#allocation3 + $0x40] sm:$0xff] %v3457
        %3490 = vst [vmem:[#allocation3 + $0x48] sm:$0xff] %v3458
        %3491 = vst [vmem:[#allocation3 + $0x50] sm:$0xff] %v3459
        %3492 = vst [vmem:[#allocation3 + $0x58] sm:$0xff] %v3460
        %3493 = vst [vmem:[#allocation3 + $0x60] sm:$0xff] %v3461
        %3494 = vst [vmem:[#allocation3 + $0x68] sm:$0xff] %v3462
        %3495 = vst [vmem:[#allocation3 + $0x70] sm:$0xff] %v3463
        %3496 = vst [vmem:[#allocation3 + $0x78] sm:$0xff] %v3464
        %3497 = vst [vmem:[#allocation3 + $0x80] sm:$0xff] %v3465
        %3498 = vst [vmem:[#allocation3 + $0x88] sm:$0xff] %v3466
        %3499 = vst [vmem:[#allocation3 + $0x90] sm:$0xff] %v3467
        %3500 = vst [vmem:[#allocation3 + $0x98] sm:$0xff] %v3468
        %3501 = vst [vmem:[#allocation3 + $0xa0] sm:$0xff] %v3469
        %3502 = vst [vmem:[#allocation3 + $0xa8] sm:$0xff] %v3470
        %3503 = vst [vmem:[#allocation3 + $0xb0] sm:$0xff] %v3471
        %3504 = vst [vmem:[#allocation3 + $0xb8] sm:$0xff] %v3472
        %3505 = vst [vmem:[#allocation3 + $0xc0] sm:$0xff] %v3473
        %3506 = vst [vmem:[#allocation3 + $0xc8] sm:$0xff] %v3474
        %3507 = vst [vmem:[#allocation3 + $0xd0] sm:$0xff] %v3475
        %3508 = vst [vmem:[#allocation3 + $0xd8] sm:$0xff] %v3476
        %3509 = vst [vmem:[#allocation3 + $0xe0] sm:$0xff] %v3477
        %3510 = vst [vmem:[#allocation3 + $0xe8] sm:$0xff] %v3478
        %3511 = vst [vmem:[#allocation3 + $0xf0] sm:$0xff] %v3479
        %3512 = vst [vmem:[#allocation3 + $0xf8] sm:$0xff] %v3480
        %v3513 = vld [vmem:[#allocation2 + $0x28] sm:$0xff]
        %v3514 = vld [vmem:[#allocation2 + $0x30] sm:$0xff]
        %v3515 = vld [vmem:[#allocation2 + $0x38] sm:$0xff]
        %v3516 = vld [vmem:[#allocation2 + $0x40] sm:$0xff]
        %v3517 = vld [vmem:[#allocation2 + $0x48] sm:$0xff]
        %v3518 = vld [vmem:[#allocation2 + $0x50] sm:$0xff]
        %v3519 = vld [vmem:[#allocation2 + $0x58] sm:$0xff]
        %v3520 = vld [vmem:[#allocation2 + $0x60] sm:$0xff]
        %v3521 = vld [vmem:[#allocation2 + $0x68] sm:$0xff]
        %v3522 = vld [vmem:[#allocation2 + $0x70] sm:$0xff]
        %v3523 = vld [vmem:[#allocation2 + $0x78] sm:$0xff]
        %v3524 = vld [vmem:[#allocation2 + $0x80] sm:$0xff]
        %v3525 = vld [vmem:[#allocation2 + $0x88] sm:$0xff]
        %v3526 = vld [vmem:[#allocation2 + $0x90] sm:$0xff]
        %v3527 = vld [vmem:[#allocation2 + $0x98] sm:$0xff]
        %v3528 = vld [vmem:[#allocation2 + $0xa0] sm:$0xff]
        %v3529 = vld [vmem:[#allocation2 + $0xa8] sm:$0xff]
        %v3530 = vld [vmem:[#allocation2 + $0xb0] sm:$0xff]
        %v3531 = vld [vmem:[#allocation2 + $0xb8] sm:$0xff]
        %v3532 = vld [vmem:[#allocation2 + $0xc0] sm:$0xff]
        %v3533 = vld [vmem:[#allocation2 + $0xc8] sm:$0xff]
        %v3534 = vld [vmem:[#allocation2 + $0xd0] sm:$0xff]
        %v3535 = vld [vmem:[#allocation2 + $0xd8] sm:$0xff]
        %v3536 = vld [vmem:[#allocation2 + $0xe0] sm:$0xff]
        %v3537 = vld [vmem:[#allocation2 + $0xe8] sm:$0xff]
        %v3538 = vld [vmem:[#allocation2 + $0xf0] sm:$0xff]
        %v3539 = vld [vmem:[#allocation2 + $0xf8] sm:$0xff]
        %v3540 = vld [vmem:[#allocation2 + $0x100] sm:$0xff]
        %v3541 = vld [vmem:[#allocation2 + $0x108] sm:$0xff]
        %v3542 = vld [vmem:[#allocation2 + $0x110] sm:$0xff]
        %v3543 = vld [vmem:[#allocation2 + $0x118] sm:$0xff]
        %v3544 = vld [vmem:[#allocation2 + $0x120] sm:$0xff]
        %s3545 = scalar_lea.vmem [#allocation7], 896
        %v3546 = vld [vmem:[%s3545] sm:$0xff]
        %v3547 = vld [vmem:[%s3545 + $0x8] sm:$0xff]
        %v3548 = vld [vmem:[%s3545 + $0x10] sm:$0xff]
        %v3549 = vld [vmem:[%s3545 + $0x18] sm:$0xff]
        %v3550 = vld [vmem:[%s3545 + $0x20] sm:$0xff]
        %v3551 = vld [vmem:[%s3545 + $0x28] sm:$0xff]
        %v3552 = vld [vmem:[%s3545 + $0x30] sm:$0xff]
        %v3553 = vld [vmem:[%s3545 + $0x38] sm:$0xff]
        %v3554 = vld [vmem:[%s3545 + $0x40] sm:$0xff]
        %v3555 = vld [vmem:[%s3545 + $0x48] sm:$0xff]
        %v3556 = vld [vmem:[%s3545 + $0x50] sm:$0xff]
        %v3557 = vld [vmem:[%s3545 + $0x58] sm:$0xff]
        %v3558 = vld [vmem:[%s3545 + $0x60] sm:$0xff]
        %v3559 = vld [vmem:[%s3545 + $0x68] sm:$0xff]
        %v3560 = vld [vmem:[%s3545 + $0x70] sm:$0xff]
        %v3561 = vld [vmem:[%s3545 + $0x78] sm:$0xff]
        %3562 = vmatprep.subr.mxu0 0.0
        %3563 = vmatpush1.msra.mxu0 %v3546
        %3564 = vmatprep.subr.mxu0 0.0
        %3565 = vmatpush1.msra.mxu0 %v3547
        %3566 = vmatprep.subr.mxu0 0.0
        %3567 = vmatpush1.msra.mxu0 %v3548
        %3568 = vmatprep.subr.mxu0 0.0
        %3569 = vmatpush1.msra.mxu0 %v3549
        %3570 = vmatprep.subr.mxu0 0.0
        %3571 = vmatpush1.msra.mxu0 %v3550
        %3572 = vmatprep.subr.mxu0 0.0
        %3573 = vmatpush1.msra.mxu0 %v3551
        %3574 = vmatprep.subr.mxu0 0.0
        %3575 = vmatpush1.msra.mxu0 %v3552
        %3576 = vmatprep.subr.mxu0 0.0
        %3577 = vmatpush1.msra.mxu0 %v3553
        %3578 = vmatprep.subr.mxu0 0.0
        %3579 = vmatpush1.msra.mxu0 %v3554
        %3580 = vmatprep.subr.mxu0 0.0
        %3581 = vmatpush1.msra.mxu0 %v3555
        %3582 = vmatprep.subr.mxu0 0.0
        %3583 = vmatpush1.msra.mxu0 %v3556
        %3584 = vmatprep.subr.mxu0 0.0
        %3585 = vmatpush1.msra.mxu0 %v3557
        %3586 = vmatprep.subr.mxu0 0.0
        %3587 = vmatpush1.msra.mxu0 %v3558
        %3588 = vmatprep.subr.mxu0 0.0
        %3589 = vmatpush1.msra.mxu0 %v3559
        %3590 = vmatprep.subr.mxu0 0.0
        %3591 = vmatpush1.msra.mxu0 %v3560
        %3592 = vmatprep.subr.mxu0 0.0
        %3593 = vmatpush1.msra.mxu0 %v3561
        %3594 = vmatprep.subr.mxu0 0.0
        %3595 = vmatpush1.msra.mxu0 0.0
        %3596 = vmatprep.subr.mxu0 0.0
        %3597 = vmatpush1.msra.mxu0 0.0
        %3598 = vmatprep.subr.mxu0 0.0
        %3599 = vmatpush1.msra.mxu0 0.0
        %3600 = vmatprep.subr.mxu0 0.0
        %3601 = vmatpush1.msra.mxu0 0.0
        %3602 = vmatprep.subr.mxu0 0.0
        %3603 = vmatpush1.msra.mxu0 0.0
        %3604 = vmatprep.subr.mxu0 0.0
        %3605 = vmatpush1.msra.mxu0 0.0
        %3606 = vmatprep.subr.mxu0 0.0
        %3607 = vmatpush1.msra.mxu0 0.0
        %3608 = vmatprep.subr.mxu0 0.0
        %3609 = vmatpush1.msra.mxu0 0.0
        %3610 = vmatprep.subr.mxu0 0.0
        %3611 = vmatpush1.msra.mxu0 0.0
        %3612 = vmatprep.subr.mxu0 0.0
        %3613 = vmatpush1.msra.mxu0 0.0
        %3614 = vmatprep.subr.mxu0 0.0
        %3615 = vmatpush1.msra.mxu0 0.0
        %3616 = vmatprep.subr.mxu0 0.0
        %3617 = vmatpush1.msra.mxu0 0.0
        %3618 = vmatprep.subr.mxu0 0.0
        %3619 = vmatpush1.msra.mxu0 0.0
        %3620 = vmatprep.subr.mxu0 0.0
        %3621 = vmatpush1.msra.mxu0 0.0
        %3622 = vmatprep.subr.mxu0 0.0
        %3623 = vmatpush1.msra.mxu0 0.0
        %3624 = vmatprep.subr.mxu0 0.0
        %3625 = vmatpush1.msra.mxu0 0.0
        %3626 = vmatprep.mubr.f32.mxu0 0.0
        %3627 = vmatmul.mubr.f32.gmra.mrb[0].mxu0 %v3513
        %v3628 = vpop.f32.mrb[0].mxu0
        %v3629 = vadd.f32 0.0, %v3628
        %v3630 = vpop.f32.mrb[0].mxu0
        %3631 = vmatprep.mubr.f32.mxu0 0.0
        %3632 = vmatmul.mubr.f32.gmra.mrb[0].mxu0 %v3514
        %v3633 = vpop.f32.mrb[0].mxu0
        %v3634 = vadd.f32 0.0, %v3633
        %v3635 = vpop.f32.mrb[0].mxu0
        %3636 = vmatprep.mubr.f32.mxu0 0.0
        %3637 = vmatmul.mubr.f32.gmra.mrb[0].mxu0 %v3515
        %v3638 = vpop.f32.mrb[0].mxu0
        %v3639 = vadd.f32 0.0, %v3638
        %v3640 = vpop.f32.mrb[0].mxu0
        %3641 = vmatprep.mubr.f32.mxu0 0.0
        %3642 = vmatmul.mubr.f32.gmra.mrb[0].mxu0 %v3516
        %v3643 = vpop.f32.mrb[0].mxu0
        %v3644 = vadd.f32 0.0, %v3643
        %v3645 = vpop.f32.mrb[0].mxu0
        %3646 = vmatprep.mubr.f32.mxu0 0.0
        %3647 = vmatmul.mubr.f32.gmra.mrb[0].mxu0 %v3517
        %v3648 = vpop.f32.mrb[0].mxu0
        %v3649 = vadd.f32 0.0, %v3648
        %v3650 = vpop.f32.mrb[0].mxu0
        %3651 = vmatprep.mubr.f32.mxu0 0.0
        %3652 = vmatmul.mubr.f32.gmra.mrb[0].mxu0 %v3518
        %v3653 = vpop.f32.mrb[0].mxu0
        %v3654 = vadd.f32 0.0, %v3653
        %v3655 = vpop.f32.mrb[0].mxu0
        %3656 = vmatprep.mubr.f32.mxu0 0.0
        %3657 = vmatmul.mubr.f32.gmra.mrb[0].mxu0 %v3519
        %v3658 = vpop.f32.mrb[0].mxu0
        %v3659 = vadd.f32 0.0, %v3658
        %v3660 = vpop.f32.mrb[0].mxu0
        %3661 = vmatprep.mubr.f32.mxu0 0.0
        %3662 = vmatmul.mubr.f32.gmra.mrb[0].mxu0 %v3520
        %v3663 = vpop.f32.mrb[0].mxu0
        %v3664 = vadd.f32 0.0, %v3663
        %v3665 = vpop.f32.mrb[0].mxu0
        %3666 = vmatprep.mubr.f32.mxu0 0.0
        %3667 = vmatmul.mubr.f32.gmra.mrb[0].mxu0 %v3521
        %v3668 = vpop.f32.mrb[0].mxu0
        %v3669 = vadd.f32 0.0, %v3668
        %v3670 = vpop.f32.mrb[0].mxu0
        %3671 = vmatprep.mubr.f32.mxu0 0.0
        %3672 = vmatmul.mubr.f32.gmra.mrb[0].mxu0 %v3522
        %v3673 = vpop.f32.mrb[0].mxu0
        %v3674 = vadd.f32 0.0, %v3673
        %v3675 = vpop.f32.mrb[0].mxu0
        %3676 = vmatprep.mubr.f32.mxu0 0.0
        %3677 = vmatmul.mubr.f32.gmra.mrb[0].mxu0 %v3523
        %v3678 = vpop.f32.mrb[0].mxu0
        %v3679 = vadd.f32 0.0, %v3678
        %v3680 = vpop.f32.mrb[0].mxu0
        %3681 = vmatprep.mubr.f32.mxu0 0.0
        %3682 = vmatmul.mubr.f32.gmra.mrb[0].mxu0 %v3524
        %v3683 = vpop.f32.mrb[0].mxu0
        %v3684 = vadd.f32 0.0, %v3683
        %v3685 = vpop.f32.mrb[0].mxu0
        %3686 = vmatprep.mubr.f32.mxu0 0.0
        %3687 = vmatmul.mubr.f32.gmra.mrb[0].mxu0 %v3525
        %v3688 = vpop.f32.mrb[0].mxu0
        %v3689 = vadd.f32 0.0, %v3688
        %v3690 = vpop.f32.mrb[0].mxu0
        %3691 = vmatprep.mubr.f32.mxu0 0.0
        %3692 = vmatmul.mubr.f32.gmra.mrb[0].mxu0 %v3526
        %v3693 = vpop.f32.mrb[0].mxu0
        %v3694 = vadd.f32 0.0, %v3693
        %v3695 = vpop.f32.mrb[0].mxu0
        %3696 = vmatprep.mubr.f32.mxu0 0.0
        %3697 = vmatmul.mubr.f32.gmra.mrb[0].mxu0 %v3527
        %v3698 = vpop.f32.mrb[0].mxu0
        %v3699 = vadd.f32 0.0, %v3698
        %v3700 = vpop.f32.mrb[0].mxu0
        %3701 = vmatprep.mubr.f32.mxu0 0.0
        %3702 = vmatmul.mubr.f32.gmra.mrb[0].mxu0 %v3528
        %v3703 = vpop.f32.mrb[0].mxu0
        %v3704 = vadd.f32 0.0, %v3703
        %v3705 = vpop.f32.mrb[0].mxu0
        %3706 = vmatprep.mubr.f32.mxu0 0.0
        %3707 = vmatmul.mubr.f32.gmra.mrb[0].mxu0 %v3529
        %v3708 = vpop.f32.mrb[0].mxu0
        %v3709 = vadd.f32 0.0, %v3708
        %v3710 = vpop.f32.mrb[0].mxu0
        %3711 = vmatprep.mubr.f32.mxu0 0.0
        %3712 = vmatmul.mubr.f32.gmra.mrb[0].mxu0 %v3530
        %v3713 = vpop.f32.mrb[0].mxu0
        %v3714 = vadd.f32 0.0, %v3713
        %v3715 = vpop.f32.mrb[0].mxu0
        %3716 = vmatprep.mubr.f32.mxu0 0.0
        %3717 = vmatmul.mubr.f32.gmra.mrb[0].mxu0 %v3531
        %v3718 = vpop.f32.mrb[0].mxu0
        %v3719 = vadd.f32 0.0, %v3718
        %v3720 = vpop.f32.mrb[0].mxu0
        %3721 = vmatprep.mubr.f32.mxu0 0.0
        %3722 = vmatmul.mubr.f32.gmra.mrb[0].mxu0 %v3532
        %v3723 = vpop.f32.mrb[0].mxu0
        %v3724 = vadd.f32 0.0, %v3723
        %v3725 = vpop.f32.mrb[0].mxu0
        %3726 = vmatprep.mubr.f32.mxu0 0.0
        %3727 = vmatmul.mubr.f32.gmra.mrb[0].mxu0 %v3533
        %v3728 = vpop.f32.mrb[0].mxu0
        %v3729 = vadd.f32 0.0, %v3728
        %v3730 = vpop.f32.mrb[0].mxu0
        %3731 = vmatprep.mubr.f32.mxu0 0.0
        %3732 = vmatmul.mubr.f32.gmra.mrb[0].mxu0 %v3534
        %v3733 = vpop.f32.mrb[0].mxu0
        %v3734 = vadd.f32 0.0, %v3733
        %v3735 = vpop.f32.mrb[0].mxu0
        %3736 = vmatprep.mubr.f32.mxu0 0.0
        %3737 = vmatmul.mubr.f32.gmra.mrb[0].mxu0 %v3535
        %v3738 = vpop.f32.mrb[0].mxu0
        %v3739 = vadd.f32 0.0, %v3738
        %v3740 = vpop.f32.mrb[0].mxu0
        %3741 = vmatprep.mubr.f32.mxu0 0.0
        %3742 = vmatmul.mubr.f32.gmra.mrb[0].mxu0 %v3536
        %v3743 = vpop.f32.mrb[0].mxu0
        %v3744 = vadd.f32 0.0, %v3743
        %v3745 = vpop.f32.mrb[0].mxu0
        %3746 = vmatprep.mubr.f32.mxu0 0.0
        %3747 = vmatmul.mubr.f32.gmra.mrb[0].mxu0 %v3537
        %v3748 = vpop.f32.mrb[0].mxu0
        %v3749 = vadd.f32 0.0, %v3748
        %v3750 = vpop.f32.mrb[0].mxu0
        %3751 = vmatprep.mubr.f32.mxu0 0.0
        %3752 = vmatmul.mubr.f32.gmra.mrb[0].mxu0 %v3538
        %v3753 = vpop.f32.mrb[0].mxu0
        %v3754 = vadd.f32 0.0, %v3753
        %v3755 = vpop.f32.mrb[0].mxu0
        %3756 = vmatprep.mubr.f32.mxu0 0.0
        %3757 = vmatmul.mubr.f32.gmra.mrb[0].mxu0 %v3539
        %v3758 = vpop.f32.mrb[0].mxu0
        %v3759 = vadd.f32 0.0, %v3758
        %v3760 = vpop.f32.mrb[0].mxu0
        %3761 = vmatprep.mubr.f32.mxu0 0.0
        %3762 = vmatmul.mubr.f32.gmra.mrb[0].mxu0 %v3540
        %v3763 = vpop.f32.mrb[0].mxu0
        %v3764 = vadd.f32 0.0, %v3763
        %v3765 = vpop.f32.mrb[0].mxu0
        %3766 = vmatprep.mubr.f32.mxu0 0.0
        %3767 = vmatmul.mubr.f32.gmra.mrb[0].mxu0 %v3541
        %v3768 = vpop.f32.mrb[0].mxu0
        %v3769 = vadd.f32 0.0, %v3768
        %v3770 = vpop.f32.mrb[0].mxu0
        %3771 = vmatprep.mubr.f32.mxu0 0.0
        %3772 = vmatmul.mubr.f32.gmra.mrb[0].mxu0 %v3542
        %v3773 = vpop.f32.mrb[0].mxu0
        %v3774 = vadd.f32 0.0, %v3773
        %v3775 = vpop.f32.mrb[0].mxu0
        %3776 = vmatprep.mubr.f32.mxu0 0.0
        %3777 = vmatmul.mubr.f32.gmra.mrb[0].mxu0 %v3543
        %v3778 = vpop.f32.mrb[0].mxu0
        %v3779 = vadd.f32 0.0, %v3778
        %v3780 = vpop.f32.mrb[0].mxu0
        %3781 = vmatprep.mubr.f32.mxu0 0.0
        %3782 = vmatmul.mubr.f32.gmra.mrb[0].mxu0 %v3544
        %v3783 = vpop.f32.mrb[0].mxu0
        %v3784 = vadd.f32 0.0, %v3783
        %v3785 = vpop.f32.mrb[0].mxu0
        %3786 = vdwg.mxu0
        %v3787 = vld [vmem:[#allocation3] sm:$0xff]
        %v3788 = vld [vmem:[#allocation3 + $0x8] sm:$0xff]
        %v3789 = vld [vmem:[#allocation3 + $0x10] sm:$0xff]
        %v3790 = vld [vmem:[#allocation3 + $0x18] sm:$0xff]
        %v3791 = vld [vmem:[#allocation3 + $0x20] sm:$0xff]
        %v3792 = vld [vmem:[#allocation3 + $0x28] sm:$0xff]
        %v3793 = vld [vmem:[#allocation3 + $0x30] sm:$0xff]
        %v3794 = vld [vmem:[#allocation3 + $0x38] sm:$0xff]
        %v3795 = vld [vmem:[#allocation3 + $0x40] sm:$0xff]
        %v3796 = vld [vmem:[#allocation3 + $0x48] sm:$0xff]
        %v3797 = vld [vmem:[#allocation3 + $0x50] sm:$0xff]
        %v3798 = vld [vmem:[#allocation3 + $0x58] sm:$0xff]
        %v3799 = vld [vmem:[#allocation3 + $0x60] sm:$0xff]
        %v3800 = vld [vmem:[#allocation3 + $0x68] sm:$0xff]
        %v3801 = vld [vmem:[#allocation3 + $0x70] sm:$0xff]
        %v3802 = vld [vmem:[#allocation3 + $0x78] sm:$0xff]
        %v3803 = vld [vmem:[#allocation3 + $0x80] sm:$0xff]
        %v3804 = vld [vmem:[#allocation3 + $0x88] sm:$0xff]
        %v3805 = vld [vmem:[#allocation3 + $0x90] sm:$0xff]
        %v3806 = vld [vmem:[#allocation3 + $0x98] sm:$0xff]
        %v3807 = vld [vmem:[#allocation3 + $0xa0] sm:$0xff]
        %v3808 = vld [vmem:[#allocation3 + $0xa8] sm:$0xff]
        %v3809 = vld [vmem:[#allocation3 + $0xb0] sm:$0xff]
        %v3810 = vld [vmem:[#allocation3 + $0xb8] sm:$0xff]
        %v3811 = vld [vmem:[#allocation3 + $0xc0] sm:$0xff]
        %v3812 = vld [vmem:[#allocation3 + $0xc8] sm:$0xff]
        %v3813 = vld [vmem:[#allocation3 + $0xd0] sm:$0xff]
        %v3814 = vld [vmem:[#allocation3 + $0xd8] sm:$0xff]
        %v3815 = vld [vmem:[#allocation3 + $0xe0] sm:$0xff]
        %v3816 = vld [vmem:[#allocation3 + $0xe8] sm:$0xff]
        %v3817 = vld [vmem:[#allocation3 + $0xf0] sm:$0xff]
        %v3818 = vld [vmem:[#allocation3 + $0xf8] sm:$0xff]
        %v3819 = vadd.f32 %v3787, %v3629
        %v3820 = vadd.f32 %v3788, %v3634
        %v3821 = vadd.f32 %v3789, %v3639
        %v3822 = vadd.f32 %v3790, %v3644
        %v3823 = vadd.f32 %v3791, %v3649
        %v3824 = vadd.f32 %v3792, %v3654
        %v3825 = vadd.f32 %v3793, %v3659
        %v3826 = vadd.f32 %v3794, %v3664
        %v3827 = vadd.f32 %v3795, %v3669
        %v3828 = vadd.f32 %v3796, %v3674
        %v3829 = vadd.f32 %v3797, %v3679
        %v3830 = vadd.f32 %v3798, %v3684
        %v3831 = vadd.f32 %v3799, %v3689
        %v3832 = vadd.f32 %v3800, %v3694
        %v3833 = vadd.f32 %v3801, %v3699
        %v3834 = vadd.f32 %v3802, %v3704
        %v3835 = vadd.f32 %v3803, %v3709
        %v3836 = vadd.f32 %v3804, %v3714
        %v3837 = vadd.f32 %v3805, %v3719
        %v3838 = vadd.f32 %v3806, %v3724
        %v3839 = vadd.f32 %v3807, %v3729
        %v3840 = vadd.f32 %v3808, %v3734
        %v3841 = vadd.f32 %v3809, %v3739
        %v3842 = vadd.f32 %v3810, %v3744
        %v3843 = vadd.f32 %v3811, %v3749
        %v3844 = vadd.f32 %v3812, %v3754
        %v3845 = vadd.f32 %v3813, %v3759
        %v3846 = vadd.f32 %v3814, %v3764
        %v3847 = vadd.f32 %v3815, %v3769
        %v3848 = vadd.f32 %v3816, %v3774
        %v3849 = vadd.f32 %v3817, %v3779
        %v3850 = vadd.f32 %v3818, %v3784
        %3851 = vst [vmem:[#allocation3] sm:$0xff] %v3819
        %3852 = vst [vmem:[#allocation3 + $0x8] sm:$0xff] %v3820
        %3853 = vst [vmem:[#allocation3 + $0x10] sm:$0xff] %v3821
        %3854 = vst [vmem:[#allocation3 + $0x18] sm:$0xff] %v3822
        %3855 = vst [vmem:[#allocation3 + $0x20] sm:$0xff] %v3823
        %3856 = vst [vmem:[#allocation3 + $0x28] sm:$0xff] %v3824
        %3857 = vst [vmem:[#allocation3 + $0x30] sm:$0xff] %v3825
        %3858 = vst [vmem:[#allocation3 + $0x38] sm:$0xff] %v3826
        %3859 = vst [vmem:[#allocation3 + $0x40] sm:$0xff] %v3827
        %3860 = vst [vmem:[#allocation3 + $0x48] sm:$0xff] %v3828
        %3861 = vst [vmem:[#allocation3 + $0x50] sm:$0xff] %v3829
        %3862 = vst [vmem:[#allocation3 + $0x58] sm:$0xff] %v3830
        %3863 = vst [vmem:[#allocation3 + $0x60] sm:$0xff] %v3831
        %3864 = vst [vmem:[#allocation3 + $0x68] sm:$0xff] %v3832
        %3865 = vst [vmem:[#allocation3 + $0x70] sm:$0xff] %v3833
        %3866 = vst [vmem:[#allocation3 + $0x78] sm:$0xff] %v3834
        %3867 = vst [vmem:[#allocation3 + $0x80] sm:$0xff] %v3835
        %3868 = vst [vmem:[#allocation3 + $0x88] sm:$0xff] %v3836
        %3869 = vst [vmem:[#allocation3 + $0x90] sm:$0xff] %v3837
        %3870 = vst [vmem:[#allocation3 + $0x98] sm:$0xff] %v3838
        %3871 = vst [vmem:[#allocation3 + $0xa0] sm:$0xff] %v3839
        %3872 = vst [vmem:[#allocation3 + $0xa8] sm:$0xff] %v3840
        %3873 = vst [vmem:[#allocation3 + $0xb0] sm:$0xff] %v3841
        %3874 = vst [vmem:[#allocation3 + $0xb8] sm:$0xff] %v3842
        %3875 = vst [vmem:[#allocation3 + $0xc0] sm:$0xff] %v3843
        %3876 = vst [vmem:[#allocation3 + $0xc8] sm:$0xff] %v3844
        %3877 = vst [vmem:[#allocation3 + $0xd0] sm:$0xff] %v3845
        %3878 = vst [vmem:[#allocation3 + $0xd8] sm:$0xff] %v3846
        %3879 = vst [vmem:[#allocation3 + $0xe0] sm:$0xff] %v3847
        %3880 = vst [vmem:[#allocation3 + $0xe8] sm:$0xff] %v3848
        %3881 = vst [vmem:[#allocation3 + $0xf0] sm:$0xff] %v3849
        %3882 = vst [vmem:[#allocation3 + $0xf8] sm:$0xff] %v3850
        %v3883 = vld [vmem:[#allocation2 + $0x29] sm:$0xff]
        %v3884 = vld [vmem:[#allocation2 + $0x31] sm:$0xff]
        %v3885 = vld [vmem:[#allocation2 + $0x39] sm:$0xff]
        %v3886 = vld [vmem:[#allocation2 + $0x41] sm:$0xff]
        %v3887 = vld [vmem:[#allocation2 + $0x49] sm:$0xff]
        %v3888 = vld [vmem:[#allocation2 + $0x51] sm:$0xff]
        %v3889 = vld [vmem:[#allocation2 + $0x59] sm:$0xff]
        %v3890 = vld [vmem:[#allocation2 + $0x61] sm:$0xff]
        %v3891 = vld [vmem:[#allocation2 + $0x69] sm:$0xff]
        %v3892 = vld [vmem:[#allocation2 + $0x71] sm:$0xff]
        %v3893 = vld [vmem:[#allocation2 + $0x79] sm:$0xff]
        %v3894 = vld [vmem:[#allocation2 + $0x81] sm:$0xff]
        %v3895 = vld [vmem:[#allocation2 + $0x89] sm:$0xff]
        %v3896 = vld [vmem:[#allocation2 + $0x91] sm:$0xff]
        %v3897 = vld [vmem:[#allocation2 + $0x99] sm:$0xff]
        %v3898 = vld [vmem:[#allocation2 + $0xa1] sm:$0xff]
        %v3899 = vld [vmem:[#allocation2 + $0xa9] sm:$0xff]
        %v3900 = vld [vmem:[#allocation2 + $0xb1] sm:$0xff]
        %v3901 = vld [vmem:[#allocation2 + $0xb9] sm:$0xff]
        %v3902 = vld [vmem:[#allocation2 + $0xc1] sm:$0xff]
        %v3903 = vld [vmem:[#allocation2 + $0xc9] sm:$0xff]
        %v3904 = vld [vmem:[#allocation2 + $0xd1] sm:$0xff]
        %v3905 = vld [vmem:[#allocation2 + $0xd9] sm:$0xff]
        %v3906 = vld [vmem:[#allocation2 + $0xe1] sm:$0xff]
        %v3907 = vld [vmem:[#allocation2 + $0xe9] sm:$0xff]
        %v3908 = vld [vmem:[#allocation2 + $0xf1] sm:$0xff]
        %v3909 = vld [vmem:[#allocation2 + $0xf9] sm:$0xff]
        %v3910 = vld [vmem:[#allocation2 + $0x101] sm:$0xff]
        %v3911 = vld [vmem:[#allocation2 + $0x109] sm:$0xff]
        %v3912 = vld [vmem:[#allocation2 + $0x111] sm:$0xff]
        %v3913 = vld [vmem:[#allocation2 + $0x119] sm:$0xff]
        %v3914 = vld [vmem:[#allocation2 + $0x121] sm:$0xff]
        %v3915 = vsel %vm726, %v3883, 0.0
        %v3916 = vsel %vm727, %v3884, 0.0
        %v3917 = vsel %vm728, %v3885, 0.0
        %v3918 = vsel %vm729, %v3886, 0.0
        %v3919 = vsel %vm730, %v3887, 0.0
        %v3920 = vsel %vm731, %v3888, 0.0
        %v3921 = vsel %vm732, %v3889, 0.0
        %v3922 = vsel %vm733, %v3890, 0.0
        %v3923 = vsel %vm734, %v3891, 0.0
        %v3924 = vsel %vm735, %v3892, 0.0
        %v3925 = vsel %vm736, %v3893, 0.0
        %v3926 = vsel %vm737, %v3894, 0.0
        %v3927 = vsel %vm738, %v3895, 0.0
        %v3928 = vsel %vm739, %v3896, 0.0
        %v3929 = vsel %vm740, %v3897, 0.0
        %v3930 = vsel %vm741, %v3898, 0.0
        %v3931 = vsel %vm742, %v3899, 0.0
        %v3932 = vsel %vm743, %v3900, 0.0
        %v3933 = vsel %vm744, %v3901, 0.0
        %v3934 = vsel %vm745, %v3902, 0.0
        %v3935 = vsel %vm746, %v3903, 0.0
        %v3936 = vsel %vm747, %v3904, 0.0
        %v3937 = vsel %vm748, %v3905, 0.0
        %v3938 = vsel %vm749, %v3906, 0.0
        %v3939 = vsel %vm750, %v3907, 0.0
        %v3940 = vsel %vm751, %v3908, 0.0
        %v3941 = vsel %vm752, %v3909, 0.0
        %v3942 = vsel %vm753, %v3910, 0.0
        %v3943 = vsel %vm754, %v3911, 0.0
        %v3944 = vsel %vm755, %v3912, 0.0
        %v3945 = vsel %vm756, %v3913, 0.0
        %v3946 = vsel %vm757, %v3914, 0.0
        %s3947 = scalar_lea.vmem [#allocation7], 1024
        %v3948 = vld [vmem:[%s3947] sm:$0xff]
        %v3949 = vld [vmem:[%s3947 + $0x8] sm:$0xff]
        %v3950 = vld [vmem:[%s3947 + $0x10] sm:$0xff]
        %v3951 = vld [vmem:[%s3947 + $0x18] sm:$0xff]
        %v3952 = vld [vmem:[%s3947 + $0x20] sm:$0xff]
        %v3953 = vld [vmem:[%s3947 + $0x28] sm:$0xff]
        %v3954 = vld [vmem:[%s3947 + $0x30] sm:$0xff]
        %v3955 = vld [vmem:[%s3947 + $0x38] sm:$0xff]
        %v3956 = vld [vmem:[%s3947 + $0x40] sm:$0xff]
        %v3957 = vld [vmem:[%s3947 + $0x48] sm:$0xff]
        %v3958 = vld [vmem:[%s3947 + $0x50] sm:$0xff]
        %v3959 = vld [vmem:[%s3947 + $0x58] sm:$0xff]
        %v3960 = vld [vmem:[%s3947 + $0x60] sm:$0xff]
        %v3961 = vld [vmem:[%s3947 + $0x68] sm:$0xff]
        %v3962 = vld [vmem:[%s3947 + $0x70] sm:$0xff]
        %v3963 = vld [vmem:[%s3947 + $0x78] sm:$0xff]
        %3964 = vmatprep.subr.mxu0 0.0
        %3965 = vmatpush1.msra.mxu0 %v3948
        %3966 = vmatprep.subr.mxu0 0.0
        %3967 = vmatpush1.msra.mxu0 %v3949
        %3968 = vmatprep.subr.mxu0 0.0
        %3969 = vmatpush1.msra.mxu0 %v3950
        %3970 = vmatprep.subr.mxu0 0.0
        %3971 = vmatpush1.msra.mxu0 %v3951
        %3972 = vmatprep.subr.mxu0 0.0
        %3973 = vmatpush1.msra.mxu0 %v3952
        %3974 = vmatprep.subr.mxu0 0.0
        %3975 = vmatpush1.msra.mxu0 %v3953
        %3976 = vmatprep.subr.mxu0 0.0
        %3977 = vmatpush1.msra.mxu0 %v3954
        %3978 = vmatprep.subr.mxu0 0.0
        %3979 = vmatpush1.msra.mxu0 %v3955
        %3980 = vmatprep.subr.mxu0 0.0
        %3981 = vmatpush1.msra.mxu0 %v3956
        %3982 = vmatprep.subr.mxu0 0.0
        %3983 = vmatpush1.msra.mxu0 %v3957
        %3984 = vmatprep.subr.mxu0 0.0
        %3985 = vmatpush1.msra.mxu0 %v3958
        %3986 = vmatprep.subr.mxu0 0.0
        %3987 = vmatpush1.msra.mxu0 %v3959
        %3988 = vmatprep.subr.mxu0 0.0
        %3989 = vmatpush1.msra.mxu0 %v3960
        %3990 = vmatprep.subr.mxu0 0.0
        %3991 = vmatpush1.msra.mxu0 %v3961
        %3992 = vmatprep.subr.mxu0 0.0
        %3993 = vmatpush1.msra.mxu0 %v3962
        %3994 = vmatprep.subr.mxu0 0.0
        %3995 = vmatpush1.msra.mxu0 %v3963
        %3996 = vmatprep.subr.mxu0 0.0
        %3997 = vmatpush1.msra.mxu0 0.0
        %3998 = vmatprep.subr.mxu0 0.0
        %3999 = vmatpush1.msra.mxu0 0.0
        %4000 = vmatprep.subr.mxu0 0.0
        %4001 = vmatpush1.msra.mxu0 0.0
        %4002 = vmatprep.subr.mxu0 0.0
        %4003 = vmatpush1.msra.mxu0 0.0
        %4004 = vmatprep.subr.mxu0 0.0
        %4005 = vmatpush1.msra.mxu0 0.0
        %4006 = vmatprep.subr.mxu0 0.0
        %4007 = vmatpush1.msra.mxu0 0.0
        %4008 = vmatprep.subr.mxu0 0.0
        %4009 = vmatpush1.msra.mxu0 0.0
        %4010 = vmatprep.subr.mxu0 0.0
        %4011 = vmatpush1.msra.mxu0 0.0
        %4012 = vmatprep.subr.mxu0 0.0
        %4013 = vmatpush1.msra.mxu0 0.0
        %4014 = vmatprep.subr.mxu0 0.0
        %4015 = vmatpush1.msra.mxu0 0.0
        %4016 = vmatprep.subr.mxu0 0.0
        %4017 = vmatpush1.msra.mxu0 0.0
        %4018 = vmatprep.subr.mxu0 0.0
        %4019 = vmatpush1.msra.mxu0 0.0
        %4020 = vmatprep.subr.mxu0 0.0
        %4021 = vmatpush1.msra.mxu0 0.0
        %4022 = vmatprep.subr.mxu0 0.0
        %4023 = vmatpush1.msra.mxu0 0.0
        %4024 = vmatprep.subr.mxu0 0.0
        %4025 = vmatpush1.msra.mxu0 0.0
        %4026 = vmatprep.subr.mxu0 0.0
        %4027 = vmatpush1.msra.mxu0 0.0
        %4028 = vmatprep.mubr.f32.mxu0 0.0
        %4029 = vmatmul.mubr.f32.gmra.mrb[0].mxu0 %v3915
        %v4030 = vpop.f32.mrb[0].mxu0
        %v4031 = vadd.f32 0.0, %v4030
        %v4032 = vpop.f32.mrb[0].mxu0
        %4033 = vmatprep.mubr.f32.mxu0 0.0
        %4034 = vmatmul.mubr.f32.gmra.mrb[0].mxu0 %v3916
        %v4035 = vpop.f32.mrb[0].mxu0
        %v4036 = vadd.f32 0.0, %v4035
        %v4037 = vpop.f32.mrb[0].mxu0
        %4038 = vmatprep.mubr.f32.mxu0 0.0
        %4039 = vmatmul.mubr.f32.gmra.mrb[0].mxu0 %v3917
        %v4040 = vpop.f32.mrb[0].mxu0
        %v4041 = vadd.f32 0.0, %v4040
        %v4042 = vpop.f32.mrb[0].mxu0
        %4043 = vmatprep.mubr.f32.mxu0 0.0
        %4044 = vmatmul.mubr.f32.gmra.mrb[0].mxu0 %v3918
        %v4045 = vpop.f32.mrb[0].mxu0
        %v4046 = vadd.f32 0.0, %v4045
        %v4047 = vpop.f32.mrb[0].mxu0
        %4048 = vmatprep.mubr.f32.mxu0 0.0
        %4049 = vmatmul.mubr.f32.gmra.mrb[0].mxu0 %v3919
        %v4050 = vpop.f32.mrb[0].mxu0
        %v4051 = vadd.f32 0.0, %v4050
        %v4052 = vpop.f32.mrb[0].mxu0
        %4053 = vmatprep.mubr.f32.mxu0 0.0
        %4054 = vmatmul.mubr.f32.gmra.mrb[0].mxu0 %v3920
        %v4055 = vpop.f32.mrb[0].mxu0
        %v4056 = vadd.f32 0.0, %v4055
        %v4057 = vpop.f32.mrb[0].mxu0
        %4058 = vmatprep.mubr.f32.mxu0 0.0
        %4059 = vmatmul.mubr.f32.gmra.mrb[0].mxu0 %v3921
        %v4060 = vpop.f32.mrb[0].mxu0
        %v4061 = vadd.f32 0.0, %v4060
        %v4062 = vpop.f32.mrb[0].mxu0
        %4063 = vmatprep.mubr.f32.mxu0 0.0
        %4064 = vmatmul.mubr.f32.gmra.mrb[0].mxu0 %v3922
        %v4065 = vpop.f32.mrb[0].mxu0
        %v4066 = vadd.f32 0.0, %v4065
        %v4067 = vpop.f32.mrb[0].mxu0
        %4068 = vmatprep.mubr.f32.mxu0 0.0
        %4069 = vmatmul.mubr.f32.gmra.mrb[0].mxu0 %v3923
        %v4070 = vpop.f32.mrb[0].mxu0
        %v4071 = vadd.f32 0.0, %v4070
        %v4072 = vpop.f32.mrb[0].mxu0
        %4073 = vmatprep.mubr.f32.mxu0 0.0
        %4074 = vmatmul.mubr.f32.gmra.mrb[0].mxu0 %v3924
        %v4075 = vpop.f32.mrb[0].mxu0
        %v4076 = vadd.f32 0.0, %v4075
        %v4077 = vpop.f32.mrb[0].mxu0
        %4078 = vmatprep.mubr.f32.mxu0 0.0
        %4079 = vmatmul.mubr.f32.gmra.mrb[0].mxu0 %v3925
        %v4080 = vpop.f32.mrb[0].mxu0
        %v4081 = vadd.f32 0.0, %v4080
        %v4082 = vpop.f32.mrb[0].mxu0
        %4083 = vmatprep.mubr.f32.mxu0 0.0
        %4084 = vmatmul.mubr.f32.gmra.mrb[0].mxu0 %v3926
        %v4085 = vpop.f32.mrb[0].mxu0
        %v4086 = vadd.f32 0.0, %v4085
        %v4087 = vpop.f32.mrb[0].mxu0
        %4088 = vmatprep.mubr.f32.mxu0 0.0
        %4089 = vmatmul.mubr.f32.gmra.mrb[0].mxu0 %v3927
        %v4090 = vpop.f32.mrb[0].mxu0
        %v4091 = vadd.f32 0.0, %v4090
        %v4092 = vpop.f32.mrb[0].mxu0
        %4093 = vmatprep.mubr.f32.mxu0 0.0
        %4094 = vmatmul.mubr.f32.gmra.mrb[0].mxu0 %v3928
        %v4095 = vpop.f32.mrb[0].mxu0
        %v4096 = vadd.f32 0.0, %v4095
        %v4097 = vpop.f32.mrb[0].mxu0
        %4098 = vmatprep.mubr.f32.mxu0 0.0
        %4099 = vmatmul.mubr.f32.gmra.mrb[0].mxu0 %v3929
        %v4100 = vpop.f32.mrb[0].mxu0
        %v4101 = vadd.f32 0.0, %v4100
        %v4102 = vpop.f32.mrb[0].mxu0
        %4103 = vmatprep.mubr.f32.mxu0 0.0
        %4104 = vmatmul.mubr.f32.gmra.mrb[0].mxu0 %v3930
        %v4105 = vpop.f32.mrb[0].mxu0
        %v4106 = vadd.f32 0.0, %v4105
        %v4107 = vpop.f32.mrb[0].mxu0
        %4108 = vmatprep.mubr.f32.mxu0 0.0
        %4109 = vmatmul.mubr.f32.gmra.mrb[0].mxu0 %v3931
        %v4110 = vpop.f32.mrb[0].mxu0
        %v4111 = vadd.f32 0.0, %v4110
        %v4112 = vpop.f32.mrb[0].mxu0
        %4113 = vmatprep.mubr.f32.mxu0 0.0
        %4114 = vmatmul.mubr.f32.gmra.mrb[0].mxu0 %v3932
        %v4115 = vpop.f32.mrb[0].mxu0
        %v4116 = vadd.f32 0.0, %v4115
        %v4117 = vpop.f32.mrb[0].mxu0
        %4118 = vmatprep.mubr.f32.mxu0 0.0
        %4119 = vmatmul.mubr.f32.gmra.mrb[0].mxu0 %v3933
        %v4120 = vpop.f32.mrb[0].mxu0
        %v4121 = vadd.f32 0.0, %v4120
        %v4122 = vpop.f32.mrb[0].mxu0
        %4123 = vmatprep.mubr.f32.mxu0 0.0
        %4124 = vmatmul.mubr.f32.gmra.mrb[0].mxu0 %v3934
        %v4125 = vpop.f32.mrb[0].mxu0
        %v4126 = vadd.f32 0.0, %v4125
        %v4127 = vpop.f32.mrb[0].mxu0
        %4128 = vmatprep.mubr.f32.mxu0 0.0
        %4129 = vmatmul.mubr.f32.gmra.mrb[0].mxu0 %v3935
        %v4130 = vpop.f32.mrb[0].mxu0
        %v4131 = vadd.f32 0.0, %v4130
        %v4132 = vpop.f32.mrb[0].mxu0
        %4133 = vmatprep.mubr.f32.mxu0 0.0
        %4134 = vmatmul.mubr.f32.gmra.mrb[0].mxu0 %v3936
        %v4135 = vpop.f32.mrb[0].mxu0
        %v4136 = vadd.f32 0.0, %v4135
        %v4137 = vpop.f32.mrb[0].mxu0
        %4138 = vmatprep.mubr.f32.mxu0 0.0
        %4139 = vmatmul.mubr.f32.gmra.mrb[0].mxu0 %v3937
        %v4140 = vpop.f32.mrb[0].mxu0
        %v4141 = vadd.f32 0.0, %v4140
        %v4142 = vpop.f32.mrb[0].mxu0
        %4143 = vmatprep.mubr.f32.mxu0 0.0
        %4144 = vmatmul.mubr.f32.gmra.mrb[0].mxu0 %v3938
        %v4145 = vpop.f32.mrb[0].mxu0
        %v4146 = vadd.f32 0.0, %v4145
        %v4147 = vpop.f32.mrb[0].mxu0
        %4148 = vmatprep.mubr.f32.mxu0 0.0
        %4149 = vmatmul.mubr.f32.gmra.mrb[0].mxu0 %v3939
        %v4150 = vpop.f32.mrb[0].mxu0
        %v4151 = vadd.f32 0.0, %v4150
        %v4152 = vpop.f32.mrb[0].mxu0
        %4153 = vmatprep.mubr.f32.mxu0 0.0
        %4154 = vmatmul.mubr.f32.gmra.mrb[0].mxu0 %v3940
        %v4155 = vpop.f32.mrb[0].mxu0
        %v4156 = vadd.f32 0.0, %v4155
        %v4157 = vpop.f32.mrb[0].mxu0
        %4158 = vmatprep.mubr.f32.mxu0 0.0
        %4159 = vmatmul.mubr.f32.gmra.mrb[0].mxu0 %v3941
        %v4160 = vpop.f32.mrb[0].mxu0
        %v4161 = vadd.f32 0.0, %v4160
        %v4162 = vpop.f32.mrb[0].mxu0
        %4163 = vmatprep.mubr.f32.mxu0 0.0
        %4164 = vmatmul.mubr.f32.gmra.mrb[0].mxu0 %v3942
        %v4165 = vpop.f32.mrb[0].mxu0
        %v4166 = vadd.f32 0.0, %v4165
        %v4167 = vpop.f32.mrb[0].mxu0
        %4168 = vmatprep.mubr.f32.mxu0 0.0
        %4169 = vmatmul.mubr.f32.gmra.mrb[0].mxu0 %v3943
        %v4170 = vpop.f32.mrb[0].mxu0
        %v4171 = vadd.f32 0.0, %v4170
        %v4172 = vpop.f32.mrb[0].mxu0
        %4173 = vmatprep.mubr.f32.mxu0 0.0
        %4174 = vmatmul.mubr.f32.gmra.mrb[0].mxu0 %v3944
        %v4175 = vpop.f32.mrb[0].mxu0
        %v4176 = vadd.f32 0.0, %v4175
        %v4177 = vpop.f32.mrb[0].mxu0
        %4178 = vmatprep.mubr.f32.mxu0 0.0
        %4179 = vmatmul.mubr.f32.gmra.mrb[0].mxu0 %v3945
        %v4180 = vpop.f32.mrb[0].mxu0
        %v4181 = vadd.f32 0.0, %v4180
        %v4182 = vpop.f32.mrb[0].mxu0
        %4183 = vmatprep.mubr.f32.mxu0 0.0
        %4184 = vmatmul.mubr.f32.gmra.mrb[0].mxu0 %v3946
        %v4185 = vpop.f32.mrb[0].mxu0
        %v4186 = vadd.f32 0.0, %v4185
        %v4187 = vpop.f32.mrb[0].mxu0
        %4188 = vdwg.mxu0
        %v4189 = vld [vmem:[#allocation3] sm:$0xff]
        %v4190 = vld [vmem:[#allocation3 + $0x8] sm:$0xff]
        %v4191 = vld [vmem:[#allocation3 + $0x10] sm:$0xff]
        %v4192 = vld [vmem:[#allocation3 + $0x18] sm:$0xff]
        %v4193 = vld [vmem:[#allocation3 + $0x20] sm:$0xff]
        %v4194 = vld [vmem:[#allocation3 + $0x28] sm:$0xff]
        %v4195 = vld [vmem:[#allocation3 + $0x30] sm:$0xff]
        %v4196 = vld [vmem:[#allocation3 + $0x38] sm:$0xff]
        %v4197 = vld [vmem:[#allocation3 + $0x40] sm:$0xff]
        %v4198 = vld [vmem:[#allocation3 + $0x48] sm:$0xff]
        %v4199 = vld [vmem:[#allocation3 + $0x50] sm:$0xff]
        %v4200 = vld [vmem:[#allocation3 + $0x58] sm:$0xff]
        %v4201 = vld [vmem:[#allocation3 + $0x60] sm:$0xff]
        %v4202 = vld [vmem:[#allocation3 + $0x68] sm:$0xff]
        %v4203 = vld [vmem:[#allocation3 + $0x70] sm:$0xff]
        %v4204 = vld [vmem:[#allocation3 + $0x78] sm:$0xff]
        %v4205 = vld [vmem:[#allocation3 + $0x80] sm:$0xff]
        %v4206 = vld [vmem:[#allocation3 + $0x88] sm:$0xff]
        %v4207 = vld [vmem:[#allocation3 + $0x90] sm:$0xff]
        %v4208 = vld [vmem:[#allocation3 + $0x98] sm:$0xff]
        %v4209 = vld [vmem:[#allocation3 + $0xa0] sm:$0xff]
        %v4210 = vld [vmem:[#allocation3 + $0xa8] sm:$0xff]
        %v4211 = vld [vmem:[#allocation3 + $0xb0] sm:$0xff]
        %v4212 = vld [vmem:[#allocation3 + $0xb8] sm:$0xff]
        %v4213 = vld [vmem:[#allocation3 + $0xc0] sm:$0xff]
        %v4214 = vld [vmem:[#allocation3 + $0xc8] sm:$0xff]
        %v4215 = vld [vmem:[#allocation3 + $0xd0] sm:$0xff]
        %v4216 = vld [vmem:[#allocation3 + $0xd8] sm:$0xff]
        %v4217 = vld [vmem:[#allocation3 + $0xe0] sm:$0xff]
        %v4218 = vld [vmem:[#allocation3 + $0xe8] sm:$0xff]
        %v4219 = vld [vmem:[#allocation3 + $0xf0] sm:$0xff]
        %v4220 = vld [vmem:[#allocation3 + $0xf8] sm:$0xff]
        %v4221 = vadd.f32 %v4189, %v4031
        %v4222 = vadd.f32 %v4190, %v4036
        %v4223 = vadd.f32 %v4191, %v4041
        %v4224 = vadd.f32 %v4192, %v4046
        %v4225 = vadd.f32 %v4193, %v4051
        %v4226 = vadd.f32 %v4194, %v4056
        %v4227 = vadd.f32 %v4195, %v4061
        %v4228 = vadd.f32 %v4196, %v4066
        %v4229 = vadd.f32 %v4197, %v4071
        %v4230 = vadd.f32 %v4198, %v4076
        %v4231 = vadd.f32 %v4199, %v4081
        %v4232 = vadd.f32 %v4200, %v4086
        %v4233 = vadd.f32 %v4201, %v4091
        %v4234 = vadd.f32 %v4202, %v4096
        %v4235 = vadd.f32 %v4203, %v4101
        %v4236 = vadd.f32 %v4204, %v4106
        %v4237 = vadd.f32 %v4205, %v4111
        %v4238 = vadd.f32 %v4206, %v4116
        %v4239 = vadd.f32 %v4207, %v4121
        %v4240 = vadd.f32 %v4208, %v4126
        %v4241 = vadd.f32 %v4209, %v4131
        %v4242 = vadd.f32 %v4210, %v4136
        %v4243 = vadd.f32 %v4211, %v4141
        %v4244 = vadd.f32 %v4212, %v4146
        %v4245 = vadd.f32 %v4213, %v4151
        %v4246 = vadd.f32 %v4214, %v4156
        %v4247 = vadd.f32 %v4215, %v4161
        %v4248 = vadd.f32 %v4216, %v4166
        %v4249 = vadd.f32 %v4217, %v4171
        %v4250 = vadd.f32 %v4218, %v4176
        %v4251 = vadd.f32 %v4219, %v4181
        %v4252 = vadd.f32 %v4220, %v4186
        %4253 = vst [vmem:[#allocation3] sm:$0xff] %v4221
        %4254 = vst [vmem:[#allocation3 + $0x8] sm:$0xff] %v4222
        %4255 = vst [vmem:[#allocation3 + $0x10] sm:$0xff] %v4223
        %4256 = vst [vmem:[#allocation3 + $0x18] sm:$0xff] %v4224
        %4257 = vst [vmem:[#allocation3 + $0x20] sm:$0xff] %v4225
        %4258 = vst [vmem:[#allocation3 + $0x28] sm:$0xff] %v4226
        %4259 = vst [vmem:[#allocation3 + $0x30] sm:$0xff] %v4227
        %4260 = vst [vmem:[#allocation3 + $0x38] sm:$0xff] %v4228
        %4261 = vst [vmem:[#allocation3 + $0x40] sm:$0xff] %v4229
        %4262 = vst [vmem:[#allocation3 + $0x48] sm:$0xff] %v4230
        %4263 = vst [vmem:[#allocation3 + $0x50] sm:$0xff] %v4231
        %4264 = vst [vmem:[#allocation3 + $0x58] sm:$0xff] %v4232
        %4265 = vst [vmem:[#allocation3 + $0x60] sm:$0xff] %v4233
        %4266 = vst [vmem:[#allocation3 + $0x68] sm:$0xff] %v4234
        %4267 = vst [vmem:[#allocation3 + $0x70] sm:$0xff] %v4235
        %4268 = vst [vmem:[#allocation3 + $0x78] sm:$0xff] %v4236
        %4269 = vst [vmem:[#allocation3 + $0x80] sm:$0xff] %v4237
        %4270 = vst [vmem:[#allocation3 + $0x88] sm:$0xff] %v4238
        %4271 = vst [vmem:[#allocation3 + $0x90] sm:$0xff] %v4239
        %4272 = vst [vmem:[#allocation3 + $0x98] sm:$0xff] %v4240
        %4273 = vst [vmem:[#allocation3 + $0xa0] sm:$0xff] %v4241
        %4274 = vst [vmem:[#allocation3 + $0xa8] sm:$0xff] %v4242
        %4275 = vst [vmem:[#allocation3 + $0xb0] sm:$0xff] %v4243
        %4276 = vst [vmem:[#allocation3 + $0xb8] sm:$0xff] %v4244
        %4277 = vst [vmem:[#allocation3 + $0xc0] sm:$0xff] %v4245
        %4278 = vst [vmem:[#allocation3 + $0xc8] sm:$0xff] %v4246
        %4279 = vst [vmem:[#allocation3 + $0xd0] sm:$0xff] %v4247
        %4280 = vst [vmem:[#allocation3 + $0xd8] sm:$0xff] %v4248
        %4281 = vst [vmem:[#allocation3 + $0xe0] sm:$0xff] %v4249
        %4282 = vst [vmem:[#allocation3 + $0xe8] sm:$0xff] %v4250
        %4283 = vst [vmem:[#allocation3 + $0xf0] sm:$0xff] %v4251
        %4284 = vst [vmem:[#allocation3 + $0xf8] sm:$0xff] %v4252
        %v4285 = vld [vmem:[#allocation3] sm:$0xff]
        %v4286 = vld [vmem:[#allocation3 + $0x8] sm:$0xff]
        %v4287 = vld [vmem:[#allocation3 + $0x10] sm:$0xff]
        %v4288 = vld [vmem:[#allocation3 + $0x18] sm:$0xff]
        %v4289 = vld [vmem:[#allocation3 + $0x20] sm:$0xff]
        %v4290 = vld [vmem:[#allocation3 + $0x28] sm:$0xff]
        %v4291 = vld [vmem:[#allocation3 + $0x30] sm:$0xff]
        %v4292 = vld [vmem:[#allocation3 + $0x38] sm:$0xff]
        %v4293 = vld [vmem:[#allocation3 + $0x40] sm:$0xff]
        %v4294 = vld [vmem:[#allocation3 + $0x48] sm:$0xff]
        %v4295 = vld [vmem:[#allocation3 + $0x50] sm:$0xff]
        %v4296 = vld [vmem:[#allocation3 + $0x58] sm:$0xff]
        %v4297 = vld [vmem:[#allocation3 + $0x60] sm:$0xff]
        %v4298 = vld [vmem:[#allocation3 + $0x68] sm:$0xff]
        %v4299 = vld [vmem:[#allocation3 + $0x70] sm:$0xff]
        %v4300 = vld [vmem:[#allocation3 + $0x78] sm:$0xff]
        %v4301 = vld [vmem:[#allocation3 + $0x80] sm:$0xff]
        %v4302 = vld [vmem:[#allocation3 + $0x88] sm:$0xff]
        %v4303 = vld [vmem:[#allocation3 + $0x90] sm:$0xff]
        %v4304 = vld [vmem:[#allocation3 + $0x98] sm:$0xff]
        %v4305 = vld [vmem:[#allocation3 + $0xa0] sm:$0xff]
        %v4306 = vld [vmem:[#allocation3 + $0xa8] sm:$0xff]
        %v4307 = vld [vmem:[#allocation3 + $0xb0] sm:$0xff]
        %v4308 = vld [vmem:[#allocation3 + $0xb8] sm:$0xff]
        %v4309 = vld [vmem:[#allocation3 + $0xc0] sm:$0xff]
        %v4310 = vld [vmem:[#allocation3 + $0xc8] sm:$0xff]
        %v4311 = vld [vmem:[#allocation3 + $0xd0] sm:$0xff]
        %v4312 = vld [vmem:[#allocation3 + $0xd8] sm:$0xff]
        %v4313 = vld [vmem:[#allocation3 + $0xe0] sm:$0xff]
        %v4314 = vld [vmem:[#allocation3 + $0xe8] sm:$0xff]
        %v4315 = vld [vmem:[#allocation3 + $0xf0] sm:$0xff]
        %v4316 = vld [vmem:[#allocation3 + $0xf8] sm:$0xff]
        %v4317 = vld [vmem:[%s273] sm:$0x1]
        %v4319 = vlaneseq
        %v4320 = vshrl.u32 %v4319, 7
        %v4321 = vsub.s32 0, %v4320
        %v4322 = vrot.slane %v4317, %v4321
        %v4324 = vmul.f32 %v4285, %v4322
        %v4325 = vmul.f32 %v4286, %v4322
        %v4326 = vmul.f32 %v4287, %v4322
        %v4327 = vmul.f32 %v4288, %v4322
        %v4328 = vmul.f32 %v4289, %v4322
        %v4329 = vmul.f32 %v4290, %v4322
        %v4330 = vmul.f32 %v4291, %v4322
        %v4331 = vmul.f32 %v4292, %v4322
        %v4332 = vmul.f32 %v4293, %v4322
        %v4333 = vmul.f32 %v4294, %v4322
        %v4334 = vmul.f32 %v4295, %v4322
        %v4335 = vmul.f32 %v4296, %v4322
        %v4336 = vmul.f32 %v4297, %v4322
        %v4337 = vmul.f32 %v4298, %v4322
        %v4338 = vmul.f32 %v4299, %v4322
        %v4339 = vmul.f32 %v4300, %v4322
        %v4340 = vmul.f32 %v4301, %v4322
        %v4341 = vmul.f32 %v4302, %v4322
        %v4342 = vmul.f32 %v4303, %v4322
        %v4343 = vmul.f32 %v4304, %v4322
        %v4344 = vmul.f32 %v4305, %v4322
        %v4345 = vmul.f32 %v4306, %v4322
        %v4346 = vmul.f32 %v4307, %v4322
        %v4347 = vmul.f32 %v4308, %v4322
        %v4348 = vmul.f32 %v4309, %v4322
        %v4349 = vmul.f32 %v4310, %v4322
        %v4350 = vmul.f32 %v4311, %v4322
        %v4351 = vmul.f32 %v4312, %v4322
        %v4352 = vmul.f32 %v4313, %v4322
        %v4353 = vmul.f32 %v4314, %v4322
        %v4354 = vmul.f32 %v4315, %v4322
        %v4355 = vmul.f32 %v4316, %v4322
        %v4356 = vld [vmem:[%s276] sm:$0x1]
        %v4358 = vlaneseq
        %v4359 = vshrl.u32 %v4358, 7
        %v4360 = vsub.s32 0, %v4359
        %v4361 = vrot.slane %v4356, %v4360
        %v4363 = vadd.f32 %v4324, %v4361
        %v4364 = vadd.f32 %v4325, %v4361
        %v4365 = vadd.f32 %v4326, %v4361
        %v4366 = vadd.f32 %v4327, %v4361
        %v4367 = vadd.f32 %v4328, %v4361
        %v4368 = vadd.f32 %v4329, %v4361
        %v4369 = vadd.f32 %v4330, %v4361
        %v4370 = vadd.f32 %v4331, %v4361
        %v4371 = vadd.f32 %v4332, %v4361
        %v4372 = vadd.f32 %v4333, %v4361
        %v4373 = vadd.f32 %v4334, %v4361
        %v4374 = vadd.f32 %v4335, %v4361
        %v4375 = vadd.f32 %v4336, %v4361
        %v4376 = vadd.f32 %v4337, %v4361
        %v4377 = vadd.f32 %v4338, %v4361
        %v4378 = vadd.f32 %v4339, %v4361
        %v4379 = vadd.f32 %v4340, %v4361
        %v4380 = vadd.f32 %v4341, %v4361
        %v4381 = vadd.f32 %v4342, %v4361
        %v4382 = vadd.f32 %v4343, %v4361
        %v4383 = vadd.f32 %v4344, %v4361
        %v4384 = vadd.f32 %v4345, %v4361
        %v4385 = vadd.f32 %v4346, %v4361
        %v4386 = vadd.f32 %v4347, %v4361
        %v4387 = vadd.f32 %v4348, %v4361
        %v4388 = vadd.f32 %v4349, %v4361
        %v4389 = vadd.f32 %v4350, %v4361
        %v4390 = vadd.f32 %v4351, %v4361
        %v4391 = vadd.f32 %v4352, %v4361
        %v4392 = vadd.f32 %v4353, %v4361
        %v4393 = vadd.f32 %v4354, %v4361
        %v4394 = vadd.f32 %v4355, %v4361
        %v4395 = vmax.f32 %v4363, 0.0
        %v4396 = vmax.f32 %v4364, 0.0
        %v4397 = vmax.f32 %v4365, 0.0
        %v4398 = vmax.f32 %v4366, 0.0
        %v4399 = vmax.f32 %v4367, 0.0
        %v4400 = vmax.f32 %v4368, 0.0
        %v4401 = vmax.f32 %v4369, 0.0
        %v4402 = vmax.f32 %v4370, 0.0
        %v4403 = vmax.f32 %v4371, 0.0
        %v4404 = vmax.f32 %v4372, 0.0
        %v4405 = vmax.f32 %v4373, 0.0
        %v4406 = vmax.f32 %v4374, 0.0
        %v4407 = vmax.f32 %v4375, 0.0
        %v4408 = vmax.f32 %v4376, 0.0
        %v4409 = vmax.f32 %v4377, 0.0
        %v4410 = vmax.f32 %v4378, 0.0
        %v4411 = vmax.f32 %v4379, 0.0
        %v4412 = vmax.f32 %v4380, 0.0
        %v4413 = vmax.f32 %v4381, 0.0
        %v4414 = vmax.f32 %v4382, 0.0
        %v4415 = vmax.f32 %v4383, 0.0
        %v4416 = vmax.f32 %v4384, 0.0
        %v4417 = vmax.f32 %v4385, 0.0
        %v4418 = vmax.f32 %v4386, 0.0
        %v4419 = vmax.f32 %v4387, 0.0
        %v4420 = vmax.f32 %v4388, 0.0
        %v4421 = vmax.f32 %v4389, 0.0
        %v4422 = vmax.f32 %v4390, 0.0
        %v4423 = vmax.f32 %v4391, 0.0
        %v4424 = vmax.f32 %v4392, 0.0
        %v4425 = vmax.f32 %v4393, 0.0
        %v4426 = vmax.f32 %v4394, 0.0
        %4427 = vst [vmem:[%s270] sm:$0xff] %v4395
        %4428 = vst [vmem:[%s270 + $0x8] sm:$0xff] %v4396
        %4429 = vst [vmem:[%s270 + $0x10] sm:$0xff] %v4397
        %4430 = vst [vmem:[%s270 + $0x18] sm:$0xff] %v4398
        %4431 = vst [vmem:[%s270 + $0x20] sm:$0xff] %v4399
        %4432 = vst [vmem:[%s270 + $0x28] sm:$0xff] %v4400
        %4433 = vst [vmem:[%s270 + $0x30] sm:$0xff] %v4401
        %4434 = vst [vmem:[%s270 + $0x38] sm:$0xff] %v4402
        %4435 = vst [vmem:[%s270 + $0x40] sm:$0xff] %v4403
        %4436 = vst [vmem:[%s270 + $0x48] sm:$0xff] %v4404
        %4437 = vst [vmem:[%s270 + $0x50] sm:$0xff] %v4405
        %4438 = vst [vmem:[%s270 + $0x58] sm:$0xff] %v4406
        %4439 = vst [vmem:[%s270 + $0x60] sm:$0xff] %v4407
        %4440 = vst [vmem:[%s270 + $0x68] sm:$0xff] %v4408
        %4441 = vst [vmem:[%s270 + $0x70] sm:$0xff] %v4409
        %4442 = vst [vmem:[%s270 + $0x78] sm:$0xff] %v4410
        %4443 = vst [vmem:[%s270 + $0x80] sm:$0xff] %v4411
        %4444 = vst [vmem:[%s270 + $0x88] sm:$0xff] %v4412
        %4445 = vst [vmem:[%s270 + $0x90] sm:$0xff] %v4413
        %4446 = vst [vmem:[%s270 + $0x98] sm:$0xff] %v4414
        %4447 = vst [vmem:[%s270 + $0xa0] sm:$0xff] %v4415
        %4448 = vst [vmem:[%s270 + $0xa8] sm:$0xff] %v4416
        %4449 = vst [vmem:[%s270 + $0xb0] sm:$0xff] %v4417
        %4450 = vst [vmem:[%s270 + $0xb8] sm:$0xff] %v4418
        %4451 = vst [vmem:[%s270 + $0xc0] sm:$0xff] %v4419
        %4452 = vst [vmem:[%s270 + $0xc8] sm:$0xff] %v4420
        %4453 = vst [vmem:[%s270 + $0xd0] sm:$0xff] %v4421
        %4454 = vst [vmem:[%s270 + $0xd8] sm:$0xff] %v4422
        %4455 = vst [vmem:[%s270 + $0xe0] sm:$0xff] %v4423
        %4456 = vst [vmem:[%s270 + $0xe8] sm:$0xff] %v4424
        %4457 = vst [vmem:[%s270 + $0xf0] sm:$0xff] %v4425
        %4458 = vst [vmem:[%s270 + $0xf8] sm:$0xff] %v4426
        %s4459 = sand.u32 %s145, 1
        %s4460 = scalar_lea.sflag [#allocation6], %s4459
        %s4461 = sand.u32 %s145, 1
        %s4462 = smul.addr %s4461, 256
        %s4463 = scalar_lea.vmem [#allocation9], %s4462
        // Predicated region
        $region45: #{tpu_custom_call.1} parent=35 // pred_check
          %p4464 = pneg %p155
        $region46: #{tpu_custom_call.1} parent=35 // pred_check_branch
          %4466 = sbr.rel (%p4464) target = $region48
        $region47: #{tpu_custom_call.1} parent=35 // pred_region
          %s4468 = ssub.s32 4096, 4096
          %4469 = vsyncadd %s4460, %s4468
          %s4470 = smul.addr %s27, 32
          %s4471 = smul.addr %s26, 64
          %s4472 = sadd.s32 %s4470, %s4471
          %s4473 = smul.addr %s4472, 128
          %s4474 = scalar_lea.hbm %s4, %s4473
          %s4475 = sshll.u32 %s4463, 4
          %s4476 = int_to_ptr.vmem [resolvable:$true] %s4475
          %4481 = dma.vmem_to_hbm [thread:$0]  %s4476, 4096, %s4474, %s4460, 128, 128, 8
        $region48: #{tpu_custom_call.1} parent=35 // pred_fallthru
          _
      $region36: #{tpu_custom_call.1} parent=5 // pred_fallthru
        _
      %p4482 = scmp.le.s32.totalorder 2, %s17
      // Predicated region
      $region49: #{tpu_custom_call.1} parent=5 // pred_check
        %p4483 = pneg %p4482
      $region50: #{tpu_custom_call.1} parent=5 // pred_check_branch
        %4485 = sbr.rel (%p4483) target = $region52
      $region51: #{tpu_custom_call.1} parent=5 // pred_region
        %s4486 = ssub.s32 %s17, 2
        // Predicated region
        $region53: #{tpu_custom_call.1} parent=51 // pred_check
          %p4487 = pneg %p161
        $region54: #{tpu_custom_call.1} parent=51 // pred_check_branch
          %4489 = sbr.rel (%p4487) target = $region56
        $region55: #{tpu_custom_call.1} parent=51 // pred_region
          %s4490 = sand.u32 %s146, 1
          %s4491 = scalar_lea.sflag [#allocation6], %s4490
          %s4492 = sand.u32 %s146, 1
          %s4493 = smul.addr %s4492, 256
          %s4494 = scalar_lea.vmem [#allocation9], %s4493
          %4495 = dma.done %s4491, 4096
        $region56: #{tpu_custom_call.1} parent=51 // pred_fallthru
          _
      $region52: #{tpu_custom_call.1} parent=5 // pred_fallthru
        _
    $region6: #{tpu_custom_call.1} parent=1 // loop_footer
      %s21 = sadd.s32 1, %s17
    $region7: #{tpu_custom_call.1} parent=1 // loop_footer_branch
      %16 = sbr.rel target = $region3
    $region8: #{tpu_custom_call.1} parent=1 // loop_exit
      _
    %4496 = vsyncpa [#allocation5], 1
    %s4497 = scalar_lea.sflag [#allocation5], 1
    %4498 = vsyncpa %s4497, 1
    %4499 = vsyncpa [#allocation8], 1
    %4500 = vsyncpa [#allocation6], 1
    %s4501 = scalar_lea.sflag [#allocation6], 1
    %4502 = vsyncpa %s4501, 1

</llo_original>
